<compile_context>
chip_gen: v6e
topology: v6e:2x2x1
jax: 0.10.0
libtpu: 0.0.40
codegen_flags: <defaults>
</compile_context>

<pallas_src>
import functools

import jax
import jax.numpy as jnp
from jax import lax
from jax.experimental import pallas as pl
from jax.experimental.pallas import tpu as pltpu

EPS = 1e-5


# ----------------------------------------------------------------------------
# tiling helpers
# ----------------------------------------------------------------------------
def _pick_tile(m, cap):
    """Largest multiple-of-8 divisor of m that is <= cap (else m itself).

    Falling back to m keeps the block legal (block == full dim); for awkward m
    this means a single big block, which is fine at the sizes this module sees.
    """
    if m <= cap:
        return m
    for t in range(cap - cap % 8, 7, -8):
        if m % t == 0:
            return t
    return m


def _pick_strip(h, target):
    """Largest divisor of h that is <= target."""
    for t in range(min(h, target), 0, -1):
        if h % t == 0:
            return t
    return h


def _pick_rows(nh, w, cap_rows=1024):
    """Rows-per-block r for the upsample matmul: r | nh, r*w <= cap, r*w % 8 == 0."""
    cap = max(cap_rows, w)
    for r in range(nh, 0, -1):
        if nh % r:
            continue
        tm = r * w
        if tm <= cap and tm % 8 == 0:
            return r
    return nh                                  # single block; r*w == M (legal)


# ----------------------------------------------------------------------------
# Kernel 1: ConvTranspose2d(k=2, s=2, bias) as a row-tiled matmul with the 2x2
# pixel shuffle folded into the output layout:
#   out[n, 2i+di, 2j+dj, o] = sum_c x[n,i,j,c] * W[c,o,di,dj] + b[o]
# For each di the columns (dj, o) are one contiguous matmul output slab, so
# the wrapper only needs free reshapes afterwards.
# ----------------------------------------------------------------------------
def _upsample_kernel(x_ref, w_ref, b_ref, o_ref):
    r, _, wout, _ = o_ref.shape
    x = x_ref[...]                                  # (r*w, cin) bf16
    b = b_ref[...]                                  # (1, 2*cout) f32
    for di in range(2):
        acc = jnp.dot(x, w_ref[di], preferred_element_type=jnp.float32) + b
        o_ref[:, di] = acc.reshape(r, wout, acc.shape[-1]).astype(o_ref.dtype)


def conv_transpose_2x2(x_nhwc, up_w, up_b, row_cap=1024):
    """ConvTranspose2d(2, stride=2, bias) on NHWC input -> (N, 2H, 2W, Cout) bf16."""
    n, h, w, cin = x_nhwc.shape
    cout = up_w.shape[1]
    # weight as (di, c, (dj, o)); bias broadcast over dj
    w_k = jnp.transpose(up_w, (2, 0, 3, 1)).reshape(2, cin, 2 * cout)
    w_k = w_k.astype(jnp.bfloat16)
    b_k = jnp.tile(up_b, 2).reshape(1, 2 * cout).astype(jnp.float32)

    nh = n * h
    r = _pick_rows(nh, w, row_cap)
    x2d = x_nhwc.reshape(nh * w, cin).astype(jnp.bfloat16)

    y = pl.pallas_call(
        _upsample_kernel,
        out_shape=jax.ShapeDtypeStruct((nh, 2, w, 2 * cout), jnp.bfloat16),
        grid=(nh // r,),
        in_specs=[
            pl.BlockSpec((r * w, cin), lambda i: (i, 0)),
            pl.BlockSpec((2, cin, 2 * cout), lambda i: (0, 0, 0)),   # resident
            pl.BlockSpec((1, 2 * cout), lambda i: (0, 0)),           # resident
        ],
        out_specs=pl.BlockSpec((r, 2, w, 2 * cout), lambda i: (i, 0, 0, 0)),
        compiler_params=pltpu.CompilerParams(
            dimension_semantics=("parallel",)),
        cost_estimate=pl.CostEstimate(
            flops=2 * nh * w * cin * 4 * cout, transcendentals=0,
            bytes_accessed=(nh * w * cin * 2 + 4 * cin * cout * 2
                            + 2 * cout * 4 + nh * w * 4 * cout * 2)),
    )(x2d, w_k, b_k)
    # contiguous (free) reshapes: (n*h, 2, w, 2*cout) -> (n, 2h, 2w, cout)
    return y.reshape(n, h, 2, w, 2, cout).reshape(n, 2 * h, 2 * w, cout)


# ----------------------------------------------------------------------------
# Kernel 2: 3x3 conv (pad=1, no bias) over the *implicit* channel concat of
# several inputs, full-width row strips.  The 1-row top/bottom halos come from
# extra clamped BlockSpecs on the same HBM arrays (no halo materialisation),
# the left/right zero columns are added in VMEM.  Optionally fuses the
# previous block's BatchNorm+ReLU onto the input, and always emits per-strip
# channel sum / sum-of-squares for this block's BatchNorm.
# ----------------------------------------------------------------------------
def _conv3x3_kernel(*refs, n_in, th, s_strips, fuse_bn):
    x_refs = refs[:3 * n_in]                 # per input: main, top-halo, bot-halo
    w_ref = refs[3 * n_in]                   # (3, 3, Ctot, Cout) bf16
    pos = 3 * n_in + 1
    if fuse_bn:
        scale_ref, shift_ref = refs[pos], refs[pos + 1]
        pos += 2
    o_ref, stats_ref = refs[pos], refs[pos + 1]
    _, _, wout, cout = o_ref.shape

    ti = pl.program_id(1)
    keep_top = (ti > 0).astype(jnp.bfloat16)              # top halo row = zero pad
    keep_bot = (ti < s_strips - 1).astype(jnp.bfloat16)   # bottom halo row = zero pad

    def maybe_bn_relu(v):
        if not fuse_bn:
            return v
        y = v.astype(jnp.float32) * scale_ref[0] + shift_ref[0]
        return jnp.maximum(y, 0.0).astype(jnp.bfloat16)

    # assemble the (th+2, W, Ci) halo window per input (BN/ReLU before the
    # edge zeroing so conv zero-padding stays exactly zero)
    parts = []
    for i in range(n_in):
        main = maybe_bn_relu(x_refs[3 * i][0])                      # (th, W, Ci)
        top = maybe_bn_relu(x_refs[3 * i + 1][0]) * keep_top        # (1,  W, Ci)
        bot = maybe_bn_relu(x_refs[3 * i + 2][0]) * keep_bot        # (1,  W, Ci)
        parts.append(jnp.concatenate([top, main, bot], axis=0))
    # implicit torch.cat([...], dim=1): lane concat in VMEM, never hits HBM
    win = parts[0] if n_in == 1 else jnp.concatenate(parts, axis=-1)
    ct = win.shape[-1]

    # conv zero padding along W, added in VMEM
    zcol = jnp.zeros((th + 2, 1, ct), jnp.bfloat16)
    winp = jnp.concatenate([zcol, win, zcol], axis=1)               # (th+2, W+2, Ct)

    acc = jnp.zeros((th * wout, cout), jnp.float32)
    for dw in range(3):
        # one W-shifted copy per dw (3 copies, not 9); the dh shift is an
        # aligned contiguous row slice of the flattened 2-D matmul operand
        # (keep W a multiple of 8 for a relayout-free reshape/slice)
        xw = winp[:, dw:dw + wout, :].reshape((th + 2) * wout, ct)
        for dh in range(3):
            lhs = xw[dh * wout:(dh + th) * wout, :]
            acc = acc + jnp.dot(lhs, w_ref[dh, dw],
                                preferred_element_type=jnp.float32)

    o_ref[0] = acc.reshape(th, wout, cout).astype(o_ref.dtype)

    # per-strip channel stats from the f32 accumulator: row 0 = sum,
    # row 1 = sum of squares (rows 2..7 pad the (8,128) tile)
    # TODO(synk): pad the stats lane dim to 128 to avoid masked vst on tiny Cout.
    s1 = jnp.sum(acc, axis=0, keepdims=True)
    s2 = jnp.sum(acc * acc, axis=0, keepdims=True)
    rowi = lax.broadcasted_iota(jnp.int32, (8, cout), 0)
    stats_ref[0, 0] = jnp.where(rowi == 0, s1, jnp.where(rowi == 1, s2, 0.0))


def conv3x3_fused_stats(inputs, weight, th, in_scale=None, in_shift=None,
                        vmem_limit_mb=48):
    """3x3 conv (pad=1, no bias) over concat(inputs, channel) + per-strip stats.

    If in_scale/in_shift are given (single input only), y = relu(x*scale+shift)
    is applied to the loaded input strip first (fused BatchNorm+ReLU of the
    previous block).
    """
    n, hh, ww, _ = inputs[0].shape
    cout = weight.shape[-1]
    ctot = weight.shape[2]
    s = hh // th
    n_in = len(inputs)
    fuse_bn = in_scale is not None
    assert hh % th == 0
    assert not (fuse_bn and n_in != 1)
    assert sum(int(x.shape[-1]) for x in inputs) == ctot

    xs = [x.astype(jnp.bfloat16) for x in inputs]
    w_bf = weight.astype(jnp.bfloat16)

    in_specs, args = [], []
    for x in xs:
        c = int(x.shape[-1])
        # main th rows of the strip
        in_specs.append(pl.BlockSpec((1, th, ww, c),
                                     lambda ni, ti: (ni, ti, 0, 0)))
        # 1-row top / bottom halos (clamped; zeroed in-kernel at image edges)
        in_specs.append(pl.BlockSpec(
            (1, 1, ww, c),
            lambda ni, ti: (ni, jnp.maximum(ti * th - 1, 0), 0, 0)))
        in_specs.append(pl.BlockSpec(
            (1, 1, ww, c),
            lambda ni, ti: (ni, jnp.minimum(ti * th + th, hh - 1), 0, 0)))
        args += [x, x, x]
    in_specs.append(pl.BlockSpec((3, 3, ctot, cout),
                                 lambda ni, ti: (0, 0, 0, 0)))       # resident
    args.append(w_bf)
    if fuse_bn:
        in_specs += [pl.BlockSpec((1, ctot), lambda ni, ti: (0, 0))] * 2
        args += [in_scale.reshape(1, ctot).astype(jnp.float32),
                 in_shift.reshape(1, ctot).astype(jnp.float32)]

    flops = 2 * n * hh * ww * cout * 9 * ctot
    bytes_accessed = (sum(int(x.size) * 2 for x in xs) * (th + 2) // th
                      + int(w_bf.size) * 2
                      + n * hh * ww * cout * 2 + n * s * 8 * cout * 4)

    conv_out, stats = pl.pallas_call(
        functools.partial(_conv3x3_kernel, n_in=n_in, th=th, s_strips=s,
                          fuse_bn=fuse_bn),
        out_shape=(jax.ShapeDtypeStruct((n, hh, ww, cout), jnp.bfloat16),
                   jax.ShapeDtypeStruct((n, s, 8, cout), jnp.float32)),
        grid=(n, s),
        in_specs=in_specs,
        out_specs=(pl.BlockSpec((1, th, ww, cout),
                                lambda ni, ti: (ni, ti, 0, 0)),
                   pl.BlockSpec((1, 1, 8, cout),
                                lambda ni, ti: (ni, ti, 0, 0))),
        compiler_params=pltpu.CompilerParams(
            dimension_semantics=("parallel", "parallel"),
            vmem_limit_bytes=vmem_limit_mb * 1024 * 1024),
        cost_estimate=pl.CostEstimate(flops=flops, transcendentals=0,
                                      bytes_accessed=bytes_accessed),
    )(*args)
    return conv_out, stats


# ----------------------------------------------------------------------------
# BatchNorm finalize (tiny, on the per-strip partial sums)
# ----------------------------------------------------------------------------
def _bn_scale_shift(stats, gamma, beta, count):
    s1 = jnp.sum(stats[:, :, 0, :], axis=(0, 1))
    s2 = jnp.sum(stats[:, :, 1, :], axis=(0, 1))
    mean = s1 / count
    # biased variance (PyTorch train-mode normalisation).  E[x^2]-E[x]^2 in f32
    # is fine for activation-scale data but can lose precision if |mean| >> std.
    var = jnp.maximum(s2 / count - mean * mean, 0.0)
    scale = gamma / jnp.sqrt(var + EPS)
    shift = beta - mean * scale
    return scale, shift


# ----------------------------------------------------------------------------
# Kernel 3: fused per-channel scale/shift + ReLU on a lane-dense 2-D view
# ----------------------------------------------------------------------------
def _bn_relu_kernel(x_ref, scale_ref, shift_ref, o_ref):
    y = x_ref[...].astype(jnp.float32) * scale_ref[...] + shift_ref[...]
    o_ref[...] = jnp.maximum(y, 0.0).astype(o_ref.dtype)


def bn_relu(x_nhwc, scale, shift, out_dtype, row_tile=1024):
    n, h, w, c = x_nhwc.shape
    m = n * h * w
    tm = _pick_tile(m, row_tile)
    x2 = x_nhwc.reshape(m, c)
    y2 = pl.pallas_call(
        _bn_relu_kernel,
        out_shape=jax.ShapeDtypeStruct((m, c), out_dtype),
        grid=(m // tm,),
        in_specs=[
            pl.BlockSpec((tm, c), lambda i: (i, 0)),
            pl.BlockSpec((1, c), lambda i: (0, 0)),
            pl.BlockSpec((1, c), lambda i: (0, 0)),
        ],
        out_specs=pl.BlockSpec((tm, c), lambda i: (i, 0)),
        compiler_params=pltpu.CompilerParams(
            dimension_semantics=("parallel",)),
        cost_estimate=pl.CostEstimate(
            flops=3 * m * c, transcendentals=0,
            bytes_accessed=m * c * (x_nhwc.dtype.itemsize
                                    + jnp.dtype(out_dtype).itemsize) + 8 * c),
    )(x2, scale.reshape(1, c).astype(jnp.float32),
      shift.reshape(1, c).astype(jnp.float32))
    return y2.reshape(n, h, w, c)


# ----------------------------------------------------------------------------
# F.pad semantics on H/W of an NHWC tensor (negative amounts crop)
# ----------------------------------------------------------------------------
def _pad_or_crop_hw(x, d_h, d_w):
    def _one(arr, axis, before, after):
        if before > 0 or after > 0:
            pads = [(0, 0)] * arr.ndim
            pads[axis] = (max(before, 0), max(after, 0))
            arr = jnp.pad(arr, pads)
        if before < 0 or after < 0:
            start = max(-before, 0)
            stop = arr.shape[axis] - max(-after, 0)
            arr = lax.slice_in_dim(arr, start, stop, axis=axis)
        return arr
    x = _one(x, 1, d_h // 2, d_h - d_h // 2)
    x = _one(x, 2, d_w // 2, d_w - d_w // 2)
    return x


# ----------------------------------------------------------------------------
# _UpBlock forward (NCHW in / NCHW out)
# ----------------------------------------------------------------------------
@functools.partial(jax.jit, static_argnames=("row_strip",))
def up_block_forward(x_nchw, bridge_nchw, params, *, row_strip=32):
    x = jnp.transpose(x_nchw, (0, 2, 3, 1)).astype(jnp.bfloat16)          # NHWC
    bridge = jnp.transpose(bridge_nchw, (0, 2, 3, 1)).astype(jnp.bfloat16)

    n = x.shape[0]

    # --- ConvTranspose2d(k=2, s=2) with the pixel shuffle folded in ---------
    x_up = conv_transpose_2x2(x, params["up_w"], params["up_b"])

    # --- pad / crop to bridge spatial size (F.pad semantics) ----------------
    hb, wb = bridge.shape[1], bridge.shape[2]
    x_up = _pad_or_crop_hw(x_up, hb - x_up.shape[1], wb - x_up.shape[2])

    # row strip: v5e/v6e can take ~128 (128 MiB VMEM); v7x (64 MiB) prefers 16-32.
    th = _pick_strip(hb, row_strip)
    cnt = n * hb * wb

    # --- ConvBlock 1: conv over the implicit concat([bridge, x_up], ch) -----
    # (order matches torch.cat([bridge, x], dim=1)); BN stats come out of the
    # conv kernel as per-strip partial sums.
    h1_raw, stats1 = conv3x3_fused_stats([bridge, x_up], params["w1"], th)
    scale1, shift1 = _bn_scale_shift(stats1, params["g1"], params["b1"], cnt)

    # --- ConvBlock 2: block 1's BatchNorm+ReLU is fused onto this conv's ----
    # input path, so the normalised h1 never round-trips through HBM.
    h2_raw, stats2 = conv3x3_fused_stats([h1_raw], params["w2"], th,
                                         in_scale=scale1, in_shift=shift1)
    scale2, shift2 = _bn_scale_shift(stats2, params["g2"], params["b2"], cnt)

    h2 = bn_relu(h2_raw, scale2, shift2, out_dtype=jnp.float32)

    # TODO(synk): fold this NCHW relayout into bn_relu (in-kernel transpose to
    # a (1, C, th, W) out block) to drop one more f32 HBM round trip.
    return jnp.transpose(h2, (0, 3, 1, 2))                 # back to NCHW, f32


def init_params(key, in_c, bridge_c, out_c):
    k = jax.random.split(key, 4)
    # ConvTranspose2d weight: (in_c, out_c, 2, 2), bias: (out_c,)
    up_w = 0.1 * jax.random.normal(k[0], (in_c, out_c, 2, 2), jnp.float32)
    up_b = 0.1 * jax.random.normal(k[1], (out_c,), jnp.float32)
    # Conv2d weights, PyTorch layout (Cout, Cin, 3, 3) -> HWIO for the kernels.
    # Cin order of w1 is [bridge channels, upsampled channels] (torch cat order).
    w1 = 0.1 * jax.random.normal(k[2], (out_c, out_c + bridge_c, 3, 3), jnp.float32)
    w2 = 0.1 * jax.random.normal(k[3], (out_c, out_c, 3, 3), jnp.float32)
    w1 = jnp.transpose(w1, (2, 3, 1, 0))   # (3, 3, Cin, Cout)
    w2 = jnp.transpose(w2, (2, 3, 1, 0))
    # BatchNorm affine params (PyTorch default: gamma=1, beta=0)
    g1 = jnp.ones((out_c,), jnp.float32)
    b1 = jnp.zeros((out_c,), jnp.float32)
    g2 = jnp.ones((out_c,), jnp.float32)
    b2 = jnp.zeros((out_c,), jnp.float32)
    return dict(up_w=up_w, up_b=up_b, w1=w1, w2=w2, g1=g1, b1=b1, g2=g2, b2=b2)


if __name__ == "__main__":
    in_c, bridge_c, out_c = 8, 4, 4
    n, h, w = 2, 8, 8

    key = jax.random.PRNGKey(0)
    kx, kb, kp = jax.random.split(key, 3)
    x = jax.random.normal(kx, (n, in_c, h, w), jnp.float32)               # NCHW
    bridge = jax.random.normal(kb, (n, bridge_c, 2 * h, 2 * w), jnp.float32)

    params = init_params(kp, in_c, bridge_c, out_c)

    # row_strip=8 exercises the multi-strip (halo) conv path at these toy sizes.
    out = up_block_forward(x, bridge, params, row_strip=8)
    jax.block_until_ready(out)
    assert out.shape == (n, out_c, 2 * h, 2 * w), out.shape
    assert bool(jnp.all(jnp.isfinite(out)))
    print("KERNEL_OK")
</pallas_src>

<mosaic_0001>
module attributes {stable_mosaic.version = 11 : i64} {
  func.func @_upsample_kernel(%arg0: i32, %arg1: memref<128x8xbf16, #tpu.memory_space<vmem>>, %arg2: memref<2x8x8xbf16, #tpu.memory_space<vmem>>, %arg3: memref<1x8xf32, #tpu.memory_space<vmem>>, %arg4: memref<16x2x8x8xbf16, #tpu.memory_space<vmem>>) attributes {dimension_semantics = [#tpu.dimension_semantics<parallel>], iteration_bounds = array<i64: 1>, scalar_prefetch = 0 : i64, scratch_operands = 0 : i64, tpu.core_type = #tpu.core_type<tc>, window_params = [{transform_indices = @transform_0, window_bounds = array<i64: 128, 8>}, {pipeline_mode = #tpu.pipeline_mode<synchronous>, transform_indices = @transform_1, window_bounds = array<i64: 2, 8, 8>}, {pipeline_mode = #tpu.pipeline_mode<synchronous>, transform_indices = @transform_2, window_bounds = array<i64: 1, 8>}, {transform_indices = @transform_3, window_bounds = array<i64: 16, 2, 8, 8>}]} {
    %c0 = arith.constant 0 : index
    %c0_0 = arith.constant 0 : index
    %0 = vector.load %arg1[%c0, %c0_0] : memref<128x8xbf16, #tpu.memory_space<vmem>>, vector<128x8xbf16>
    %c0_1 = arith.constant 0 : index
    %c0_2 = arith.constant 0 : index
    %1 = vector.load %arg3[%c0_1, %c0_2] : memref<1x8xf32, #tpu.memory_space<vmem>>, vector<1x8xf32>
    %c0_3 = arith.constant 0 : index
    %c0_4 = arith.constant 0 : index
    %c0_5 = arith.constant 0 : index
    %2 = vector.load %arg2[%c0_3, %c0_4, %c0_5] : memref<2x8x8xbf16, #tpu.memory_space<vmem>>, vector<1x8x8xbf16>
    %3 = vector.shape_cast %2 : vector<1x8x8xbf16> to vector<8x8xbf16>
    %cst = arith.constant dense<0.000000e+00> : vector<128x8xf32>
    %4 = tpu.matmul %0, %3, %cst {dimension_numbers = #tpu.dot_dimension_numbers<[1], [0], [0], [1], [0, 0, 1, 1], [], []>} : vector<128x8xbf16>, vector<8x8xbf16>, vector<128x8xf32> -> vector<128x8xf32>
    %5 = vector.broadcast %1 : vector<1x8xf32> to vector<128x8xf32>
    %6 = arith.addf %4, %5 : vector<128x8xf32>
    %7 = vector.shape_cast %6 : vector<128x8xf32> to vector<16x8x8xf32>
    %8 = arith.truncf %7 : vector<16x8x8xf32> to vector<16x8x8xbf16>
    %c0_6 = arith.constant 0 : index
    %c0_7 = arith.constant 0 : index
    %c0_8 = arith.constant 0 : index
    %c0_9 = arith.constant 0 : index
    %9 = vector.load %arg4[%c0_6, %c0_7, %c0_8, %c0_9] : memref<16x2x8x8xbf16, #tpu.memory_space<vmem>>, vector<16x1x8x8xbf16>
    %10 = vector.shape_cast %9 : vector<16x1x8x8xbf16> to vector<16x8x8xbf16>
    %11 = vector.shape_cast %8 : vector<16x8x8xbf16> to vector<16x1x8x8xbf16>
    tpu.vector_store %arg4[%c0_6, %c0_7, %c0_8, %c0_9], %11 {strides = array<i32>} : memref<16x2x8x8xbf16, #tpu.memory_space<vmem>>, vector<16x1x8x8xbf16>,
    %c1 = arith.constant 1 : index
    %c0_10 = arith.constant 0 : index
    %c0_11 = arith.constant 0 : index
    %12 = vector.load %arg2[%c1, %c0_10, %c0_11] : memref<2x8x8xbf16, #tpu.memory_space<vmem>>, vector<1x8x8xbf16>
    %13 = vector.shape_cast %12 : vector<1x8x8xbf16> to vector<8x8xbf16>
    %cst_12 = arith.constant dense<0.000000e+00> : vector<128x8xf32>
    %14 = tpu.matmul %0, %13, %cst_12 {dimension_numbers = #tpu.dot_dimension_numbers<[1], [0], [0], [1], [0, 0, 1, 1], [], []>} : vector<128x8xbf16>, vector<8x8xbf16>, vector<128x8xf32> -> vector<128x8xf32>
    %15 = vector.broadcast %1 : vector<1x8xf32> to vector<128x8xf32>
    %16 = arith.addf %14, %15 : vector<128x8xf32>
    %17 = vector.shape_cast %16 : vector<128x8xf32> to vector<16x8x8xf32>
    %18 = arith.truncf %17 : vector<16x8x8xf32> to vector<16x8x8xbf16>
    %c0_13 = arith.constant 0 : index
    %c1_14 = arith.constant 1 : index
    %c0_15 = arith.constant 0 : index
    %c0_16 = arith.constant 0 : index
    %19 = vector.load %arg4[%c0_13, %c1_14, %c0_15, %c0_16] : memref<16x2x8x8xbf16, #tpu.memory_space<vmem>>, vector<16x1x8x8xbf16>
    %20 = vector.shape_cast %19 : vector<16x1x8x8xbf16> to vector<16x8x8xbf16>
    %21 = vector.shape_cast %18 : vector<16x8x8xbf16> to vector<16x1x8x8xbf16>
    tpu.vector_store %arg4[%c0_13, %c1_14, %c0_15, %c0_16], %21 {strides = array<i32>} : memref<16x2x8x8xbf16, #tpu.memory_space<vmem>>, vector<16x1x8x8xbf16>,
    return
  }
  func.func @transform_0(%arg0: i32) -> (i32, i32) {
    %c0_i32 = arith.constant 0 : i32
    %c0_i32_0 = arith.constant 0 : i32
    return %arg0, %c0_i32 : i32, i32
  }
  func.func @transform_1(%arg0: i32) -> (i32, i32, i32) {
    %c0_i32 = arith.constant 0 : i32
    %c0_i32_0 = arith.constant 0 : i32
    %c0_i32_1 = arith.constant 0 : i32
    %c0_i32_2 = arith.constant 0 : i32
    return %c0_i32, %c0_i32_0, %c0_i32_1 : i32, i32, i32
  }
  func.func @transform_2(%arg0: i32) -> (i32, i32) {
    %c0_i32 = arith.constant 0 : i32
    %c0_i32_0 = arith.constant 0 : i32
    %c0_i32_1 = arith.constant 0 : i32
    return %c0_i32, %c0_i32_0 : i32, i32
  }
  func.func @transform_3(%arg0: i32) -> (i32, i32, i32, i32) {
    %c0_i32 = arith.constant 0 : i32
    %c0_i32_0 = arith.constant 0 : i32
    %c0_i32_1 = arith.constant 0 : i32
    %c0_i32_2 = arith.constant 0 : i32
    return %arg0, %c0_i32, %c0_i32_0, %c0_i32_1 : i32, i32, i32, i32
  }
}

module attributes {stable_mosaic.version = 11 : i64} {
  func.func @_conv3x3_kernel(%arg0: i32, %arg1: i32, %arg2: memref<1x8x16x4xbf16, #tpu.memory_space<vmem>>, %arg3: memref<1x1x16x4xbf16, #tpu.memory_space<vmem>>, %arg4: memref<1x1x16x4xbf16, #tpu.memory_space<vmem>>, %arg5: memref<1x8x16x4xbf16, #tpu.memory_space<vmem>>, %arg6: memref<1x1x16x4xbf16, #tpu.memory_space<vmem>>, %arg7: memref<1x1x16x4xbf16, #tpu.memory_space<vmem>>, %arg8: memref<3x3x8x4xbf16, #tpu.memory_space<vmem>>, %arg9: memref<1x8x16x4xbf16, #tpu.memory_space<vmem>>, %arg10: memref<1x1x8x4xf32, #tpu.memory_space<vmem>>) attributes {dimension_semantics = [#tpu.dimension_semantics<parallel>, #tpu.dimension_semantics<parallel>], iteration_bounds = array<i64: 2, 2>, scalar_prefetch = 0 : i64, scratch_operands = 0 : i64, tpu.core_type = #tpu.core_type<tc>, window_params = [{transform_indices = @transform_0, window_bounds = array<i64: 1, 8, 16, 4>}, {transform_indices = @transform_1, window_bounds = array<i64: 1, 1, 16, 4>}, {transform_indices = @transform_2, window_bounds = array<i64: 1, 1, 16, 4>}, {transform_indices = @transform_3, window_bounds = array<i64: 1, 8, 16, 4>}, {transform_indices = @transform_4, window_bounds = array<i64: 1, 1, 16, 4>}, {transform_indices = @transform_5, window_bounds = array<i64: 1, 1, 16, 4>}, {pipeline_mode = #tpu.pipeline_mode<synchronous>, transform_indices = @transform_6, window_bounds = array<i64: 3, 3, 8, 4>}, {transform_indices = @transform_7, window_bounds = array<i64: 1, 8, 16, 4>}, {transform_indices = @transform_8, window_bounds = array<i64: 1, 1, 8, 4>}]} {
    %c0_i32 = arith.constant 0 : i32
    %0 = arith.cmpi sgt, %arg1, %c0_i32 : i32
    %1 = arith.extui %0 : i1 to i32
    %2 = arith.sitofp %1 : i32 to f32
    %3 = arith.truncf %2 : f32 to bf16
    %c1_i32 = arith.constant 1 : i32
    %4 = arith.cmpi slt, %arg1, %c1_i32 : i32
    %5 = arith.extui %4 : i1 to i32
    %6 = arith.sitofp %5 : i32 to f32
    %7 = arith.truncf %6 : f32 to bf16
    %c0 = arith.constant 0 : index
    %c0_0 = arith.constant 0 : index
    %c0_1 = arith.constant 0 : index
    %c0_2 = arith.constant 0 : index
    %8 = vector.load %arg2[%c0, %c0_0, %c0_1, %c0_2] : memref<1x8x16x4xbf16, #tpu.memory_space<vmem>>, vector<1x8x16x4xbf16>
    %9 = vector.shape_cast %8 : vector<1x8x16x4xbf16> to vector<8x16x4xbf16>
    %c0_3 = arith.constant 0 : index
    %c0_4 = arith.constant 0 : index
    %c0_5 = arith.constant 0 : index
    %c0_6 = arith.constant 0 : index
    %10 = vector.load %arg3[%c0_3, %c0_4, %c0_5, %c0_6] : memref<1x1x16x4xbf16, #tpu.memory_space<vmem>>, vector<1x1x16x4xbf16>
    %11 = vector.shape_cast %10 : vector<1x1x16x4xbf16> to vector<1x16x4xbf16>
    %12 = vector.broadcast %3 : bf16 to vector<1x16x4xbf16>
    %13 = arith.mulf %11, %12 : vector<1x16x4xbf16>
    %c0_7 = arith.constant 0 : index
    %c0_8 = arith.constant 0 : index
    %c0_9 = arith.constant 0 : index
    %c0_10 = arith.constant 0 : index
    %14 = vector.load %arg4[%c0_7, %c0_8, %c0_9, %c0_10] : memref<1x1x16x4xbf16, #tpu.memory_space<vmem>>, vector<1x1x16x4xbf16>
    %15 = vector.shape_cast %14 : vector<1x1x16x4xbf16> to vector<1x16x4xbf16>
    %16 = vector.broadcast %7 : bf16 to vector<1x16x4xbf16>
    %17 = arith.mulf %15, %16 : vector<1x16x4xbf16>
    %18 = tpu.concatenate %13, %9, %17 in 0 : vector<1x16x4xbf16>, vector<8x16x4xbf16>, vector<1x16x4xbf16> -> vector<10x16x4xbf16>
    %c0_11 = arith.constant 0 : index
    %c0_12 = arith.constant 0 : index
    %c0_13 = arith.constant 0 : index
    %c0_14 = arith.constant 0 : index
    %19 = vector.load %arg5[%c0_11, %c0_12, %c0_13, %c0_14] : memref<1x8x16x4xbf16, #tpu.memory_space<vmem>>, vector<1x8x16x4xbf16>
    %20 = vector.shape_cast %19 : vector<1x8x16x4xbf16> to vector<8x16x4xbf16>
    %c0_15 = arith.constant 0 : index
    %c0_16 = arith.constant 0 : index
    %c0_17 = arith.constant 0 : index
    %c0_18 = arith.constant 0 : index
    %21 = vector.load %arg6[%c0_15, %c0_16, %c0_17, %c0_18] : memref<1x1x16x4xbf16, #tpu.memory_space<vmem>>, vector<1x1x16x4xbf16>
    %22 = vector.shape_cast %21 : vector<1x1x16x4xbf16> to vector<1x16x4xbf16>
    %23 = vector.broadcast %3 : bf16 to vector<1x16x4xbf16>
    %24 = arith.mulf %22, %23 : vector<1x16x4xbf16>
    %c0_19 = arith.constant 0 : index
    %c0_20 = arith.constant 0 : index
    %c0_21 = arith.constant 0 : index
    %c0_22 = arith.constant 0 : index
    %25 = vector.load %arg7[%c0_19, %c0_20, %c0_21, %c0_22] : memref<1x1x16x4xbf16, #tpu.memory_space<vmem>>, vector<1x1x16x4xbf16>
    %26 = vector.shape_cast %25 : vector<1x1x16x4xbf16> to vector<1x16x4xbf16>
    %27 = vector.broadcast %7 : bf16 to vector<1x16x4xbf16>
    %28 = arith.mulf %26, %27 : vector<1x16x4xbf16>
    %29 = tpu.concatenate %24, %20, %28 in 0 : vector<1x16x4xbf16>, vector<8x16x4xbf16>, vector<1x16x4xbf16> -> vector<10x16x4xbf16>
    %30 = tpu.concatenate %18, %29 in 2 : vector<10x16x4xbf16>, vector<10x16x4xbf16> -> vector<10x16x8xbf16>
    %cst = arith.constant 0.000000e+00 : bf16
    %31 = vector.broadcast %cst : bf16 to vector<10x1x8xbf16>
    %32 = tpu.concatenate %31, %30, %31 in 1 : vector<10x1x8xbf16>, vector<10x16x8xbf16>, vector<10x1x8xbf16> -> vector<10x18x8xbf16>
    %cst_23 = arith.constant 0.000000e+00 : f32
    %33 = vector.broadcast %cst_23 : f32 to vector<128x4xf32>
    %34 = vector.extract_strided_slice %32 {offsets = [0, 0, 0], sizes = [10, 16, 8], strides = [1, 1, 1]} : vector<10x18x8xbf16> to vector<10x16x8xbf16>
    %35 = vector.shape_cast %34 : vector<10x16x8xbf16> to vector<160x8xbf16>
    %36 = vector.extract_strided_slice %35 {offsets = [0, 0], sizes = [128, 8], strides = [1, 1]} : vector<160x8xbf16> to vector<128x8xbf16>
    %c0_24 = arith.constant 0 : index
    %c0_25 = arith.constant 0 : index
    %c0_26 = arith.constant 0 : index
    %c0_27 = arith.constant 0 : index
    %37 = vector.load %arg8[%c0_24, %c0_25, %c0_26, %c0_27] : memref<3x3x8x4xbf16, #tpu.memory_space<vmem>>, vector<1x1x8x4xbf16>
    %38 = vector.shape_cast %37 : vector<1x1x8x4xbf16> to vector<8x4xbf16>
    %cst_28 = arith.constant dense<0.000000e+00> : vector<128x4xf32>
    %39 = tpu.matmul %36, %38, %cst_28 {dimension_numbers = #tpu.dot_dimension_numbers<[1], [0], [0], [1], [0, 0, 1, 1], [], []>} : vector<128x8xbf16>, vector<8x4xbf16>, vector<128x4xf32> -> vector<128x4xf32>
    %40 = arith.addf %33, %39 : vector<128x4xf32>
    %41 = vector.extract_strided_slice %35 {offsets = [16, 0], sizes = [128, 8], strides = [1, 1]} : vector<160x8xbf16> to vector<128x8xbf16>
    %c1 = arith.constant 1 : index
    %c0_29 = arith.constant 0 : index
    %c0_30 = arith.constant 0 : index
    %c0_31 = arith.constant 0 : index
    %42 = vector.load %arg8[%c1, %c0_29, %c0_30, %c0_31] : memref<3x3x8x4xbf16, #tpu.memory_space<vmem>>, vector<1x1x8x4xbf16>
    %43 = vector.shape_cast %42 : vector<1x1x8x4xbf16> to vector<8x4xbf16>
    %cst_32 = arith.constant dense<0.000000e+00> : vector<128x4xf32>
    %44 = tpu.matmul %41, %43, %cst_32 {dimension_numbers = #tpu.dot_dimension_numbers<[1], [0], [0], [1], [0, 0, 1, 1], [], []>} : vector<128x8xbf16>, vector<8x4xbf16>, vector<128x4xf32> -> vector<128x4xf32>
    %45 = arith.addf %40, %44 : vector<128x4xf32>
    %46 = vector.extract_strided_slice %35 {offsets = [32, 0], sizes = [128, 8], strides = [1, 1]} : vector<160x8xbf16> to vector<128x8xbf16>
    %c2 = arith.constant 2 : index
    %c0_33 = arith.constant 0 : index
    %c0_34 = arith.constant 0 : index
    %c0_35 = arith.constant 0 : index
    %47 = vector.load %arg8[%c2, %c0_33, %c0_34, %c0_35] : memref<3x3x8x4xbf16, #tpu.memory_space<vmem>>, vector<1x1x8x4xbf16>
    %48 = vector.shape_cast %47 : vector<1x1x8x4xbf16> to vector<8x4xbf16>
    %cst_36 = arith.constant dense<0.000000e+00> : vector<128x4xf32>
    %49 = tpu.matmul %46, %48, %cst_36 {dimension_numbers = #tpu.dot_dimension_numbers<[1], [0], [0], [1], [0, 0, 1, 1], [], []>} : vector<128x8xbf16>, vector<8x4xbf16>, vector<128x4xf32> -> vector<128x4xf32>
    %50 = arith.addf %45, %49 : vector<128x4xf32>
    %51 = vector.extract_strided_slice %32 {offsets = [0, 1, 0], sizes = [10, 16, 8], strides = [1, 1, 1]} : vector<10x18x8xbf16> to vector<10x16x8xbf16>
    %52 = vector.shape_cast %51 : vector<10x16x8xbf16> to vector<160x8xbf16>
    %53 = vector.extract_strided_slice %52 {offsets = [0, 0], sizes = [128, 8], strides = [1, 1]} : vector<160x8xbf16> to vector<128x8xbf16>
    %c0_37 = arith.constant 0 : index
    %c1_38 = arith.constant 1 : index
    %c0_39 = arith.constant 0 : index
    %c0_40 = arith.constant 0 : index
    %54 = vector.load %arg8[%c0_37, %c1_38, %c0_39, %c0_40] : memref<3x3x8x4xbf16, #tpu.memory_space<vmem>>, vector<1x1x8x4xbf16>
    %55 = vector.shape_cast %54 : vector<1x1x8x4xbf16> to vector<8x4xbf16>
    %cst_41 = arith.constant dense<0.000000e+00> : vector<128x4xf32>
    %56 = tpu.matmul %53, %55, %cst_41 {dimension_numbers = #tpu.dot_dimension_numbers<[1], [0], [0], [1], [0, 0, 1, 1], [], []>} : vector<128x8xbf16>, vector<8x4xbf16>, vector<128x4xf32> -> vector<128x4xf32>
    %57 = arith.addf %50, %56 : vector<128x4xf32>
    %58 = vector.extract_strided_slice %52 {offsets = [16, 0], sizes = [128, 8], strides = [1, 1]} : vector<160x8xbf16> to vector<128x8xbf16>
    %c1_42 = arith.constant 1 : index
    %c1_43 = arith.constant 1 : index
    %c0_44 = arith.constant 0 : index
    %c0_45 = arith.constant 0 : index
    %59 = vector.load %arg8[%c1_42, %c1_43, %c0_44, %c0_45] : memref<3x3x8x4xbf16, #tpu.memory_space<vmem>>, vector<1x1x8x4xbf16>
    %60 = vector.shape_cast %59 : vector<1x1x8x4xbf16> to vector<8x4xbf16>
    %cst_46 = arith.constant dense<0.000000e+00> : vector<128x4xf32>
    %61 = tpu.matmul %58, %60, %cst_46 {dimension_numbers = #tpu.dot_dimension_numbers<[1], [0], [0], [1], [0, 0, 1, 1], [], []>} : vector<128x8xbf16>, vector<8x4xbf16>, vector<128x4xf32> -> vector<128x4xf32>
    %62 = arith.addf %57, %61 : vector<128x4xf32>
    %63 = vector.extract_strided_slice %52 {offsets = [32, 0], sizes = [128, 8], strides = [1, 1]} : vector<160x8xbf16> to vector<128x8xbf16>
    %c2_47 = arith.constant 2 : index
    %c1_48 = arith.constant 1 : index
    %c0_49 = arith.constant 0 : index
    %c0_50 = arith.constant 0 : index
    %64 = vector.load %arg8[%c2_47, %c1_48, %c0_49, %c0_50] : memref<3x3x8x4xbf16, #tpu.memory_space<vmem>>, vector<1x1x8x4xbf16>
    %65 = vector.shape_cast %64 : vector<1x1x8x4xbf16> to vector<8x4xbf16>
    %cst_51 = arith.constant dense<0.000000e+00> : vector<128x4xf32>
    %66 = tpu.matmul %63, %65, %cst_51 {dimension_numbers = #tpu.dot_dimension_numbers<[1], [0], [0], [1], [0, 0, 1, 1], [], []>} : vector<128x8xbf16>, vector<8x4xbf16>, vector<128x4xf32> -> vector<128x4xf32>
    %67 = arith.addf %62, %66 : vector<128x4xf32>
    %68 = vector.extract_strided_slice %32 {offsets = [0, 2, 0], sizes = [10, 16, 8], strides = [1, 1, 1]} : vector<10x18x8xbf16> to vector<10x16x8xbf16>
    %69 = vector.shape_cast %68 : vector<10x16x8xbf16> to vector<160x8xbf16>
    %70 = vector.extract_strided_slice %69 {offsets = [0, 0], sizes = [128, 8], strides = [1, 1]} : vector<160x8xbf16> to vector<128x8xbf16>
    %c0_52 = arith.constant 0 : index
    %c2_53 = arith.constant 2 : index
    %c0_54 = arith.constant 0 : index
    %c0_55 = arith.constant 0 : index
    %71 = vector.load %arg8[%c0_52, %c2_53, %c0_54, %c0_55] : memref<3x3x8x4xbf16, #tpu.memory_space<vmem>>, vector<1x1x8x4xbf16>
    %72 = vector.shape_cast %71 : vector<1x1x8x4xbf16> to vector<8x4xbf16>
    %cst_56 = arith.constant dense<0.000000e+00> : vector<128x4xf32>
    %73 = tpu.matmul %70, %72, %cst_56 {dimension_numbers = #tpu.dot_dimension_numbers<[1], [0], [0], [1], [0, 0, 1, 1], [], []>} : vector<128x8xbf16>, vector<8x4xbf16>, vector<128x4xf32> -> vector<128x4xf32>
    %74 = arith.addf %67, %73 : vector<128x4xf32>
    %75 = vector.extract_strided_slice %69 {offsets = [16, 0], sizes = [128, 8], strides = [1, 1]} : vector<160x8xbf16> to vector<128x8xbf16>
    %c1_57 = arith.constant 1 : index
    %c2_58 = arith.constant 2 : index
    %c0_59 = arith.constant 0 : index
    %c0_60 = arith.constant 0 : index
    %76 = vector.load %arg8[%c1_57, %c2_58, %c0_59, %c0_60] : memref<3x3x8x4xbf16, #tpu.memory_space<vmem>>, vector<1x1x8x4xbf16>
    %77 = vector.shape_cast %76 : vector<1x1x8x4xbf16> to vector<8x4xbf16>
    %cst_61 = arith.constant dense<0.000000e+00> : vector<128x4xf32>
    %78 = tpu.matmul %75, %77, %cst_61 {dimension_numbers = #tpu.dot_dimension_numbers<[1], [0], [0], [1], [0, 0, 1, 1], [], []>} : vector<128x8xbf16>, vector<8x4xbf16>, vector<128x4xf32> -> vector<128x4xf32>
    %79 = arith.addf %74, %78 : vector<128x4xf32>
    %80 = vector.extract_strided_slice %69 {offsets = [32, 0], sizes = [128, 8], strides = [1, 1]} : vector<160x8xbf16> to vector<128x8xbf16>
    %c2_62 = arith.constant 2 : index
    %c2_63 = arith.constant 2 : index
    %c0_64 = arith.constant 0 : index
    %c0_65 = arith.constant 0 : index
    %81 = vector.load %arg8[%c2_62, %c2_63, %c0_64, %c0_65] : memref<3x3x8x4xbf16, #tpu.memory_space<vmem>>, vector<1x1x8x4xbf16>
    %82 = vector.shape_cast %81 : vector<1x1x8x4xbf16> to vector<8x4xbf16>
    %cst_66 = arith.constant dense<0.000000e+00> : vector<128x4xf32>
    %83 = tpu.matmul %80, %82, %cst_66 {dimension_numbers = #tpu.dot_dimension_numbers<[1], [0], [0], [1], [0, 0, 1, 1], [], []>} : vector<128x8xbf16>, vector<8x4xbf16>, vector<128x4xf32> -> vector<128x4xf32>
    %84 = arith.addf %79, %83 : vector<128x4xf32>
    %85 = vector.shape_cast %84 : vector<128x4xf32> to vector<8x16x4xf32>
    %86 = arith.truncf %85 : vector<8x16x4xf32> to vector<8x16x4xbf16>
    %c0_67 = arith.constant 0 : index
    %c0_68 = arith.constant 0 : index
    %c0_69 = arith.constant 0 : index
    %c0_70 = arith.constant 0 : index
    %87 = vector.load %arg9[%c0_67, %c0_68, %c0_69, %c0_70] : memref<1x8x16x4xbf16, #tpu.memory_space<vmem>>, vector<1x8x16x4xbf16>
    %88 = vector.shape_cast %87 : vector<1x8x16x4xbf16> to vector<8x16x4xbf16>
    %89 = vector.shape_cast %86 : vector<8x16x4xbf16> to vector<1x8x16x4xbf16>
    tpu.vector_store %arg9[%c0_67, %c0_68, %c0_69, %c0_70], %89 {strides = array<i32>} : memref<1x8x16x4xbf16, #tpu.memory_space<vmem>>, vector<1x8x16x4xbf16>,
    %cst_71 = arith.constant dense<0.000000e+00> : vector<4xf32>
    %90 = vector.multi_reduction <add>, %84, %cst_71 [0] : vector<128x4xf32> to vector<4xf32>
    %91 = vector.shape_cast %90 : vector<4xf32> to vector<1x4xf32>
    %92 = arith.mulf %84, %84 : vector<128x4xf32>
    %cst_72 = arith.constant dense<0.000000e+00> : vector<4xf32>
    %93 = vector.multi_reduction <add>, %92, %cst_72 [0] : vector<128x4xf32> to vector<4xf32>
    %94 = vector.shape_cast %93 : vector<4xf32> to vector<1x4xf32>
    %95 = tpu.iota {dimensions = array<i32: 0>} : vector<8x4xi32>
    %c0_i32_73 = arith.constant 0 : i32
    %96 = vector.broadcast %c0_i32_73 : i32 to vector<8x4xi32>
    %97 = arith.cmpi eq, %95, %96 : vector<8x4xi32>
    %c1_i32_74 = arith.constant 1 : i32
    %98 = vector.broadcast %c1_i32_74 : i32 to vector<8x4xi32>
    %99 = arith.cmpi eq, %95, %98 : vector<8x4xi32>
    %cst_75 = arith.constant 0.000000e+00 : f32
    %100 = vector.shape_cast %94 : vector<1x4xf32> to vector<1x4xf32>
    %101 = vector.broadcast %100 : vector<1x4xf32> to vector<8x4xf32>
    %102 = vector.broadcast %cst_75 : f32 to vector<8x4xf32>
    %103 = arith.select %99, %101, %102 : vector<8x4xi1>, vector<8x4xf32>
    %104 = vector.shape_cast %91 : vector<1x4xf32> to vector<1x4xf32>
    %105 = vector.broadcast %104 : vector<1x4xf32> to vector<8x4xf32>
    %106 = arith.select %97, %105, %103 : vector<8x4xi1>, vector<8x4xf32>
    %c0_76 = arith.constant 0 : index
    %c0_77 = arith.constant 0 : index
    %c0_78 = arith.constant 0 : index
    %c0_79 = arith.constant 0 : index
    %107 = vector.load %arg10[%c0_76, %c0_77, %c0_78, %c0_79] : memref<1x1x8x4xf32, #tpu.memory_space<vmem>>, vector<1x1x8x4xf32>
    %108 = vector.shape_cast %107 : vector<1x1x8x4xf32> to vector<8x4xf32>
    %109 = vector.shape_cast %106 : vector<8x4xf32> to vector<1x1x8x4xf32>
    tpu.vector_store %arg10[%c0_76, %c0_77, %c0_78, %c0_79], %109 {strides = array<i32>} : memref<1x1x8x4xf32, #tpu.memory_space<vmem>>, vector<1x1x8x4xf32>,
    return
  }
  func.func @transform_0(%arg0: i32, %arg1: i32) -> (i32, i32, i32, i32) {
    %c0_i32 = arith.constant 0 : i32
    %c0_i32_0 = arith.constant 0 : i32
    %c0_i32_1 = arith.constant 0 : i32
    return %arg0, %arg1, %c0_i32, %c0_i32_0 : i32, i32, i32, i32
  }
  func.func @transform_1(%arg0: i32, %arg1: i32) -> (i32, i32, i32, i32) {
    %c8_i32 = arith.constant 8 : i32
    %0 = arith.muli %arg1, %c8_i32 : i32
    %c1_i32 = arith.constant 1 : i32
    %1 = arith.subi %0, %c1_i32 : i32
    %c0_i32 = arith.constant 0 : i32
    %2 = arith.maxsi %1, %c0_i32 : i32
    %c0_i32_0 = arith.constant 0 : i32
    %c0_i32_1 = arith.constant 0 : i32
    %c0_i32_2 = arith.constant 0 : i32
    return %arg0, %2, %c0_i32_0, %c0_i32_1 : i32, i32, i32, i32
  }
  func.func @transform_2(%arg0: i32, %arg1: i32) -> (i32, i32, i32, i32) {
    %c8_i32 = arith.constant 8 : i32
    %0 = arith.muli %arg1, %c8_i32 : i32
    %c8_i32_0 = arith.constant 8 : i32
    %1 = arith.addi %0, %c8_i32_0 : i32
    %c15_i32 = arith.constant 15 : i32
    %2 = arith.minsi %1, %c15_i32 : i32
    %c0_i32 = arith.constant 0 : i32
    %c0_i32_1 = arith.constant 0 : i32
    %c0_i32_2 = arith.constant 0 : i32
    return %arg0, %2, %c0_i32, %c0_i32_1 : i32, i32, i32, i32
  }
  func.func @transform_3(%arg0: i32, %arg1: i32) -> (i32, i32, i32, i32) {
    %c0_i32 = arith.constant 0 : i32
    %c0_i32_0 = arith.constant 0 : i32
    %c0_i32_1 = arith.constant 0 : i32
    return %arg0, %arg1, %c0_i32, %c0_i32_0 : i32, i32, i32, i32
  }
  func.func @transform_4(%arg0: i32, %arg1: i32) -> (i32, i32, i32, i32) {
    %c8_i32 = arith.constant 8 : i32
    %0 = arith.muli %arg1, %c8_i32 : i32
    %c1_i32 = arith.constant 1 : i32
    %1 = arith.subi %0, %c1_i32 : i32
    %c0_i32 = arith.constant 0 : i32
    %2 = arith.maxsi %1, %c0_i32 : i32
    %c0_i32_0 = arith.constant 0 : i32
    %c0_i32_1 = arith.constant 0 : i32
    %c0_i32_2 = arith.constant 0 : i32
    return %arg0, %2, %c0_i32_0, %c0_i32_1 : i32, i32, i32, i32
  }
  func.func @transform_5(%arg0: i32, %arg1: i32) -> (i32, i32, i32, i32) {
    %c8_i32 = arith.constant 8 : i32
    %0 = arith.muli %arg1, %c8_i32 : i32
    %c8_i32_0 = arith.constant 8 : i32
    %1 = arith.addi %0, %c8_i32_0 : i32
    %c15_i32 = arith.constant 15 : i32
    %2 = arith.minsi %1, %c15_i32 : i32
    %c0_i32 = arith.constant 0 : i32
    %c0_i32_1 = arith.constant 0 : i32
    %c0_i32_2 = arith.constant 0 : i32
    return %arg0, %2, %c0_i32, %c0_i32_1 : i32, i32, i32, i32
  }
  func.func @transform_6(%arg0: i32, %arg1: i32) -> (i32, i32, i32, i32) {
    %c0_i32 = arith.constant 0 : i32
    %c0_i32_0 = arith.constant 0 : i32
    %c0_i32_1 = arith.constant 0 : i32
    %c0_i32_2 = arith.constant 0 : i32
    %c0_i32_3 = arith.constant 0 : i32
    return %c0_i32, %c0_i32_0, %c0_i32_1, %c0_i32_2 : i32, i32, i32, i32
  }
  func.func @transform_7(%arg0: i32, %arg1: i32) -> (i32, i32, i32, i32) {
    %c0_i32 = arith.constant 0 : i32
    %c0_i32_0 = arith.constant 0 : i32
    %c0_i32_1 = arith.constant 0 : i32
    return %arg0, %arg1, %c0_i32, %c0_i32_0 : i32, i32, i32, i32
  }
  func.func @transform_8(%arg0: i32, %arg1: i32) -> (i32, i32, i32, i32) {
    %c0_i32 = arith.constant 0 : i32
    %c0_i32_0 = arith.constant 0 : i32
    %c0_i32_1 = arith.constant 0 : i32
    return %arg0, %arg1, %c0_i32, %c0_i32_0 : i32, i32, i32, i32
  }
}

module attributes {stable_mosaic.version = 11 : i64} {
  func.func @_bn_relu_kernel(%arg0: i32, %arg1: memref<512x4xbf16, #tpu.memory_space<vmem>>, %arg2: memref<1x4xf32, #tpu.memory_space<vmem>>, %arg3: memref<1x4xf32, #tpu.memory_space<vmem>>, %arg4: memref<512x4xf32, #tpu.memory_space<vmem>>) attributes {dimension_semantics = [#tpu.dimension_semantics<parallel>], iteration_bounds = array<i64: 1>, scalar_prefetch = 0 : i64, scratch_operands = 0 : i64, tpu.core_type = #tpu.core_type<tc>, window_params = [{transform_indices = @transform_0, window_bounds = array<i64: 512, 4>}, {pipeline_mode = #tpu.pipeline_mode<synchronous>, transform_indices = @transform_1, window_bounds = array<i64: 1, 4>}, {pipeline_mode = #tpu.pipeline_mode<synchronous>, transform_indices = @transform_2, window_bounds = array<i64: 1, 4>}, {transform_indices = @transform_3, window_bounds = array<i64: 512, 4>}]} {
    %c0 = arith.constant 0 : index
    %c0_0 = arith.constant 0 : index
    %0 = vector.load %arg1[%c0, %c0_0] : memref<512x4xbf16, #tpu.memory_space<vmem>>, vector<512x4xbf16>
    %1 = arith.extf %0 : vector<512x4xbf16> to vector<512x4xf32>
    %c0_1 = arith.constant 0 : index
    %c0_2 = arith.constant 0 : index
    %2 = vector.load %arg2[%c0_1, %c0_2] : memref<1x4xf32, #tpu.memory_space<vmem>>, vector<1x4xf32>
    %3 = vector.broadcast %2 : vector<1x4xf32> to vector<512x4xf32>
    %4 = arith.mulf %1, %3 : vector<512x4xf32>
    %c0_3 = arith.constant 0 : index
    %c0_4 = arith.constant 0 : index
    %5 = vector.load %arg3[%c0_3, %c0_4] : memref<1x4xf32, #tpu.memory_space<vmem>>, vector<1x4xf32>
    %6 = vector.broadcast %5 : vector<1x4xf32> to vector<512x4xf32>
    %7 = arith.addf %4, %6 : vector<512x4xf32>
    %cst = arith.constant 0.000000e+00 : f32
    %8 = vector.broadcast %cst : f32 to vector<512x4xf32>
    %9 = arith.maximumf %7, %8 : vector<512x4xf32>
    %c0_5 = arith.constant 0 : index
    %c0_6 = arith.constant 0 : index
    %10 = vector.load %arg4[%c0_5, %c0_6] : memref<512x4xf32, #tpu.memory_space<vmem>>, vector<512x4xf32>
    tpu.vector_store %arg4[%c0_5, %c0_6], %9 {strides = array<i32>} : memref<512x4xf32, #tpu.memory_space<vmem>>, vector<512x4xf32>,
    return
  }
  func.func @transform_0(%arg0: i32) -> (i32, i32) {
    %c0_i32 = arith.constant 0 : i32
    %c0_i32_0 = arith.constant 0 : i32
    return %arg0, %c0_i32 : i32, i32
  }
  func.func @transform_1(%arg0: i32) -> (i32, i32) {
    %c0_i32 = arith.constant 0 : i32
    %c0_i32_0 = arith.constant 0 : i32
    %c0_i32_1 = arith.constant 0 : i32
    return %c0_i32, %c0_i32_0 : i32, i32
  }
  func.func @transform_2(%arg0: i32) -> (i32, i32) {
    %c0_i32 = arith.constant 0 : i32
    %c0_i32_0 = arith.constant 0 : i32
    %c0_i32_1 = arith.constant 0 : i32
    return %c0_i32, %c0_i32_0 : i32, i32
  }
  func.func @transform_3(%arg0: i32) -> (i32, i32) {
    %c0_i32 = arith.constant 0 : i32
    %c0_i32_0 = arith.constant 0 : i32
    return %arg0, %c0_i32 : i32, i32
  }
}

module attributes {stable_mosaic.version = 11 : i64} {
  func.func @_conv3x3_kernel(%arg0: i32, %arg1: i32, %arg2: memref<1x8x16x4xbf16, #tpu.memory_space<vmem>>, %arg3: memref<1x1x16x4xbf16, #tpu.memory_space<vmem>>, %arg4: memref<1x1x16x4xbf16, #tpu.memory_space<vmem>>, %arg5: memref<3x3x4x4xbf16, #tpu.memory_space<vmem>>, %arg6: memref<1x4xf32, #tpu.memory_space<vmem>>, %arg7: memref<1x4xf32, #tpu.memory_space<vmem>>, %arg8: memref<1x8x16x4xbf16, #tpu.memory_space<vmem>>, %arg9: memref<1x1x8x4xf32, #tpu.memory_space<vmem>>) attributes {dimension_semantics = [#tpu.dimension_semantics<parallel>, #tpu.dimension_semantics<parallel>], iteration_bounds = array<i64: 2, 2>, scalar_prefetch = 0 : i64, scratch_operands = 0 : i64, tpu.core_type = #tpu.core_type<tc>, window_params = [{transform_indices = @transform_0, window_bounds = array<i64: 1, 8, 16, 4>}, {transform_indices = @transform_1, window_bounds = array<i64: 1, 1, 16, 4>}, {transform_indices = @transform_2, window_bounds = array<i64: 1, 1, 16, 4>}, {pipeline_mode = #tpu.pipeline_mode<synchronous>, transform_indices = @transform_3, window_bounds = array<i64: 3, 3, 4, 4>}, {pipeline_mode = #tpu.pipeline_mode<synchronous>, transform_indices = @transform_4, window_bounds = array<i64: 1, 4>}, {pipeline_mode = #tpu.pipeline_mode<synchronous>, transform_indices = @transform_5, window_bounds = array<i64: 1, 4>}, {transform_indices = @transform_6, window_bounds = array<i64: 1, 8, 16, 4>}, {transform_indices = @transform_7, window_bounds = array<i64: 1, 1, 8, 4>}]} {
    %c0_i32 = arith.constant 0 : i32
    %0 = arith.cmpi sgt, %arg1, %c0_i32 : i32
    %1 = arith.extui %0 : i1 to i32
    %2 = arith.sitofp %1 : i32 to f32
    %3 = arith.truncf %2 : f32 to bf16
    %c1_i32 = arith.constant 1 : i32
    %4 = arith.cmpi slt, %arg1, %c1_i32 : i32
    %5 = arith.extui %4 : i1 to i32
    %6 = arith.sitofp %5 : i32 to f32
    %7 = arith.truncf %6 : f32 to bf16
    %c0 = arith.constant 0 : index
    %c0_0 = arith.constant 0 : index
    %c0_1 = arith.constant 0 : index
    %c0_2 = arith.constant 0 : index
    %8 = vector.load %arg2[%c0, %c0_0, %c0_1, %c0_2] : memref<1x8x16x4xbf16, #tpu.memory_space<vmem>>, vector<1x8x16x4xbf16>
    %9 = vector.shape_cast %8 : vector<1x8x16x4xbf16> to vector<8x16x4xbf16>
    %10 = arith.extf %9 : vector<8x16x4xbf16> to vector<8x16x4xf32>
    %c0_3 = arith.constant 0 : index
    %c0_4 = arith.constant 0 : index
    %11 = vector.load %arg6[%c0_3, %c0_4] : memref<1x4xf32, #tpu.memory_space<vmem>>, vector<1x4xf32>
    %12 = vector.shape_cast %11 : vector<1x4xf32> to vector<4xf32>
    %13 = vector.shape_cast %12 : vector<4xf32> to vector<1x1x4xf32>
    %14 = vector.broadcast %13 : vector<1x1x4xf32> to vector<8x16x4xf32>
    %15 = arith.mulf %10, %14 : vector<8x16x4xf32>
    %c0_5 = arith.constant 0 : index
    %c0_6 = arith.constant 0 : index
    %16 = vector.load %arg7[%c0_5, %c0_6] : memref<1x4xf32, #tpu.memory_space<vmem>>, vector<1x4xf32>
    %17 = vector.shape_cast %16 : vector<1x4xf32> to vector<4xf32>
    %18 = vector.shape_cast %17 : vector<4xf32> to vector<1x1x4xf32>
    %19 = vector.broadcast %18 : vector<1x1x4xf32> to vector<8x16x4xf32>
    %20 = arith.addf %15, %19 : vector<8x16x4xf32>
    %cst = arith.constant 0.000000e+00 : f32
    %21 = vector.broadcast %cst : f32 to vector<8x16x4xf32>
    %22 = arith.maximumf %20, %21 : vector<8x16x4xf32>
    %23 = arith.truncf %22 : vector<8x16x4xf32> to vector<8x16x4xbf16>
    %c0_7 = arith.constant 0 : index
    %c0_8 = arith.constant 0 : index
    %c0_9 = arith.constant 0 : index
    %c0_10 = arith.constant 0 : index
    %24 = vector.load %arg3[%c0_7, %c0_8, %c0_9, %c0_10] : memref<1x1x16x4xbf16, #tpu.memory_space<vmem>>, vector<1x1x16x4xbf16>
    %25 = vector.shape_cast %24 : vector<1x1x16x4xbf16> to vector<1x16x4xbf16>
    %26 = arith.extf %25 : vector<1x16x4xbf16> to vector<1x16x4xf32>
    %c0_11 = arith.constant 0 : index
    %c0_12 = arith.constant 0 : index
    %27 = vector.load %arg6[%c0_11, %c0_12] : memref<1x4xf32, #tpu.memory_space<vmem>>, vector<1x4xf32>
    %28 = vector.shape_cast %27 : vector<1x4xf32> to vector<4xf32>
    %29 = vector.shape_cast %28 : vector<4xf32> to vector<1x1x4xf32>
    %30 = vector.broadcast %29 : vector<1x1x4xf32> to vector<1x16x4xf32>
    %31 = arith.mulf %26, %30 : vector<1x16x4xf32>
    %c0_13 = arith.constant 0 : index
    %c0_14 = arith.constant 0 : index
    %32 = vector.load %arg7[%c0_13, %c0_14] : memref<1x4xf32, #tpu.memory_space<vmem>>, vector<1x4xf32>
    %33 = vector.shape_cast %32 : vector<1x4xf32> to vector<4xf32>
    %34 = vector.shape_cast %33 : vector<4xf32> to vector<1x1x4xf32>
    %35 = vector.broadcast %34 : vector<1x1x4xf32> to vector<1x16x4xf32>
    %36 = arith.addf %31, %35 : vector<1x16x4xf32>
    %cst_15 = arith.constant 0.000000e+00 : f32
    %37 = vector.broadcast %cst_15 : f32 to vector<1x16x4xf32>
    %38 = arith.maximumf %36, %37 : vector<1x16x4xf32>
    %39 = arith.truncf %38 : vector<1x16x4xf32> to vector<1x16x4xbf16>
    %40 = vector.broadcast %3 : bf16 to vector<1x16x4xbf16>
    %41 = arith.mulf %39, %40 : vector<1x16x4xbf16>
    %c0_16 = arith.constant 0 : index
    %c0_17 = arith.constant 0 : index
    %c0_18 = arith.constant 0 : index
    %c0_19 = arith.constant 0 : index
    %42 = vector.load %arg4[%c0_16, %c0_17, %c0_18, %c0_19] : memref<1x1x16x4xbf16, #tpu.memory_space<vmem>>, vector<1x1x16x4xbf16>
    %43 = vector.shape_cast %42 : vector<1x1x16x4xbf16> to vector<1x16x4xbf16>
    %44 = arith.extf %43 : vector<1x16x4xbf16> to vector<1x16x4xf32>
    %c0_20 = arith.constant 0 : index
    %c0_21 = arith.constant 0 : index
    %45 = vector.load %arg6[%c0_20, %c0_21] : memref<1x4xf32, #tpu.memory_space<vmem>>, vector<1x4xf32>
    %46 = vector.shape_cast %45 : vector<1x4xf32> to vector<4xf32>
    %47 = vector.shape_cast %46 : vector<4xf32> to vector<1x1x4xf32>
    %48 = vector.broadcast %47 : vector<1x1x4xf32> to vector<1x16x4xf32>
    %49 = arith.mulf %44, %48 : vector<1x16x4xf32>
    %c0_22 = arith.constant 0 : index
    %c0_23 = arith.constant 0 : index
    %50 = vector.load %arg7[%c0_22, %c0_23] : memref<1x4xf32, #tpu.memory_space<vmem>>, vector<1x4xf32>
    %51 = vector.shape_cast %50 : vector<1x4xf32> to vector<4xf32>
    %52 = vector.shape_cast %51 : vector<4xf32> to vector<1x1x4xf32>
    %53 = vector.broadcast %52 : vector<1x1x4xf32> to vector<1x16x4xf32>
    %54 = arith.addf %49, %53 : vector<1x16x4xf32>
    %cst_24 = arith.constant 0.000000e+00 : f32
    %55 = vector.broadcast %cst_24 : f32 to vector<1x16x4xf32>
    %56 = arith.maximumf %54, %55 : vector<1x16x4xf32>
    %57 = arith.truncf %56 : vector<1x16x4xf32> to vector<1x16x4xbf16>
    %58 = vector.broadcast %7 : bf16 to vector<1x16x4xbf16>
    %59 = arith.mulf %57, %58 : vector<1x16x4xbf16>
    %60 = tpu.concatenate %41, %23, %59 in 0 : vector<1x16x4xbf16>, vector<8x16x4xbf16>, vector<1x16x4xbf16> -> vector<10x16x4xbf16>
    %cst_25 = arith.constant 0.000000e+00 : bf16
    %61 = vector.broadcast %cst_25 : bf16 to vector<10x1x4xbf16>
    %62 = tpu.concatenate %61, %60, %61 in 1 : vector<10x1x4xbf16>, vector<10x16x4xbf16>, vector<10x1x4xbf16> -> vector<10x18x4xbf16>
    %cst_26 = arith.constant 0.000000e+00 : f32
    %63 = vector.broadcast %cst_26 : f32 to vector<128x4xf32>
    %64 = vector.extract_strided_slice %62 {offsets = [0, 0, 0], sizes = [10, 16, 4], strides = [1, 1, 1]} : vector<10x18x4xbf16> to vector<10x16x4xbf16>
    %65 = vector.shape_cast %64 : vector<10x16x4xbf16> to vector<160x4xbf16>
    %66 = vector.extract_strided_slice %65 {offsets = [0, 0], sizes = [128, 4], strides = [1, 1]} : vector<160x4xbf16> to vector<128x4xbf16>
    %c0_27 = arith.constant 0 : index
    %c0_28 = arith.constant 0 : index
    %c0_29 = arith.constant 0 : index
    %c0_30 = arith.constant 0 : index
    %67 = vector.load %arg5[%c0_27, %c0_28, %c0_29, %c0_30] : memref<3x3x4x4xbf16, #tpu.memory_space<vmem>>, vector<1x1x4x4xbf16>
    %68 = vector.shape_cast %67 : vector<1x1x4x4xbf16> to vector<4x4xbf16>
    %cst_31 = arith.constant dense<0.000000e+00> : vector<128x4xf32>
    %69 = tpu.matmul %66, %68, %cst_31 {dimension_numbers = #tpu.dot_dimension_numbers<[1], [0], [0], [1], [0, 0, 1, 1], [], []>} : vector<128x4xbf16>, vector<4x4xbf16>, vector<128x4xf32> -> vector<128x4xf32>
    %70 = arith.addf %63, %69 : vector<128x4xf32>
    %71 = vector.extract_strided_slice %65 {offsets = [16, 0], sizes = [128, 4], strides = [1, 1]} : vector<160x4xbf16> to vector<128x4xbf16>
    %c1 = arith.constant 1 : index
    %c0_32 = arith.constant 0 : index
    %c0_33 = arith.constant 0 : index
    %c0_34 = arith.constant 0 : index
    %72 = vector.load %arg5[%c1, %c0_32, %c0_33, %c0_34] : memref<3x3x4x4xbf16, #tpu.memory_space<vmem>>, vector<1x1x4x4xbf16>
    %73 = vector.shape_cast %72 : vector<1x1x4x4xbf16> to vector<4x4xbf16>
    %cst_35 = arith.constant dense<0.000000e+00> : vector<128x4xf32>
    %74 = tpu.matmul %71, %73, %cst_35 {dimension_numbers = #tpu.dot_dimension_numbers<[1], [0], [0], [1], [0, 0, 1, 1], [], []>} : vector<128x4xbf16>, vector<4x4xbf16>, vector<128x4xf32> -> vector<128x4xf32>
    %75 = arith.addf %70, %74 : vector<128x4xf32>
    %76 = vector.extract_strided_slice %65 {offsets = [32, 0], sizes = [128, 4], strides = [1, 1]} : vector<160x4xbf16> to vector<128x4xbf16>
    %c2 = arith.constant 2 : index
    %c0_36 = arith.constant 0 : index
    %c0_37 = arith.constant 0 : index
    %c0_38 = arith.constant 0 : index
    %77 = vector.load %arg5[%c2, %c0_36, %c0_37, %c0_38] : memref<3x3x4x4xbf16, #tpu.memory_space<vmem>>, vector<1x1x4x4xbf16>
    %78 = vector.shape_cast %77 : vector<1x1x4x4xbf16> to vector<4x4xbf16>
    %cst_39 = arith.constant dense<0.000000e+00> : vector<128x4xf32>
    %79 = tpu.matmul %76, %78, %cst_39 {dimension_numbers = #tpu.dot_dimension_numbers<[1], [0], [0], [1], [0, 0, 1, 1], [], []>} : vector<128x4xbf16>, vector<4x4xbf16>, vector<128x4xf32> -> vector<128x4xf32>
    %80 = arith.addf %75, %79 : vector<128x4xf32>
    %81 = vector.extract_strided_slice %62 {offsets = [0, 1, 0], sizes = [10, 16, 4], strides = [1, 1, 1]} : vector<10x18x4xbf16> to vector<10x16x4xbf16>
    %82 = vector.shape_cast %81 : vector<10x16x4xbf16> to vector<160x4xbf16>
    %83 = vector.extract_strided_slice %82 {offsets = [0, 0], sizes = [128, 4], strides = [1, 1]} : vector<160x4xbf16> to vector<128x4xbf16>
    %c0_40 = arith.constant 0 : index
    %c1_41 = arith.constant 1 : index
    %c0_42 = arith.constant 0 : index
    %c0_43 = arith.constant 0 : index
    %84 = vector.load %arg5[%c0_40, %c1_41, %c0_42, %c0_43] : memref<3x3x4x4xbf16, #tpu.memory_space<vmem>>, vector<1x1x4x4xbf16>
    %85 = vector.shape_cast %84 : vector<1x1x4x4xbf16> to vector<4x4xbf16>
    %cst_44 = arith.constant dense<0.000000e+00> : vector<128x4xf32>
    %86 = tpu.matmul %83, %85, %cst_44 {dimension_numbers = #tpu.dot_dimension_numbers<[1], [0], [0], [1], [0, 0, 1, 1], [], []>} : vector<128x4xbf16>, vector<4x4xbf16>, vector<128x4xf32> -> vector<128x4xf32>
    %87 = arith.addf %80, %86 : vector<128x4xf32>
    %88 = vector.extract_strided_slice %82 {offsets = [16, 0], sizes = [128, 4], strides = [1, 1]} : vector<160x4xbf16> to vector<128x4xbf16>
    %c1_45 = arith.constant 1 : index
    %c1_46 = arith.constant 1 : index
    %c0_47 = arith.constant 0 : index
    %c0_48 = arith.constant 0 : index
    %89 = vector.load %arg5[%c1_45, %c1_46, %c0_47, %c0_48] : memref<3x3x4x4xbf16, #tpu.memory_space<vmem>>, vector<1x1x4x4xbf16>
    %90 = vector.shape_cast %89 : vector<1x1x4x4xbf16> to vector<4x4xbf16>
    %cst_49 = arith.constant dense<0.000000e+00> : vector<128x4xf32>
    %91 = tpu.matmul %88, %90, %cst_49 {dimension_numbers = #tpu.dot_dimension_numbers<[1], [0], [0], [1], [0, 0, 1, 1], [], []>} : vector<128x4xbf16>, vector<4x4xbf16>, vector<128x4xf32> -> vector<128x4xf32>
    %92 = arith.addf %87, %91 : vector<128x4xf32>
    %93 = vector.extract_strided_slice %82 {offsets = [32, 0], sizes = [128, 4], strides = [1, 1]} : vector<160x4xbf16> to vector<128x4xbf16>
    %c2_50 = arith.constant 2 : index
    %c1_51 = arith.constant 1 : index
    %c0_52 = arith.constant 0 : index
    %c0_53 = arith.constant 0 : index
    %94 = vector.load %arg5[%c2_50, %c1_51, %c0_52, %c0_53] : memref<3x3x4x4xbf16, #tpu.memory_space<vmem>>, vector<1x1x4x4xbf16>
    %95 = vector.shape_cast %94 : vector<1x1x4x4xbf16> to vector<4x4xbf16>
    %cst_54 = arith.constant dense<0.000000e+00> : vector<128x4xf32>
    %96 = tpu.matmul %93, %95, %cst_54 {dimension_numbers = #tpu.dot_dimension_numbers<[1], [0], [0], [1], [0, 0, 1, 1], [], []>} : vector<128x4xbf16>, vector<4x4xbf16>, vector<128x4xf32> -> vector<128x4xf32>
    %97 = arith.addf %92, %96 : vector<128x4xf32>
    %98 = vector.extract_strided_slice %62 {offsets = [0, 2, 0], sizes = [10, 16, 4], strides = [1, 1, 1]} : vector<10x18x4xbf16> to vector<10x16x4xbf16>
    %99 = vector.shape_cast %98 : vector<10x16x4xbf16> to vector<160x4xbf16>
    %100 = vector.extract_strided_slice %99 {offsets = [0, 0], sizes = [128, 4], strides = [1, 1]} : vector<160x4xbf16> to vector<128x4xbf16>
    %c0_55 = arith.constant 0 : index
    %c2_56 = arith.constant 2 : index
    %c0_57 = arith.constant 0 : index
    %c0_58 = arith.constant 0 : index
    %101 = vector.load %arg5[%c0_55, %c2_56, %c0_57, %c0_58] : memref<3x3x4x4xbf16, #tpu.memory_space<vmem>>, vector<1x1x4x4xbf16>
    %102 = vector.shape_cast %101 : vector<1x1x4x4xbf16> to vector<4x4xbf16>
    %cst_59 = arith.constant dense<0.000000e+00> : vector<128x4xf32>
    %103 = tpu.matmul %100, %102, %cst_59 {dimension_numbers = #tpu.dot_dimension_numbers<[1], [0], [0], [1], [0, 0, 1, 1], [], []>} : vector<128x4xbf16>, vector<4x4xbf16>, vector<128x4xf32> -> vector<128x4xf32>
    %104 = arith.addf %97, %103 : vector<128x4xf32>
    %105 = vector.extract_strided_slice %99 {offsets = [16, 0], sizes = [128, 4], strides = [1, 1]} : vector<160x4xbf16> to vector<128x4xbf16>
    %c1_60 = arith.constant 1 : index
    %c2_61 = arith.constant 2 : index
    %c0_62 = arith.constant 0 : index
    %c0_63 = arith.constant 0 : index
    %106 = vector.load %arg5[%c1_60, %c2_61, %c0_62, %c0_63] : memref<3x3x4x4xbf16, #tpu.memory_space<vmem>>, vector<1x1x4x4xbf16>
    %107 = vector.shape_cast %106 : vector<1x1x4x4xbf16> to vector<4x4xbf16>
    %cst_64 = arith.constant dense<0.000000e+00> : vector<128x4xf32>
    %108 = tpu.matmul %105, %107, %cst_64 {dimension_numbers = #tpu.dot_dimension_numbers<[1], [0], [0], [1], [0, 0, 1, 1], [], []>} : vector<128x4xbf16>, vector<4x4xbf16>, vector<128x4xf32> -> vector<128x4xf32>
    %109 = arith.addf %104, %108 : vector<128x4xf32>
    %110 = vector.extract_strided_slice %99 {offsets = [32, 0], sizes = [128, 4], strides = [1, 1]} : vector<160x4xbf16> to vector<128x4xbf16>
    %c2_65 = arith.constant 2 : index
    %c2_66 = arith.constant 2 : index
    %c0_67 = arith.constant 0 : index
    %c0_68 = arith.constant 0 : index
    %111 = vector.load %arg5[%c2_65, %c2_66, %c0_67, %c0_68] : memref<3x3x4x4xbf16, #tpu.memory_space<vmem>>, vector<1x1x4x4xbf16>
    %112 = vector.shape_cast %111 : vector<1x1x4x4xbf16> to vector<4x4xbf16>
    %cst_69 = arith.constant dense<0.000000e+00> : vector<128x4xf32>
    %113 = tpu.matmul %110, %112, %cst_69 {dimension_numbers = #tpu.dot_dimension_numbers<[1], [0], [0], [1], [0, 0, 1, 1], [], []>} : vector<128x4xbf16>, vector<4x4xbf16>, vector<128x4xf32> -> vector<128x4xf32>
    %114 = arith.addf %109, %113 : vector<128x4xf32>
    %115 = vector.shape_cast %114 : vector<128x4xf32> to vector<8x16x4xf32>
    %116 = arith.truncf %115 : vector<8x16x4xf32> to vector<8x16x4xbf16>
    %c0_70 = arith.constant 0 : index
    %c0_71 = arith.constant 0 : index
    %c0_72 = arith.constant 0 : index
    %c0_73 = arith.constant 0 : index
    %117 = vector.load %arg8[%c0_70, %c0_71, %c0_72, %c0_73] : memref<1x8x16x4xbf16, #tpu.memory_space<vmem>>, vector<1x8x16x4xbf16>
    %118 = vector.shape_cast %117 : vector<1x8x16x4xbf16> to vector<8x16x4xbf16>
    %119 = vector.shape_cast %116 : vector<8x16x4xbf16> to vector<1x8x16x4xbf16>
    tpu.vector_store %arg8[%c0_70, %c0_71, %c0_72, %c0_73], %119 {strides = array<i32>} : memref<1x8x16x4xbf16, #tpu.memory_space<vmem>>, vector<1x8x16x4xbf16>,
    %cst_74 = arith.constant dense<0.000000e+00> : vector<4xf32>
    %120 = vector.multi_reduction <add>, %114, %cst_74 [0] : vector<128x4xf32> to vector<4xf32>
    %121 = vector.shape_cast %120 : vector<4xf32> to vector<1x4xf32>
    %122 = arith.mulf %114, %114 : vector<128x4xf32>
    %cst_75 = arith.constant dense<0.000000e+00> : vector<4xf32>
    %123 = vector.multi_reduction <add>, %122, %cst_75 [0] : vector<128x4xf32> to vector<4xf32>
    %124 = vector.shape_cast %123 : vector<4xf32> to vector<1x4xf32>
    %125 = tpu.iota {dimensions = array<i32: 0>} : vector<8x4xi32>
    %c0_i32_76 = arith.constant 0 : i32
    %126 = vector.broadcast %c0_i32_76 : i32 to vector<8x4xi32>
    %127 = arith.cmpi eq, %125, %126 : vector<8x4xi32>
    %c1_i32_77 = arith.constant 1 : i32
    %128 = vector.broadcast %c1_i32_77 : i32 to vector<8x4xi32>
    %129 = arith.cmpi eq, %125, %128 : vector<8x4xi32>
    %cst_78 = arith.constant 0.000000e+00 : f32
    %130 = vector.shape_cast %124 : vector<1x4xf32> to vector<1x4xf32>
    %131 = vector.broadcast %130 : vector<1x4xf32> to vector<8x4xf32>
    %132 = vector.broadcast %cst_78 : f32 to vector<8x4xf32>
    %133 = arith.select %129, %131, %132 : vector<8x4xi1>, vector<8x4xf32>
    %134 = vector.shape_cast %121 : vector<1x4xf32> to vector<1x4xf32>
    %135 = vector.broadcast %134 : vector<1x4xf32> to vector<8x4xf32>
    %136 = arith.select %127, %135, %133 : vector<8x4xi1>, vector<8x4xf32>
    %c0_79 = arith.constant 0 : index
    %c0_80 = arith.constant 0 : index
    %c0_81 = arith.constant 0 : index
    %c0_82 = arith.constant 0 : index
    %137 = vector.load %arg9[%c0_79, %c0_80, %c0_81, %c0_82] : memref<1x1x8x4xf32, #tpu.memory_space<vmem>>, vector<1x1x8x4xf32>
    %138 = vector.shape_cast %137 : vector<1x1x8x4xf32> to vector<8x4xf32>
    %139 = vector.shape_cast %136 : vector<8x4xf32> to vector<1x1x8x4xf32>
    tpu.vector_store %arg9[%c0_79, %c0_80, %c0_81, %c0_82], %139 {strides = array<i32>} : memref<1x1x8x4xf32, #tpu.memory_space<vmem>>, vector<1x1x8x4xf32>,
    return
  }
  func.func @transform_0(%arg0: i32, %arg1: i32) -> (i32, i32, i32, i32) {
    %c0_i32 = arith.constant 0 : i32
    %c0_i32_0 = arith.constant 0 : i32
    %c0_i32_1 = arith.constant 0 : i32
    return %arg0, %arg1, %c0_i32, %c0_i32_0 : i32, i32, i32, i32
  }
  func.func @transform_1(%arg0: i32, %arg1: i32) -> (i32, i32, i32, i32) {
    %c8_i32 = arith.constant 8 : i32
    %0 = arith.muli %arg1, %c8_i32 : i32
    %c1_i32 = arith.constant 1 : i32
    %1 = arith.subi %0, %c1_i32 : i32
    %c0_i32 = arith.constant 0 : i32
    %2 = arith.maxsi %1, %c0_i32 : i32
    %c0_i32_0 = arith.constant 0 : i32
    %c0_i32_1 = arith.constant 0 : i32
    %c0_i32_2 = arith.constant 0 : i32
    return %arg0, %2, %c0_i32_0, %c0_i32_1 : i32, i32, i32, i32
  }
  func.func @transform_2(%arg0: i32, %arg1: i32) -> (i32, i32, i32, i32) {
    %c8_i32 = arith.constant 8 : i32
    %0 = arith.muli %arg1, %c8_i32 : i32
    %c8_i32_0 = arith.constant 8 : i32
    %1 = arith.addi %0, %c8_i32_0 : i32
    %c15_i32 = arith.constant 15 : i32
    %2 = arith.minsi %1, %c15_i32 : i32
    %c0_i32 = arith.constant 0 : i32
    %c0_i32_1 = arith.constant 0 : i32
    %c0_i32_2 = arith.constant 0 : i32
    return %arg0, %2, %c0_i32, %c0_i32_1 : i32, i32, i32, i32
  }
  func.func @transform_3(%arg0: i32, %arg1: i32) -> (i32, i32, i32, i32) {
    %c0_i32 = arith.constant 0 : i32
    %c0_i32_0 = arith.constant 0 : i32
    %c0_i32_1 = arith.constant 0 : i32
    %c0_i32_2 = arith.constant 0 : i32
    %c0_i32_3 = arith.constant 0 : i32
    return %c0_i32, %c0_i32_0, %c0_i32_1, %c0_i32_2 : i32, i32, i32, i32
  }
  func.func @transform_4(%arg0: i32, %arg1: i32) -> (i32, i32) {
    %c0_i32 = arith.constant 0 : i32
    %c0_i32_0 = arith.constant 0 : i32
    %c0_i32_1 = arith.constant 0 : i32
    return %c0_i32, %c0_i32_0 : i32, i32
  }
  func.func @transform_5(%arg0: i32, %arg1: i32) -> (i32, i32) {
    %c0_i32 = arith.constant 0 : i32
    %c0_i32_0 = arith.constant 0 : i32
    %c0_i32_1 = arith.constant 0 : i32
    return %c0_i32, %c0_i32_0 : i32, i32
  }
  func.func @transform_6(%arg0: i32, %arg1: i32) -> (i32, i32, i32, i32) {
    %c0_i32 = arith.constant 0 : i32
    %c0_i32_0 = arith.constant 0 : i32
    %c0_i32_1 = arith.constant 0 : i32
    return %arg0, %arg1, %c0_i32, %c0_i32_0 : i32, i32, i32, i32
  }
  func.func @transform_7(%arg0: i32, %arg1: i32) -> (i32, i32, i32, i32) {
    %c0_i32 = arith.constant 0 : i32
    %c0_i32_0 = arith.constant 0 : i32
    %c0_i32_1 = arith.constant 0 : i32
    return %arg0, %arg1, %c0_i32, %c0_i32_0 : i32, i32, i32, i32
  }
}

</mosaic_0001>

<llo_original>
// kernel: tile.8
$region0: #{tile.8}
  #allocation0 [shape = 's32[1]{0}', space=sflag, size = 0x4, scoped, tag = 'scoped memory for tile.8']
  %s0 = inlined_call_operand.vmem [shape: f32[4], index: 0, kind: input, shape index: {}]
  %s1 = inlined_call_operand.vmem [shape: f32[2,4], index: 1, kind: output, shape index: {}]
  // Predicated region
  $region2: #{tile.8} parent=0 // pred_check
    _
  $region3: #{tile.8} parent=0 // pred_check_branch
    %3 = sbr.rel (0) target = $region5
  $region4: #{tile.8} parent=0 // pred_region
    _
  $region5: #{tile.8} parent=0 // pred_fallthru
    _
  %v4 = vld [vmem:[%s0] ss:$0 sm:$0xff]
  %5 = vst [vmem:[%s1] sm:$0x3] %v4

// kernel: tile.9
$region0: #{tile.9}
  %s0 = inlined_call_operand.vmem [shape: f32[2,4], index: 0, kind: input, shape index: {}]
  %s1 = inlined_call_operand.vmem [shape: f32[1,8], index: 1, kind: output, shape index: {}]
  $region1: #{tile.9} parent=0
    #allocation0 [shape = 'u8[4096]{0}', space=vmem, size = 0x1000, scoped, tag = 'scoped mem for output reshape']
    #allocation1 [shape = 'u8[4096]{0}', space=vmem, size = 0x1000, scoped, tag = 'scoped mem for input reshape']
    %s3 = sshll.u32 1, 2
    %s4 = ssub.s32 %s3, 1
    %v5 = vld [vmem:[%s0] sm:%s4]
    %6 = vst [vmem:[#allocation1] sm:%s4] %v5
    %v7 = vld [vmem:[#allocation1] sm:$0x1]
    %vm8 = vcmask 31744
    %9 = vst.msk [vmem:[#allocation0] sm:$0x1] %vm8, %v7
    %s10 = scalar_lea.vmem [#allocation1], 1
    %v11 = vld [vmem:[%s10] sm:$0x1]
    %12 = vrot.lane.b32.xlu0 %v11, 4
    %v13 = vpop.permute.xlu0 %12
    %vm14 = vcmask 64544
    %15 = vst.msk [vmem:[#allocation0] sm:$0x1] %vm14, %v13
    %s17 = sshll.u32 1, 1
    %s18 = ssub.s32 %s17, 1
    %v20 = vld [vmem:[#allocation0] sm:%s18]
    %s21 = sshll.u32 1, 1
    %s22 = ssub.s32 %s21, 1
    %23 = vst [vmem:[%s1] sm:%s22] %v20

// kernel: up_block_forward.4
$region0: #{up_block_forward.4}
  #allocation0 [shape = 'u32[]', space=smem, size = 0x4, offset = 0x4, fixed_abs, tag = 'smem constant byte address 0x4 - core index']
  #allocation1 [shape = 'u32[144,128]{1,0:T(1,128)}', space=vmem, size = 0x12000, scoped, tag = 'internal scratch']
  %s0 = inlined_call_operand.vmem [shape: bf16[128,8], index: 0, kind: input, shape index: {}]
  %s1 = inlined_call_operand.vmem [shape: bf16[2,8,8], index: 1, kind: input, shape index: {}]
  %s2 = inlined_call_operand.vmem [shape: f32[1,8], index: 2, kind: input, shape index: {}]
  %s3 = inlined_call_operand.vmem [shape: bf16[16,2,8,8], index: 3, kind: output, shape index: {}]
  %s4 = sld [smem:[#allocation0]]
  $region22: #{up_block_forward.4} parent=0
    _
  %s6 = ssub.s32 1, %s4
  %s7 = scalar_select 0, %s6, %s4
  // Predicated region
  $region2: #{up_block_forward.4} parent=0 // pred_check
    _
  $region3: #{up_block_forward.4} parent=0 // pred_check_branch
    %9 = sbr.rel (0) target = $region5
  $region4: #{up_block_forward.4} parent=0 // pred_region
    _
  $region5: #{up_block_forward.4} parent=0 // pred_fallthru
    _
  // Predicated region
  $region6: #{up_block_forward.4} parent=0 // pred_check
    _
  $region7: #{up_block_forward.4} parent=0 // pred_check_branch
    %11 = sbr.rel (0) target = $region9
  $region8: #{up_block_forward.4} parent=0 // pred_region
    _
  $region9: #{up_block_forward.4} parent=0 // pred_fallthru
    _
  // Predicated region
  $region10: #{up_block_forward.4} parent=0 // pred_check
    _
  $region11: #{up_block_forward.4} parent=0 // pred_check_branch
    %13 = sbr.rel (0) target = $region13
  $region12: #{up_block_forward.4} parent=0 // pred_region
    _
  $region13: #{up_block_forward.4} parent=0 // pred_fallthru
    _
  %v15 = vld [vmem:[%s0] sm:$0xf]
  %v16 = vld [vmem:[%s0 + $0x4] sm:$0xf]
  %v17 = vld [vmem:[%s0 + $0x8] sm:$0xf]
  %v18 = vld [vmem:[%s0 + $0xc] sm:$0xf]
  %v19 = vld [vmem:[%s0 + $0x10] sm:$0xf]
  %v20 = vld [vmem:[%s0 + $0x14] sm:$0xf]
  %v21 = vld [vmem:[%s0 + $0x18] sm:$0xf]
  %v22 = vld [vmem:[%s0 + $0x1c] sm:$0xf]
  %v23 = vld [vmem:[%s0 + $0x20] sm:$0xf]
  %v24 = vld [vmem:[%s0 + $0x24] sm:$0xf]
  %v25 = vld [vmem:[%s0 + $0x28] sm:$0xf]
  %v26 = vld [vmem:[%s0 + $0x2c] sm:$0xf]
  %v27 = vld [vmem:[%s0 + $0x30] sm:$0xf]
  %v28 = vld [vmem:[%s0 + $0x34] sm:$0xf]
  %v29 = vld [vmem:[%s0 + $0x38] sm:$0xf]
  %v30 = vld [vmem:[%s0 + $0x3c] sm:$0xf]
  %v31 = vld [vmem:[%s2] sm:$0x1]
  %v32 = vld [vmem:[%s1] sm:$0xf]
  %v34 = vlaneseq
  %v35 = vshrl.u32 %v34, 7
  %v36 = vsub.s32 0, %v35
  %v37 = vrot.slane %v31, %v36
  %v55 = vunpack.c.l.b16 %v15
  %v56 = vunpack.c.l.b16 %v16
  %v57 = vunpack.c.l.b16 %v17
  %v58 = vunpack.c.l.b16 %v18
  %v59 = vunpack.c.l.b16 %v19
  %v60 = vunpack.c.l.b16 %v20
  %v61 = vunpack.c.l.b16 %v21
  %v62 = vunpack.c.l.b16 %v22
  %v63 = vunpack.c.l.b16 %v23
  %v64 = vunpack.c.l.b16 %v24
  %v65 = vunpack.c.l.b16 %v25
  %v66 = vunpack.c.l.b16 %v26
  %v67 = vunpack.c.l.b16 %v27
  %v68 = vunpack.c.l.b16 %v28
  %v69 = vunpack.c.l.b16 %v29
  %v70 = vunpack.c.l.b16 %v30
  %v71 = vpack.c.b16 %v56, %v55
  %v72 = vpack.c.b16 %v58, %v57
  %v73 = vpack.c.b16 %v60, %v59
  %v74 = vpack.c.b16 %v62, %v61
  %v75 = vpack.c.b16 %v64, %v63
  %v76 = vpack.c.b16 %v66, %v65
  %v77 = vpack.c.b16 %v68, %v67
  %v78 = vpack.c.b16 %v70, %v69
  %vm79 = vcmask 64512
  %v81 = vsel %vm79, %v71, 0
  %v84 = vsel %vm79, %v72, 0
  %v87 = vsel %vm79, %v73, 0
  %v90 = vsel %vm79, %v74, 0
  %v93 = vsel %vm79, %v75, 0
  %v96 = vsel %vm79, %v76, 0
  %v99 = vsel %vm79, %v77, 0
  %v102 = vsel %vm79, %v78, 0
  %vm104 = vcmask 1043456
  %v106 = vsel %vm104, %v32, 0
  %108 = vmatprep.subr.bf16.mxu0 0
  %109 = vmatpush1.bf16.msra.mxu0 0
  %110 = vmatprep.subr.bf16.mxu0 0
  %111 = vmatpush1.bf16.msra.mxu0 0
  %112 = vmatprep.subr.bf16.mxu0 0
  %113 = vmatpush1.bf16.msra.mxu0 0
  %114 = vmatprep.subr.bf16.mxu0 0
  %115 = vmatpush1.bf16.msra.mxu0 0
  %116 = vmatprep.subr.bf16.mxu0 0
  %117 = vmatpush1.bf16.msra.mxu0 0
  %118 = vmatprep.subr.bf16.mxu0 0
  %119 = vmatpush1.bf16.msra.mxu0 0
  %120 = vmatprep.subr.bf16.mxu0 0
  %121 = vmatpush1.bf16.msra.mxu0 0
  %122 = vmatprep.subr.bf16.mxu0 0
  %123 = vmatpush1.bf16.msra.mxu0 %v106
  %124 = vmatprep.subr.bf16.mxu0 0
  %125 = vmatpush2.bf16.msra.mxu0 0
  %126 = vmatprep.subr.bf16.mxu0 0
  %127 = vmatpush2.bf16.msra.mxu0 0
  %128 = vmatprep.subr.bf16.mxu0 0
  %129 = vmatpush2.bf16.msra.mxu0 0
  %130 = vmatprep.subr.bf16.mxu0 0
  %131 = vmatpush2.bf16.msra.mxu0 0
  %132 = vmatprep.subr.bf16.mxu0 0
  %133 = vmatpush2.bf16.msra.mxu0 0
  %134 = vmatprep.subr.bf16.mxu0 0
  %135 = vmatpush2.bf16.msra.mxu0 0
  %136 = vmatprep.subr.bf16.mxu0 0
  %137 = vmatpush2.bf16.msra.mxu0 0
  %138 = vmatprep.subr.bf16.mxu0 0
  %139 = vmatpush2.bf16.msra.mxu0 0
  %140 = vmatprep.mubr.bf16.mxu0 0
  %141 = vmatmul.mubr.bf16.gmra.mxu0 %v81
  %v142 = vpop.f32.mrf.mxu0
  %v143 = vadd.f32 %v37, %v142
  %v144 = vpop.f32.mrf.mxu0
  %v145 = vpop.f32.mrf.mxu0
  %v146 = vadd.f32 %v37, %v145
  %v147 = vpop.f32.mrf.mxu0
  %148 = vmatprep.mubr.bf16.mxu0 0
  %149 = vmatmul.mubr.bf16.gmra.mxu0 %v84
  %v150 = vpop.f32.mrf.mxu0
  %v151 = vadd.f32 %v37, %v150
  %v152 = vpop.f32.mrf.mxu0
  %v153 = vpop.f32.mrf.mxu0
  %v154 = vadd.f32 %v37, %v153
  %v155 = vpop.f32.mrf.mxu0
  %156 = vmatprep.mubr.bf16.mxu0 0
  %157 = vmatmul.mubr.bf16.gmra.mxu0 %v87
  %v158 = vpop.f32.mrf.mxu0
  %v159 = vadd.f32 %v37, %v158
  %v160 = vpop.f32.mrf.mxu0
  %v161 = vpop.f32.mrf.mxu0
  %v162 = vadd.f32 %v37, %v161
  %v163 = vpop.f32.mrf.mxu0
  %164 = vmatprep.mubr.bf16.mxu0 0
  %165 = vmatmul.mubr.bf16.gmra.mxu0 %v90
  %v166 = vpop.f32.mrf.mxu0
  %v167 = vadd.f32 %v37, %v166
  %v168 = vpop.f32.mrf.mxu0
  %v169 = vpop.f32.mrf.mxu0
  %v170 = vadd.f32 %v37, %v169
  %v171 = vpop.f32.mrf.mxu0
  %172 = vmatprep.mubr.bf16.mxu0 0
  %173 = vmatmul.mubr.bf16.gmra.mxu0 %v93
  %v174 = vpop.f32.mrf.mxu0
  %v175 = vadd.f32 %v37, %v174
  %v176 = vpop.f32.mrf.mxu0
  %v177 = vpop.f32.mrf.mxu0
  %v178 = vadd.f32 %v37, %v177
  %v179 = vpop.f32.mrf.mxu0
  %180 = vmatprep.mubr.bf16.mxu0 0
  %181 = vmatmul.mubr.bf16.gmra.mxu0 %v96
  %v182 = vpop.f32.mrf.mxu0
  %v183 = vadd.f32 %v37, %v182
  %v184 = vpop.f32.mrf.mxu0
  %v185 = vpop.f32.mrf.mxu0
  %v186 = vadd.f32 %v37, %v185
  %v187 = vpop.f32.mrf.mxu0
  %188 = vmatprep.mubr.bf16.mxu0 0
  %189 = vmatmul.mubr.bf16.gmra.mxu0 %v99
  %v190 = vpop.f32.mrf.mxu0
  %v191 = vadd.f32 %v37, %v190
  %v192 = vpop.f32.mrf.mxu0
  %v193 = vpop.f32.mrf.mxu0
  %v194 = vadd.f32 %v37, %v193
  %v195 = vpop.f32.mrf.mxu0
  %196 = vmatprep.mubr.bf16.mxu0 0
  %197 = vmatmul.mubr.bf16.gmra.mxu0 %v102
  %v198 = vpop.f32.mrf.mxu0
  %v199 = vadd.f32 %v37, %v198
  %v200 = vpop.f32.mrf.mxu0
  %v201 = vpop.f32.mrf.mxu0
  %v202 = vadd.f32 %v37, %v201
  %v203 = vpop.f32.mrf.mxu0
  %204 = vdwg.mxu0
  %v205 = vpack.c.bf16 %v143, %v143
  %v206 = vpack.c.bf16 %v146, %v146
  %v207 = vpack.c.bf16 %v151, %v151
  %v208 = vpack.c.bf16 %v154, %v154
  %v209 = vpack.c.bf16 %v159, %v159
  %v210 = vpack.c.bf16 %v162, %v162
  %v211 = vpack.c.bf16 %v167, %v167
  %v212 = vpack.c.bf16 %v170, %v170
  %v213 = vpack.c.bf16 %v175, %v175
  %v214 = vpack.c.bf16 %v178, %v178
  %v215 = vpack.c.bf16 %v183, %v183
  %v216 = vpack.c.bf16 %v186, %v186
  %v217 = vpack.c.bf16 %v191, %v191
  %v218 = vpack.c.bf16 %v194, %v194
  %v219 = vpack.c.bf16 %v199, %v199
  %v220 = vpack.c.bf16 %v202, %v202
  %vm221 = vcmask 60416
  %222 = vst.msk [vmem:[%s3] sm:$0xf] %vm221, %v205
  %223 = vst.msk [vmem:[%s3 + $0x8] sm:$0xf] %vm221, %v206
  %224 = vst.msk [vmem:[%s3 + $0x10] sm:$0xf] %vm221, %v207
  %225 = vst.msk [vmem:[%s3 + $0x18] sm:$0xf] %vm221, %v208
  %226 = vst.msk [vmem:[%s3 + $0x20] sm:$0xf] %vm221, %v209
  %227 = vst.msk [vmem:[%s3 + $0x28] sm:$0xf] %vm221, %v210
  %228 = vst.msk [vmem:[%s3 + $0x30] sm:$0xf] %vm221, %v211
  %229 = vst.msk [vmem:[%s3 + $0x38] sm:$0xf] %vm221, %v212
  %230 = vst.msk [vmem:[%s3 + $0x40] sm:$0xf] %vm221, %v213
  %231 = vst.msk [vmem:[%s3 + $0x48] sm:$0xf] %vm221, %v214
  %232 = vst.msk [vmem:[%s3 + $0x50] sm:$0xf] %vm221, %v215
  %233 = vst.msk [vmem:[%s3 + $0x58] sm:$0xf] %vm221, %v216
  %234 = vst.msk [vmem:[%s3 + $0x60] sm:$0xf] %vm221, %v217
  %235 = vst.msk [vmem:[%s3 + $0x68] sm:$0xf] %vm221, %v218
  %236 = vst.msk [vmem:[%s3 + $0x70] sm:$0xf] %vm221, %v219
  %237 = vst.msk [vmem:[%s3 + $0x78] sm:$0xf] %vm221, %v220
  %s238 = scalar_lea.vmem %s1, 4
  %v239 = vld [vmem:[%s238] sm:$0xf]
  %v241 = vsel %vm104, %v239, 0
  %243 = vmatprep.subr.bf16.mxu0 0
  %244 = vmatpush1.bf16.msra.mxu0 0
  %245 = vmatprep.subr.bf16.mxu0 0
  %246 = vmatpush1.bf16.msra.mxu0 0
  %247 = vmatprep.subr.bf16.mxu0 0
  %248 = vmatpush1.bf16.msra.mxu0 0
  %249 = vmatprep.subr.bf16.mxu0 0
  %250 = vmatpush1.bf16.msra.mxu0 0
  %251 = vmatprep.subr.bf16.mxu0 0
  %252 = vmatpush1.bf16.msra.mxu0 0
  %253 = vmatprep.subr.bf16.mxu0 0
  %254 = vmatpush1.bf16.msra.mxu0 0
  %255 = vmatprep.subr.bf16.mxu0 0
  %256 = vmatpush1.bf16.msra.mxu0 0
  %257 = vmatprep.subr.bf16.mxu0 0
  %258 = vmatpush1.bf16.msra.mxu0 %v241
  %259 = vmatprep.subr.bf16.mxu0 0
  %260 = vmatpush2.bf16.msra.mxu0 0
  %261 = vmatprep.subr.bf16.mxu0 0
  %262 = vmatpush2.bf16.msra.mxu0 0
  %263 = vmatprep.subr.bf16.mxu0 0
  %264 = vmatpush2.bf16.msra.mxu0 0
  %265 = vmatprep.subr.bf16.mxu0 0
  %266 = vmatpush2.bf16.msra.mxu0 0
  %267 = vmatprep.subr.bf16.mxu0 0
  %268 = vmatpush2.bf16.msra.mxu0 0
  %269 = vmatprep.subr.bf16.mxu0 0
  %270 = vmatpush2.bf16.msra.mxu0 0
  %271 = vmatprep.subr.bf16.mxu0 0
  %272 = vmatpush2.bf16.msra.mxu0 0
  %273 = vmatprep.subr.bf16.mxu0 0
  %274 = vmatpush2.bf16.msra.mxu0 0
  %275 = vmatprep.mubr.bf16.mxu0 0
  %276 = vmatmul.mubr.bf16.gmra.mxu0 %v81
  %v277 = vpop.f32.mrf.mxu0
  %v278 = vadd.f32 %v37, %v277
  %v279 = vpop.f32.mrf.mxu0
  %v280 = vpop.f32.mrf.mxu0
  %v281 = vadd.f32 %v37, %v280
  %v282 = vpop.f32.mrf.mxu0
  %283 = vmatprep.mubr.bf16.mxu0 0
  %284 = vmatmul.mubr.bf16.gmra.mxu0 %v84
  %v285 = vpop.f32.mrf.mxu0
  %v286 = vadd.f32 %v37, %v285
  %v287 = vpop.f32.mrf.mxu0
  %v288 = vpop.f32.mrf.mxu0
  %v289 = vadd.f32 %v37, %v288
  %v290 = vpop.f32.mrf.mxu0
  %291 = vmatprep.mubr.bf16.mxu0 0
  %292 = vmatmul.mubr.bf16.gmra.mxu0 %v87
  %v293 = vpop.f32.mrf.mxu0
  %v294 = vadd.f32 %v37, %v293
  %v295 = vpop.f32.mrf.mxu0
  %v296 = vpop.f32.mrf.mxu0
  %v297 = vadd.f32 %v37, %v296
  %v298 = vpop.f32.mrf.mxu0
  %299 = vmatprep.mubr.bf16.mxu0 0
  %300 = vmatmul.mubr.bf16.gmra.mxu0 %v90
  %v301 = vpop.f32.mrf.mxu0
  %v302 = vadd.f32 %v37, %v301
  %v303 = vpop.f32.mrf.mxu0
  %v304 = vpop.f32.mrf.mxu0
  %v305 = vadd.f32 %v37, %v304
  %v306 = vpop.f32.mrf.mxu0
  %307 = vmatprep.mubr.bf16.mxu0 0
  %308 = vmatmul.mubr.bf16.gmra.mxu0 %v93
  %v309 = vpop.f32.mrf.mxu0
  %v310 = vadd.f32 %v37, %v309
  %v311 = vpop.f32.mrf.mxu0
  %v312 = vpop.f32.mrf.mxu0
  %v313 = vadd.f32 %v37, %v312
  %v314 = vpop.f32.mrf.mxu0
  %315 = vmatprep.mubr.bf16.mxu0 0
  %316 = vmatmul.mubr.bf16.gmra.mxu0 %v96
  %v317 = vpop.f32.mrf.mxu0
  %v318 = vadd.f32 %v37, %v317
  %v319 = vpop.f32.mrf.mxu0
  %v320 = vpop.f32.mrf.mxu0
  %v321 = vadd.f32 %v37, %v320
  %v322 = vpop.f32.mrf.mxu0
  %323 = vmatprep.mubr.bf16.mxu0 0
  %324 = vmatmul.mubr.bf16.gmra.mxu0 %v99
  %v325 = vpop.f32.mrf.mxu0
  %v326 = vadd.f32 %v37, %v325
  %v327 = vpop.f32.mrf.mxu0
  %v328 = vpop.f32.mrf.mxu0
  %v329 = vadd.f32 %v37, %v328
  %v330 = vpop.f32.mrf.mxu0
  %331 = vmatprep.mubr.bf16.mxu0 0
  %332 = vmatmul.mubr.bf16.gmra.mxu0 %v102
  %v333 = vpop.f32.mrf.mxu0
  %v334 = vadd.f32 %v37, %v333
  %v335 = vpop.f32.mrf.mxu0
  %v336 = vpop.f32.mrf.mxu0
  %v337 = vadd.f32 %v37, %v336
  %v338 = vpop.f32.mrf.mxu0
  %339 = vdwg.mxu0
  %v340 = vpack.c.bf16 %v278, %v278
  %v341 = vpack.c.bf16 %v281, %v281
  %v342 = vpack.c.bf16 %v286, %v286
  %v343 = vpack.c.bf16 %v289, %v289
  %v344 = vpack.c.bf16 %v294, %v294
  %v345 = vpack.c.bf16 %v297, %v297
  %v346 = vpack.c.bf16 %v302, %v302
  %v347 = vpack.c.bf16 %v305, %v305
  %v348 = vpack.c.bf16 %v310, %v310
  %v349 = vpack.c.bf16 %v313, %v313
  %v350 = vpack.c.bf16 %v318, %v318
  %v351 = vpack.c.bf16 %v321, %v321
  %v352 = vpack.c.bf16 %v326, %v326
  %v353 = vpack.c.bf16 %v329, %v329
  %v354 = vpack.c.bf16 %v334, %v334
  %v355 = vpack.c.bf16 %v337, %v337
  %s356 = scalar_lea.vmem %s3, 4
  %357 = vst.msk [vmem:[%s356] sm:$0xf] %vm221, %v340
  %358 = vst.msk [vmem:[%s356 + $0x8] sm:$0xf] %vm221, %v341
  %359 = vst.msk [vmem:[%s356 + $0x10] sm:$0xf] %vm221, %v342
  %360 = vst.msk [vmem:[%s356 + $0x18] sm:$0xf] %vm221, %v343
  %361 = vst.msk [vmem:[%s356 + $0x20] sm:$0xf] %vm221, %v344
  %362 = vst.msk [vmem:[%s356 + $0x28] sm:$0xf] %vm221, %v345
  %363 = vst.msk [vmem:[%s356 + $0x30] sm:$0xf] %vm221, %v346
  %364 = vst.msk [vmem:[%s356 + $0x38] sm:$0xf] %vm221, %v347
  %365 = vst.msk [vmem:[%s356 + $0x40] sm:$0xf] %vm221, %v348
  %366 = vst.msk [vmem:[%s356 + $0x48] sm:$0xf] %vm221, %v349
  %367 = vst.msk [vmem:[%s356 + $0x50] sm:$0xf] %vm221, %v350
  %368 = vst.msk [vmem:[%s356 + $0x58] sm:$0xf] %vm221, %v351
  %369 = vst.msk [vmem:[%s356 + $0x60] sm:$0xf] %vm221, %v352
  %370 = vst.msk [vmem:[%s356 + $0x68] sm:$0xf] %vm221, %v353
  %371 = vst.msk [vmem:[%s356 + $0x70] sm:$0xf] %vm221, %v354
  %372 = vst.msk [vmem:[%s356 + $0x78] sm:$0xf] %vm221, %v355
  // Predicated region
  $region14: #{up_block_forward.4} parent=0 // pred_check
    _
  $region15: #{up_block_forward.4} parent=0 // pred_check_branch
    %374 = sbr.rel (0) target = $region17
  $region16: #{up_block_forward.4} parent=0 // pred_region
    _
  $region17: #{up_block_forward.4} parent=0 // pred_fallthru
    _
  // Predicated region
  $region18: #{up_block_forward.4} parent=0 // pred_check
    _
  $region19: #{up_block_forward.4} parent=0 // pred_check_branch
    %376 = sbr.rel (0) target = $region21
  $region20: #{up_block_forward.4} parent=0 // pred_region
    _
  $region21: #{up_block_forward.4} parent=0 // pred_fallthru
    _

// kernel: up_block_forward.7
$region0: #{up_block_forward.7}
  #allocation0 [shape = 'u32[]', space=smem, size = 0x4, offset = 0x4, fixed_abs, tag = 'smem constant byte address 0x4 - core index']
  #allocation1 [shape = 'u32[144,128]{1,0:T(1,128)}', space=vmem, size = 0x12000, scoped, tag = 'internal scratch']
  %s0 = inlined_call_operand.vmem [shape: bf16[512,4], index: 0, kind: input, shape index: {}]
  %s1 = inlined_call_operand.vmem [shape: f32[1,4], index: 1, kind: input, shape index: {}]
  %s2 = inlined_call_operand.vmem [shape: f32[1,4], index: 2, kind: input, shape index: {}]
  %s3 = inlined_call_operand.vmem [shape: f32[512,4], index: 3, kind: output, shape index: {}]
  %s4 = sld [smem:[#allocation0]]
  $region22: #{up_block_forward.7} parent=0
    _
  %s6 = ssub.s32 1, %s4
  %s7 = scalar_select 0, %s6, %s4
  // Predicated region
  $region2: #{up_block_forward.7} parent=0 // pred_check
    _
  $region3: #{up_block_forward.7} parent=0 // pred_check_branch
    %9 = sbr.rel (0) target = $region5
  $region4: #{up_block_forward.7} parent=0 // pred_region
    _
  $region5: #{up_block_forward.7} parent=0 // pred_fallthru
    _
  // Predicated region
  $region6: #{up_block_forward.7} parent=0 // pred_check
    _
  $region7: #{up_block_forward.7} parent=0 // pred_check_branch
    %11 = sbr.rel (0) target = $region9
  $region8: #{up_block_forward.7} parent=0 // pred_region
    _
  $region9: #{up_block_forward.7} parent=0 // pred_fallthru
    _
  // Predicated region
  $region10: #{up_block_forward.7} parent=0 // pred_check
    _
  $region11: #{up_block_forward.7} parent=0 // pred_check_branch
    %13 = sbr.rel (0) target = $region13
  $region12: #{up_block_forward.7} parent=0 // pred_region
    _
  $region13: #{up_block_forward.7} parent=0 // pred_fallthru
    _
  %v14 = vld [vmem:[%s0] sm:$0xf]
  %v15 = vld [vmem:[%s0 + $0x4] sm:$0xf]
  %v16 = vld [vmem:[%s0 + $0x8] sm:$0xf]
  %v17 = vld [vmem:[%s0 + $0xc] sm:$0xf]
  %v18 = vld [vmem:[%s0 + $0x10] sm:$0xf]
  %v19 = vld [vmem:[%s0 + $0x14] sm:$0xf]
  %v20 = vld [vmem:[%s0 + $0x18] sm:$0xf]
  %v21 = vld [vmem:[%s0 + $0x1c] sm:$0xf]
  %v22 = vld [vmem:[%s0 + $0x20] sm:$0xf]
  %v23 = vld [vmem:[%s0 + $0x24] sm:$0xf]
  %v24 = vld [vmem:[%s0 + $0x28] sm:$0xf]
  %v25 = vld [vmem:[%s0 + $0x2c] sm:$0xf]
  %v26 = vld [vmem:[%s0 + $0x30] sm:$0xf]
  %v27 = vld [vmem:[%s0 + $0x34] sm:$0xf]
  %v28 = vld [vmem:[%s0 + $0x38] sm:$0xf]
  %v29 = vld [vmem:[%s0 + $0x3c] sm:$0xf]
  %v30 = vld [vmem:[%s0 + $0x40] sm:$0xf]
  %v31 = vld [vmem:[%s0 + $0x44] sm:$0xf]
  %v32 = vld [vmem:[%s0 + $0x48] sm:$0xf]
  %v33 = vld [vmem:[%s0 + $0x4c] sm:$0xf]
  %v34 = vld [vmem:[%s0 + $0x50] sm:$0xf]
  %v35 = vld [vmem:[%s0 + $0x54] sm:$0xf]
  %v36 = vld [vmem:[%s0 + $0x58] sm:$0xf]
  %v37 = vld [vmem:[%s0 + $0x5c] sm:$0xf]
  %v38 = vld [vmem:[%s0 + $0x60] sm:$0xf]
  %v39 = vld [vmem:[%s0 + $0x64] sm:$0xf]
  %v40 = vld [vmem:[%s0 + $0x68] sm:$0xf]
  %v41 = vld [vmem:[%s0 + $0x6c] sm:$0xf]
  %v42 = vld [vmem:[%s0 + $0x70] sm:$0xf]
  %v43 = vld [vmem:[%s0 + $0x74] sm:$0xf]
  %v44 = vld [vmem:[%s0 + $0x78] sm:$0xf]
  %v45 = vld [vmem:[%s0 + $0x7c] sm:$0xf]
  %v46 = vld [vmem:[%s0 + $0x80] sm:$0xf]
  %v47 = vld [vmem:[%s0 + $0x84] sm:$0xf]
  %v48 = vld [vmem:[%s0 + $0x88] sm:$0xf]
  %v49 = vld [vmem:[%s0 + $0x8c] sm:$0xf]
  %v50 = vld [vmem:[%s0 + $0x90] sm:$0xf]
  %v51 = vld [vmem:[%s0 + $0x94] sm:$0xf]
  %v52 = vld [vmem:[%s0 + $0x98] sm:$0xf]
  %v53 = vld [vmem:[%s0 + $0x9c] sm:$0xf]
  %v54 = vld [vmem:[%s0 + $0xa0] sm:$0xf]
  %v55 = vld [vmem:[%s0 + $0xa4] sm:$0xf]
  %v56 = vld [vmem:[%s0 + $0xa8] sm:$0xf]
  %v57 = vld [vmem:[%s0 + $0xac] sm:$0xf]
  %v58 = vld [vmem:[%s0 + $0xb0] sm:$0xf]
  %v59 = vld [vmem:[%s0 + $0xb4] sm:$0xf]
  %v60 = vld [vmem:[%s0 + $0xb8] sm:$0xf]
  %v61 = vld [vmem:[%s0 + $0xbc] sm:$0xf]
  %v62 = vld [vmem:[%s0 + $0xc0] sm:$0xf]
  %v63 = vld [vmem:[%s0 + $0xc4] sm:$0xf]
  %v64 = vld [vmem:[%s0 + $0xc8] sm:$0xf]
  %v65 = vld [vmem:[%s0 + $0xcc] sm:$0xf]
  %v66 = vld [vmem:[%s0 + $0xd0] sm:$0xf]
  %v67 = vld [vmem:[%s0 + $0xd4] sm:$0xf]
  %v68 = vld [vmem:[%s0 + $0xd8] sm:$0xf]
  %v69 = vld [vmem:[%s0 + $0xdc] sm:$0xf]
  %v70 = vld [vmem:[%s0 + $0xe0] sm:$0xf]
  %v71 = vld [vmem:[%s0 + $0xe4] sm:$0xf]
  %v72 = vld [vmem:[%s0 + $0xe8] sm:$0xf]
  %v73 = vld [vmem:[%s0 + $0xec] sm:$0xf]
  %v74 = vld [vmem:[%s0 + $0xf0] sm:$0xf]
  %v75 = vld [vmem:[%s0 + $0xf4] sm:$0xf]
  %v76 = vld [vmem:[%s0 + $0xf8] sm:$0xf]
  %v77 = vld [vmem:[%s0 + $0xfc] sm:$0xf]
  %v78 = vunpack.c.l.bf16 %v14
  %v79 = vunpack.c.l.bf16 %v15
  %v80 = vunpack.c.l.bf16 %v16
  %v81 = vunpack.c.l.bf16 %v17
  %v82 = vunpack.c.l.bf16 %v18
  %v83 = vunpack.c.l.bf16 %v19
  %v84 = vunpack.c.l.bf16 %v20
  %v85 = vunpack.c.l.bf16 %v21
  %v86 = vunpack.c.l.bf16 %v22
  %v87 = vunpack.c.l.bf16 %v23
  %v88 = vunpack.c.l.bf16 %v24
  %v89 = vunpack.c.l.bf16 %v25
  %v90 = vunpack.c.l.bf16 %v26
  %v91 = vunpack.c.l.bf16 %v27
  %v92 = vunpack.c.l.bf16 %v28
  %v93 = vunpack.c.l.bf16 %v29
  %v94 = vunpack.c.l.bf16 %v30
  %v95 = vunpack.c.l.bf16 %v31
  %v96 = vunpack.c.l.bf16 %v32
  %v97 = vunpack.c.l.bf16 %v33
  %v98 = vunpack.c.l.bf16 %v34
  %v99 = vunpack.c.l.bf16 %v35
  %v100 = vunpack.c.l.bf16 %v36
  %v101 = vunpack.c.l.bf16 %v37
  %v102 = vunpack.c.l.bf16 %v38
  %v103 = vunpack.c.l.bf16 %v39
  %v104 = vunpack.c.l.bf16 %v40
  %v105 = vunpack.c.l.bf16 %v41
  %v106 = vunpack.c.l.bf16 %v42
  %v107 = vunpack.c.l.bf16 %v43
  %v108 = vunpack.c.l.bf16 %v44
  %v109 = vunpack.c.l.bf16 %v45
  %v110 = vunpack.c.l.bf16 %v46
  %v111 = vunpack.c.l.bf16 %v47
  %v112 = vunpack.c.l.bf16 %v48
  %v113 = vunpack.c.l.bf16 %v49
  %v114 = vunpack.c.l.bf16 %v50
  %v115 = vunpack.c.l.bf16 %v51
  %v116 = vunpack.c.l.bf16 %v52
  %v117 = vunpack.c.l.bf16 %v53
  %v118 = vunpack.c.l.bf16 %v54
  %v119 = vunpack.c.l.bf16 %v55
  %v120 = vunpack.c.l.bf16 %v56
  %v121 = vunpack.c.l.bf16 %v57
  %v122 = vunpack.c.l.bf16 %v58
  %v123 = vunpack.c.l.bf16 %v59
  %v124 = vunpack.c.l.bf16 %v60
  %v125 = vunpack.c.l.bf16 %v61
  %v126 = vunpack.c.l.bf16 %v62
  %v127 = vunpack.c.l.bf16 %v63
  %v128 = vunpack.c.l.bf16 %v64
  %v129 = vunpack.c.l.bf16 %v65
  %v130 = vunpack.c.l.bf16 %v66
  %v131 = vunpack.c.l.bf16 %v67
  %v132 = vunpack.c.l.bf16 %v68
  %v133 = vunpack.c.l.bf16 %v69
  %v134 = vunpack.c.l.bf16 %v70
  %v135 = vunpack.c.l.bf16 %v71
  %v136 = vunpack.c.l.bf16 %v72
  %v137 = vunpack.c.l.bf16 %v73
  %v138 = vunpack.c.l.bf16 %v74
  %v139 = vunpack.c.l.bf16 %v75
  %v140 = vunpack.c.l.bf16 %v76
  %v141 = vunpack.c.l.bf16 %v77
  %v142 = vld [vmem:[%s1] sm:$0x1]
  %v144 = vlaneseq
  %v145 = vshrl.u32 %v144, 7
  %v146 = vsub.s32 0, %v145
  %v147 = vrot.slane %v142, %v146
  %v149 = vmul.f32 %v78, %v147
  %v150 = vmul.f32 %v79, %v147
  %v151 = vmul.f32 %v80, %v147
  %v152 = vmul.f32 %v81, %v147
  %v153 = vmul.f32 %v82, %v147
  %v154 = vmul.f32 %v83, %v147
  %v155 = vmul.f32 %v84, %v147
  %v156 = vmul.f32 %v85, %v147
  %v157 = vmul.f32 %v86, %v147
  %v158 = vmul.f32 %v87, %v147
  %v159 = vmul.f32 %v88, %v147
  %v160 = vmul.f32 %v89, %v147
  %v161 = vmul.f32 %v90, %v147
  %v162 = vmul.f32 %v91, %v147
  %v163 = vmul.f32 %v92, %v147
  %v164 = vmul.f32 %v93, %v147
  %v165 = vmul.f32 %v94, %v147
  %v166 = vmul.f32 %v95, %v147
  %v167 = vmul.f32 %v96, %v147
  %v168 = vmul.f32 %v97, %v147
  %v169 = vmul.f32 %v98, %v147
  %v170 = vmul.f32 %v99, %v147
  %v171 = vmul.f32 %v100, %v147
  %v172 = vmul.f32 %v101, %v147
  %v173 = vmul.f32 %v102, %v147
  %v174 = vmul.f32 %v103, %v147
  %v175 = vmul.f32 %v104, %v147
  %v176 = vmul.f32 %v105, %v147
  %v177 = vmul.f32 %v106, %v147
  %v178 = vmul.f32 %v107, %v147
  %v179 = vmul.f32 %v108, %v147
  %v180 = vmul.f32 %v109, %v147
  %v181 = vmul.f32 %v110, %v147
  %v182 = vmul.f32 %v111, %v147
  %v183 = vmul.f32 %v112, %v147
  %v184 = vmul.f32 %v113, %v147
  %v185 = vmul.f32 %v114, %v147
  %v186 = vmul.f32 %v115, %v147
  %v187 = vmul.f32 %v116, %v147
  %v188 = vmul.f32 %v117, %v147
  %v189 = vmul.f32 %v118, %v147
  %v190 = vmul.f32 %v119, %v147
  %v191 = vmul.f32 %v120, %v147
  %v192 = vmul.f32 %v121, %v147
  %v193 = vmul.f32 %v122, %v147
  %v194 = vmul.f32 %v123, %v147
  %v195 = vmul.f32 %v124, %v147
  %v196 = vmul.f32 %v125, %v147
  %v197 = vmul.f32 %v126, %v147
  %v198 = vmul.f32 %v127, %v147
  %v199 = vmul.f32 %v128, %v147
  %v200 = vmul.f32 %v129, %v147
  %v201 = vmul.f32 %v130, %v147
  %v202 = vmul.f32 %v131, %v147
  %v203 = vmul.f32 %v132, %v147
  %v204 = vmul.f32 %v133, %v147
  %v205 = vmul.f32 %v134, %v147
  %v206 = vmul.f32 %v135, %v147
  %v207 = vmul.f32 %v136, %v147
  %v208 = vmul.f32 %v137, %v147
  %v209 = vmul.f32 %v138, %v147
  %v210 = vmul.f32 %v139, %v147
  %v211 = vmul.f32 %v140, %v147
  %v212 = vmul.f32 %v141, %v147
  %v213 = vld [vmem:[%s2] sm:$0x1]
  %v215 = vlaneseq
  %v216 = vshrl.u32 %v215, 7
  %v217 = vsub.s32 0, %v216
  %v218 = vrot.slane %v213, %v217
  %v220 = vadd.f32 %v149, %v218
  %v221 = vadd.f32 %v150, %v218
  %v222 = vadd.f32 %v151, %v218
  %v223 = vadd.f32 %v152, %v218
  %v224 = vadd.f32 %v153, %v218
  %v225 = vadd.f32 %v154, %v218
  %v226 = vadd.f32 %v155, %v218
  %v227 = vadd.f32 %v156, %v218
  %v228 = vadd.f32 %v157, %v218
  %v229 = vadd.f32 %v158, %v218
  %v230 = vadd.f32 %v159, %v218
  %v231 = vadd.f32 %v160, %v218
  %v232 = vadd.f32 %v161, %v218
  %v233 = vadd.f32 %v162, %v218
  %v234 = vadd.f32 %v163, %v218
  %v235 = vadd.f32 %v164, %v218
  %v236 = vadd.f32 %v165, %v218
  %v237 = vadd.f32 %v166, %v218
  %v238 = vadd.f32 %v167, %v218
  %v239 = vadd.f32 %v168, %v218
  %v240 = vadd.f32 %v169, %v218
  %v241 = vadd.f32 %v170, %v218
  %v242 = vadd.f32 %v171, %v218
  %v243 = vadd.f32 %v172, %v218
  %v244 = vadd.f32 %v173, %v218
  %v245 = vadd.f32 %v174, %v218
  %v246 = vadd.f32 %v175, %v218
  %v247 = vadd.f32 %v176, %v218
  %v248 = vadd.f32 %v177, %v218
  %v249 = vadd.f32 %v178, %v218
  %v250 = vadd.f32 %v179, %v218
  %v251 = vadd.f32 %v180, %v218
  %v252 = vadd.f32 %v181, %v218
  %v253 = vadd.f32 %v182, %v218
  %v254 = vadd.f32 %v183, %v218
  %v255 = vadd.f32 %v184, %v218
  %v256 = vadd.f32 %v185, %v218
  %v257 = vadd.f32 %v186, %v218
  %v258 = vadd.f32 %v187, %v218
  %v259 = vadd.f32 %v188, %v218
  %v260 = vadd.f32 %v189, %v218
  %v261 = vadd.f32 %v190, %v218
  %v262 = vadd.f32 %v191, %v218
  %v263 = vadd.f32 %v192, %v218
  %v264 = vadd.f32 %v193, %v218
  %v265 = vadd.f32 %v194, %v218
  %v266 = vadd.f32 %v195, %v218
  %v267 = vadd.f32 %v196, %v218
  %v268 = vadd.f32 %v197, %v218
  %v269 = vadd.f32 %v198, %v218
  %v270 = vadd.f32 %v199, %v218
  %v271 = vadd.f32 %v200, %v218
  %v272 = vadd.f32 %v201, %v218
  %v273 = vadd.f32 %v202, %v218
  %v274 = vadd.f32 %v203, %v218
  %v275 = vadd.f32 %v204, %v218
  %v276 = vadd.f32 %v205, %v218
  %v277 = vadd.f32 %v206, %v218
  %v278 = vadd.f32 %v207, %v218
  %v279 = vadd.f32 %v208, %v218
  %v280 = vadd.f32 %v209, %v218
  %v281 = vadd.f32 %v210, %v218
  %v282 = vadd.f32 %v211, %v218
  %v283 = vadd.f32 %v212, %v218
  %v284 = vmax.f32 %v220, 0.0
  %v285 = vmax.f32 %v221, 0.0
  %v286 = vmax.f32 %v222, 0.0
  %v287 = vmax.f32 %v223, 0.0
  %v288 = vmax.f32 %v224, 0.0
  %v289 = vmax.f32 %v225, 0.0
  %v290 = vmax.f32 %v226, 0.0
  %v291 = vmax.f32 %v227, 0.0
  %v292 = vmax.f32 %v228, 0.0
  %v293 = vmax.f32 %v229, 0.0
  %v294 = vmax.f32 %v230, 0.0
  %v295 = vmax.f32 %v231, 0.0
  %v296 = vmax.f32 %v232, 0.0
  %v297 = vmax.f32 %v233, 0.0
  %v298 = vmax.f32 %v234, 0.0
  %v299 = vmax.f32 %v235, 0.0
  %v300 = vmax.f32 %v236, 0.0
  %v301 = vmax.f32 %v237, 0.0
  %v302 = vmax.f32 %v238, 0.0
  %v303 = vmax.f32 %v239, 0.0
  %v304 = vmax.f32 %v240, 0.0
  %v305 = vmax.f32 %v241, 0.0
  %v306 = vmax.f32 %v242, 0.0
  %v307 = vmax.f32 %v243, 0.0
  %v308 = vmax.f32 %v244, 0.0
  %v309 = vmax.f32 %v245, 0.0
  %v310 = vmax.f32 %v246, 0.0
  %v311 = vmax.f32 %v247, 0.0
  %v312 = vmax.f32 %v248, 0.0
  %v313 = vmax.f32 %v249, 0.0
  %v314 = vmax.f32 %v250, 0.0
  %v315 = vmax.f32 %v251, 0.0
  %v316 = vmax.f32 %v252, 0.0
  %v317 = vmax.f32 %v253, 0.0
  %v318 = vmax.f32 %v254, 0.0
  %v319 = vmax.f32 %v255, 0.0
  %v320 = vmax.f32 %v256, 0.0
  %v321 = vmax.f32 %v257, 0.0
  %v322 = vmax.f32 %v258, 0.0
  %v323 = vmax.f32 %v259, 0.0
  %v324 = vmax.f32 %v260, 0.0
  %v325 = vmax.f32 %v261, 0.0
  %v326 = vmax.f32 %v262, 0.0
  %v327 = vmax.f32 %v263, 0.0
  %v328 = vmax.f32 %v264, 0.0
  %v329 = vmax.f32 %v265, 0.0
  %v330 = vmax.f32 %v266, 0.0
  %v331 = vmax.f32 %v267, 0.0
  %v332 = vmax.f32 %v268, 0.0
  %v333 = vmax.f32 %v269, 0.0
  %v334 = vmax.f32 %v270, 0.0
  %v335 = vmax.f32 %v271, 0.0
  %v336 = vmax.f32 %v272, 0.0
  %v337 = vmax.f32 %v273, 0.0
  %v338 = vmax.f32 %v274, 0.0
  %v339 = vmax.f32 %v275, 0.0
  %v340 = vmax.f32 %v276, 0.0
  %v341 = vmax.f32 %v277, 0.0
  %v342 = vmax.f32 %v278, 0.0
  %v343 = vmax.f32 %v279, 0.0
  %v344 = vmax.f32 %v280, 0.0
  %v345 = vmax.f32 %v281, 0.0
  %v346 = vmax.f32 %v282, 0.0
  %v347 = vmax.f32 %v283, 0.0
  %vm348 = vcmask 31744
  %349 = vst.msk [vmem:[%s3] sm:$0xff] %vm348, %v284
  %350 = vst.msk [vmem:[%s3 + $0x8] sm:$0xff] %vm348, %v285
  %351 = vst.msk [vmem:[%s3 + $0x10] sm:$0xff] %vm348, %v286
  %352 = vst.msk [vmem:[%s3 + $0x18] sm:$0xff] %vm348, %v287
  %353 = vst.msk [vmem:[%s3 + $0x20] sm:$0xff] %vm348, %v288
  %354 = vst.msk [vmem:[%s3 + $0x28] sm:$0xff] %vm348, %v289
  %355 = vst.msk [vmem:[%s3 + $0x30] sm:$0xff] %vm348, %v290
  %356 = vst.msk [vmem:[%s3 + $0x38] sm:$0xff] %vm348, %v291
  %357 = vst.msk [vmem:[%s3 + $0x40] sm:$0xff] %vm348, %v292
  %358 = vst.msk [vmem:[%s3 + $0x48] sm:$0xff] %vm348, %v293
  %359 = vst.msk [vmem:[%s3 + $0x50] sm:$0xff] %vm348, %v294
  %360 = vst.msk [vmem:[%s3 + $0x58] sm:$0xff] %vm348, %v295
  %361 = vst.msk [vmem:[%s3 + $0x60] sm:$0xff] %vm348, %v296
  %362 = vst.msk [vmem:[%s3 + $0x68] sm:$0xff] %vm348, %v297
  %363 = vst.msk [vmem:[%s3 + $0x70] sm:$0xff] %vm348, %v298
  %364 = vst.msk [vmem:[%s3 + $0x78] sm:$0xff] %vm348, %v299
  %365 = vst.msk [vmem:[%s3 + $0x80] sm:$0xff] %vm348, %v300
  %366 = vst.msk [vmem:[%s3 + $0x88] sm:$0xff] %vm348, %v301
  %367 = vst.msk [vmem:[%s3 + $0x90] sm:$0xff] %vm348, %v302
  %368 = vst.msk [vmem:[%s3 + $0x98] sm:$0xff] %vm348, %v303
  %369 = vst.msk [vmem:[%s3 + $0xa0] sm:$0xff] %vm348, %v304
  %370 = vst.msk [vmem:[%s3 + $0xa8] sm:$0xff] %vm348, %v305
  %371 = vst.msk [vmem:[%s3 + $0xb0] sm:$0xff] %vm348, %v306
  %372 = vst.msk [vmem:[%s3 + $0xb8] sm:$0xff] %vm348, %v307
  %373 = vst.msk [vmem:[%s3 + $0xc0] sm:$0xff] %vm348, %v308
  %374 = vst.msk [vmem:[%s3 + $0xc8] sm:$0xff] %vm348, %v309
  %375 = vst.msk [vmem:[%s3 + $0xd0] sm:$0xff] %vm348, %v310
  %376 = vst.msk [vmem:[%s3 + $0xd8] sm:$0xff] %vm348, %v311
  %377 = vst.msk [vmem:[%s3 + $0xe0] sm:$0xff] %vm348, %v312
  %378 = vst.msk [vmem:[%s3 + $0xe8] sm:$0xff] %vm348, %v313
  %379 = vst.msk [vmem:[%s3 + $0xf0] sm:$0xff] %vm348, %v314
  %380 = vst.msk [vmem:[%s3 + $0xf8] sm:$0xff] %vm348, %v315
  %381 = vst.msk [vmem:[%s3 + $0x100] sm:$0xff] %vm348, %v316
  %382 = vst.msk [vmem:[%s3 + $0x108] sm:$0xff] %vm348, %v317
  %383 = vst.msk [vmem:[%s3 + $0x110] sm:$0xff] %vm348, %v318
  %384 = vst.msk [vmem:[%s3 + $0x118] sm:$0xff] %vm348, %v319
  %385 = vst.msk [vmem:[%s3 + $0x120] sm:$0xff] %vm348, %v320
  %386 = vst.msk [vmem:[%s3 + $0x128] sm:$0xff] %vm348, %v321
  %387 = vst.msk [vmem:[%s3 + $0x130] sm:$0xff] %vm348, %v322
  %388 = vst.msk [vmem:[%s3 + $0x138] sm:$0xff] %vm348, %v323
  %389 = vst.msk [vmem:[%s3 + $0x140] sm:$0xff] %vm348, %v324
  %390 = vst.msk [vmem:[%s3 + $0x148] sm:$0xff] %vm348, %v325
  %391 = vst.msk [vmem:[%s3 + $0x150] sm:$0xff] %vm348, %v326
  %392 = vst.msk [vmem:[%s3 + $0x158] sm:$0xff] %vm348, %v327
  %393 = vst.msk [vmem:[%s3 + $0x160] sm:$0xff] %vm348, %v328
  %394 = vst.msk [vmem:[%s3 + $0x168] sm:$0xff] %vm348, %v329
  %395 = vst.msk [vmem:[%s3 + $0x170] sm:$0xff] %vm348, %v330
  %396 = vst.msk [vmem:[%s3 + $0x178] sm:$0xff] %vm348, %v331
  %397 = vst.msk [vmem:[%s3 + $0x180] sm:$0xff] %vm348, %v332
  %398 = vst.msk [vmem:[%s3 + $0x188] sm:$0xff] %vm348, %v333
  %399 = vst.msk [vmem:[%s3 + $0x190] sm:$0xff] %vm348, %v334
  %400 = vst.msk [vmem:[%s3 + $0x198] sm:$0xff] %vm348, %v335
  %401 = vst.msk [vmem:[%s3 + $0x1a0] sm:$0xff] %vm348, %v336
  %402 = vst.msk [vmem:[%s3 + $0x1a8] sm:$0xff] %vm348, %v337
  %403 = vst.msk [vmem:[%s3 + $0x1b0] sm:$0xff] %vm348, %v338
  %404 = vst.msk [vmem:[%s3 + $0x1b8] sm:$0xff] %vm348, %v339
  %405 = vst.msk [vmem:[%s3 + $0x1c0] sm:$0xff] %vm348, %v340
  %406 = vst.msk [vmem:[%s3 + $0x1c8] sm:$0xff] %vm348, %v341
  %407 = vst.msk [vmem:[%s3 + $0x1d0] sm:$0xff] %vm348, %v342
  %408 = vst.msk [vmem:[%s3 + $0x1d8] sm:$0xff] %vm348, %v343
  %409 = vst.msk [vmem:[%s3 + $0x1e0] sm:$0xff] %vm348, %v344
  %410 = vst.msk [vmem:[%s3 + $0x1e8] sm:$0xff] %vm348, %v345
  %411 = vst.msk [vmem:[%s3 + $0x1f0] sm:$0xff] %vm348, %v346
  %412 = vst.msk [vmem:[%s3 + $0x1f8] sm:$0xff] %vm348, %v347
  // Predicated region
  $region14: #{up_block_forward.7} parent=0 // pred_check
    _
  $region15: #{up_block_forward.7} parent=0 // pred_check_branch
    %414 = sbr.rel (0) target = $region17
  $region16: #{up_block_forward.7} parent=0 // pred_region
    _
  $region17: #{up_block_forward.7} parent=0 // pred_fallthru
    _
  // Predicated region
  $region18: #{up_block_forward.7} parent=0 // pred_check
    _
  $region19: #{up_block_forward.7} parent=0 // pred_check_branch
    %416 = sbr.rel (0) target = $region21
  $region20: #{up_block_forward.7} parent=0 // pred_region
    _
  $region21: #{up_block_forward.7} parent=0 // pred_fallthru
    _

// kernel: up_block_forward.5
$region0: #{up_block_forward.5}
  #allocation0 [shape = 'u32[]', space=smem, size = 0x4, offset = 0x4, fixed_abs, tag = 'smem constant byte address 0x4 - core index']
  #allocation1 [shape = 'u32[144,128]{1,0:T(1,128)}', space=vmem, size = 0x12000, scoped, tag = 'internal scratch']
  %s0 = inlined_call_operand.vmem [shape: bf16[2,16,16,4], index: 0, kind: input, shape index: {}, may-alias: {0,1,2}]
  %s1 = inlined_call_operand.vmem [shape: bf16[2,16,16,4], index: 1, kind: input, shape index: {}, may-alias: {0,1,2}]
  %s2 = inlined_call_operand.vmem [shape: bf16[2,16,16,4], index: 2, kind: input, shape index: {}, may-alias: {0,1,2}]
  %s3 = inlined_call_operand.vmem [shape: bf16[2,16,16,4], index: 3, kind: input, shape index: {}, may-alias: {3,4,5}]
  %s4 = inlined_call_operand.vmem [shape: bf16[2,16,16,4], index: 4, kind: input, shape index: {}, may-alias: {3,4,5}]
  %s5 = inlined_call_operand.vmem [shape: bf16[2,16,16,4], index: 5, kind: input, shape index: {}, may-alias: {3,4,5}]
  %s6 = inlined_call_operand.vmem [shape: bf16[3,3,8,4], index: 6, kind: input, shape index: {}]
  %s7 = inlined_call_operand.vmem [shape: bf16[2,16,16,4], index: 7, kind: output, shape index: {0}]
  %s8 = inlined_call_operand.vmem [shape: f32[2,2,8,4], index: 8, kind: output, shape index: {1}]
  %9 = xla_tuple %s7, %s8
  %s10 = sld [smem:[#allocation0]]
  $region69: #{up_block_forward.5} parent=0
    _
  %s12 = ssub.s32 1, %s10
  %s13 = scalar_select 0, %s12, %s10
  loop: start=0, step=1, limit=6
  $region2: #{up_block_forward.5} parent=0 // loop_pre_header
    _
  $region3: #{up_block_forward.5} parent=0 // loop_header
    %s15 = sphi 0, %s19
    %p16 = scmp.ge.s32.totalorder %s15, 6
    %s22 = sphi 0, %s34
    %s23 = sphi 0, %s30
    %s24 = sphi 0, %s22
    %s25 = sphi 0, %s23
    %s26 = sphi 0, %s24
    %s27 = sphi 0, %s25
    %s39 = sphi 0, %s41
    %s42 = sphi 0, %s39
    %s43 = sphi 0, %s42
    %s59 = sphi 0, %s43
    %s75 = sphi 0, %s77
    %s78 = sphi 0, %s75
    %s79 = sphi 0, %s78
    %s95 = sphi 0, %s79
    %s111 = sphi 0, %s113
    %s114 = sphi 0, %s111
    %s115 = sphi 0, %s114
    %s131 = sphi 0, %s115
    %s139 = sphi 0, %s141
    %s142 = sphi 0, %s139
    %s143 = sphi 0, %s142
    %s159 = sphi 0, %s143
    %s175 = sphi 0, %s177
    %s178 = sphi 0, %s175
    %s179 = sphi 0, %s178
    %s195 = sphi 0, %s179
    %s211 = sphi 0, %s213
    %s214 = sphi 0, %s211
    %s215 = sphi 0, %s214
    %s231 = sphi 0, %s215
    %s235 = sphi 0, %s235
    %s237 = sphi 0, %s235
    %s238 = sphi 0, %s237
    %s252 = sphi 0, %s238
    %s260 = sphi 0, %s262
    %s263 = sphi 0, %s260
    %s264 = sphi 0, %s263
    %s280 = sphi 0, %s264
    %s288 = sphi 0, %s290
    %s291 = sphi 0, %s288
    %s292 = sphi 0, %s291
    %s308 = sphi 0, %s292
  $region4: #{up_block_forward.5} parent=0 // loop_header_branch
    %18 = sbr.rel (%p16) target = $region8
  $region5: #{up_block_forward.5} parent=0 // loop_body
    %s20 = ssub.s32 %s15, 1
    %s21 = ssub.s32 %s15, 2
    %s28 = sadd.s32 1, %s23
    %p29 = scmp.ge.s32.totalorder %s28, 2
    %s30 = scalar_select %p29, 0, %s28
    %s31 = sadd.s32 1, %s22
    %s32 = scalar_select %p29, %s31, %s22
    %p33 = scmp.ge.s32.totalorder %s32, 2
    %s34 = scalar_select %p33, 0, %s32
    %s35 = ssub.s32 %s22, %s34
    %s36 = ssub.s32 %s23, %s30
    %s37 = sor.u32 %s35, %s36
    %p38 = scmp.eq.s32.totalorder %s37, 0
    %s40 = sadd.s32 %s39, 1
    %s41 = scalar_select %p38, %s39, %s40
    %p44 = pneg %p38
    %p45 = scmp.eq.s32.totalorder %s15, 3
    %p46 = por %p44, %p45
    %p47 = scmp.ne.s32.totalorder %s39, %s42
    %p48 = scmp.eq.s32.totalorder %s15, 0
    %p49 = por %p47, %p48
    %p50 = scmp.ne.s32.totalorder %s39, %s42
    %p51 = scmp.eq.s32.totalorder %s20, 3
    %p52 = por %p50, %p51
    %p53 = scmp.ne.s32.totalorder %s42, %s43
    %p54 = scmp.eq.s32.totalorder %s20, 0
    %p55 = por %p53, %p54
    %p56 = scmp.ne.s32.totalorder %s42, %s43
    %p57 = scmp.eq.s32.totalorder %s21, 3
    %p58 = por %p56, %p57
    %p60 = scmp.ne.s32.totalorder %s43, %s59
    %p61 = scmp.eq.s32.totalorder %s21, 0
    %p62 = por %p60, %p61
    %s63 = smul.u32 %s23, 8
    %s64 = ssub.s32 %s63, 1
    %p65 = scmp.gt.s32.totalorder %s64, 0
    %s66 = scalar_select %p65, %s64, 0
    %s67 = smul.u32 %s30, 8
    %s68 = ssub.s32 %s67, 1
    %p69 = scmp.gt.s32.totalorder %s68, 0
    %s70 = scalar_select %p69, %s68, 0
    %s71 = ssub.s32 %s22, %s34
    %s72 = ssub.s32 %s66, %s70
    %s73 = sor.u32 %s71, %s72
    %p74 = scmp.eq.s32.totalorder %s73, 0
    %s76 = sadd.s32 %s75, 1
    %s77 = scalar_select %p74, %s75, %s76
    %p80 = pneg %p74
    %p81 = scmp.eq.s32.totalorder %s15, 3
    %p82 = por %p80, %p81
    %p83 = scmp.ne.s32.totalorder %s75, %s78
    %p84 = scmp.eq.s32.totalorder %s15, 0
    %p85 = por %p83, %p84
    %p86 = scmp.ne.s32.totalorder %s75, %s78
    %p87 = scmp.eq.s32.totalorder %s20, 3
    %p88 = por %p86, %p87
    %p89 = scmp.ne.s32.totalorder %s78, %s79
    %p90 = scmp.eq.s32.totalorder %s20, 0
    %p91 = por %p89, %p90
    %p92 = scmp.ne.s32.totalorder %s78, %s79
    %p93 = scmp.eq.s32.totalorder %s21, 3
    %p94 = por %p92, %p93
    %p96 = scmp.ne.s32.totalorder %s79, %s95
    %p97 = scmp.eq.s32.totalorder %s21, 0
    %p98 = por %p96, %p97
    %s99 = smul.u32 %s23, 8
    %s100 = sadd.s32 %s99, 8
    %p101 = scmp.lt.s32.totalorder %s100, 15
    %s102 = scalar_select %p101, %s100, 15
    %s103 = smul.u32 %s30, 8
    %s104 = sadd.s32 %s103, 8
    %p105 = scmp.lt.s32.totalorder %s104, 15
    %s106 = scalar_select %p105, %s104, 15
    %s107 = ssub.s32 %s22, %s34
    %s108 = ssub.s32 %s102, %s106
    %s109 = sor.u32 %s107, %s108
    %p110 = scmp.eq.s32.totalorder %s109, 0
    %s112 = sadd.s32 %s111, 1
    %s113 = scalar_select %p110, %s111, %s112
    %p116 = pneg %p110
    %p117 = scmp.eq.s32.totalorder %s15, 3
    %p118 = por %p116, %p117
    %p119 = scmp.ne.s32.totalorder %s111, %s114
    %p120 = scmp.eq.s32.totalorder %s15, 0
    %p121 = por %p119, %p120
    %p122 = scmp.ne.s32.totalorder %s111, %s114
    %p123 = scmp.eq.s32.totalorder %s20, 3
    %p124 = por %p122, %p123
    %p125 = scmp.ne.s32.totalorder %s114, %s115
    %p126 = scmp.eq.s32.totalorder %s20, 0
    %p127 = por %p125, %p126
    %p128 = scmp.ne.s32.totalorder %s114, %s115
    %p129 = scmp.eq.s32.totalorder %s21, 3
    %p130 = por %p128, %p129
    %p132 = scmp.ne.s32.totalorder %s115, %s131
    %p133 = scmp.eq.s32.totalorder %s21, 0
    %p134 = por %p132, %p133
    %s135 = ssub.s32 %s22, %s34
    %s136 = ssub.s32 %s23, %s30
    %s137 = sor.u32 %s135, %s136
    %p138 = scmp.eq.s32.totalorder %s137, 0
    %s140 = sadd.s32 %s139, 1
    %s141 = scalar_select %p138, %s139, %s140
    %p144 = pneg %p138
    %p145 = scmp.eq.s32.totalorder %s15, 3
    %p146 = por %p144, %p145
    %p147 = scmp.ne.s32.totalorder %s139, %s142
    %p148 = scmp.eq.s32.totalorder %s15, 0
    %p149 = por %p147, %p148
    %p150 = scmp.ne.s32.totalorder %s139, %s142
    %p151 = scmp.eq.s32.totalorder %s20, 3
    %p152 = por %p150, %p151
    %p153 = scmp.ne.s32.totalorder %s142, %s143
    %p154 = scmp.eq.s32.totalorder %s20, 0
    %p155 = por %p153, %p154
    %p156 = scmp.ne.s32.totalorder %s142, %s143
    %p157 = scmp.eq.s32.totalorder %s21, 3
    %p158 = por %p156, %p157
    %p160 = scmp.ne.s32.totalorder %s143, %s159
    %p161 = scmp.eq.s32.totalorder %s21, 0
    %p162 = por %p160, %p161
    %s163 = smul.u32 %s23, 8
    %s164 = ssub.s32 %s163, 1
    %p165 = scmp.gt.s32.totalorder %s164, 0
    %s166 = scalar_select %p165, %s164, 0
    %s167 = smul.u32 %s30, 8
    %s168 = ssub.s32 %s167, 1
    %p169 = scmp.gt.s32.totalorder %s168, 0
    %s170 = scalar_select %p169, %s168, 0
    %s171 = ssub.s32 %s22, %s34
    %s172 = ssub.s32 %s166, %s170
    %s173 = sor.u32 %s171, %s172
    %p174 = scmp.eq.s32.totalorder %s173, 0
    %s176 = sadd.s32 %s175, 1
    %s177 = scalar_select %p174, %s175, %s176
    %p180 = pneg %p174
    %p181 = scmp.eq.s32.totalorder %s15, 3
    %p182 = por %p180, %p181
    %p183 = scmp.ne.s32.totalorder %s175, %s178
    %p184 = scmp.eq.s32.totalorder %s15, 0
    %p185 = por %p183, %p184
    %p186 = scmp.ne.s32.totalorder %s175, %s178
    %p187 = scmp.eq.s32.totalorder %s20, 3
    %p188 = por %p186, %p187
    %p189 = scmp.ne.s32.totalorder %s178, %s179
    %p190 = scmp.eq.s32.totalorder %s20, 0
    %p191 = por %p189, %p190
    %p192 = scmp.ne.s32.totalorder %s178, %s179
    %p193 = scmp.eq.s32.totalorder %s21, 3
    %p194 = por %p192, %p193
    %p196 = scmp.ne.s32.totalorder %s179, %s195
    %p197 = scmp.eq.s32.totalorder %s21, 0
    %p198 = por %p196, %p197
    %s199 = smul.u32 %s23, 8
    %s200 = sadd.s32 %s199, 8
    %p201 = scmp.lt.s32.totalorder %s200, 15
    %s202 = scalar_select %p201, %s200, 15
    %s203 = smul.u32 %s30, 8
    %s204 = sadd.s32 %s203, 8
    %p205 = scmp.lt.s32.totalorder %s204, 15
    %s206 = scalar_select %p205, %s204, 15
    %s207 = ssub.s32 %s22, %s34
    %s208 = ssub.s32 %s202, %s206
    %s209 = sor.u32 %s207, %s208
    %p210 = scmp.eq.s32.totalorder %s209, 0
    %s212 = sadd.s32 %s211, 1
    %s213 = scalar_select %p210, %s211, %s212
    %p216 = pneg %p210
    %p217 = scmp.eq.s32.totalorder %s15, 3
    %p218 = por %p216, %p217
    %p219 = scmp.ne.s32.totalorder %s211, %s214
    %p220 = scmp.eq.s32.totalorder %s15, 0
    %p221 = por %p219, %p220
    %p222 = scmp.ne.s32.totalorder %s211, %s214
    %p223 = scmp.eq.s32.totalorder %s20, 3
    %p224 = por %p222, %p223
    %p225 = scmp.ne.s32.totalorder %s214, %s215
    %p226 = scmp.eq.s32.totalorder %s20, 0
    %p227 = por %p225, %p226
    %p228 = scmp.ne.s32.totalorder %s214, %s215
    %p229 = scmp.eq.s32.totalorder %s21, 3
    %p230 = por %p228, %p229
    %p232 = scmp.ne.s32.totalorder %s215, %s231
    %p233 = scmp.eq.s32.totalorder %s21, 0
    %p234 = por %p232, %p233
    %s236 = sadd.s32 %s235, 1
    %p239 = scmp.eq.s32.totalorder %s15, 3
    %p240 = scmp.ne.s32.totalorder %s235, %s237
    %p241 = scmp.eq.s32.totalorder %s15, 0
    %p242 = por %p240, %p241
    %p243 = scmp.ne.s32.totalorder %s235, %s237
    %p244 = scmp.eq.s32.totalorder %s20, 3
    %p245 = por %p243, %p244
    %p246 = scmp.ne.s32.totalorder %s237, %s238
    %p247 = scmp.eq.s32.totalorder %s20, 0
    %p248 = por %p246, %p247
    %p249 = scmp.ne.s32.totalorder %s237, %s238
    %p250 = scmp.eq.s32.totalorder %s21, 3
    %p251 = por %p249, %p250
    %p253 = scmp.ne.s32.totalorder %s238, %s252
    %p254 = scmp.eq.s32.totalorder %s21, 0
    %p255 = por %p253, %p254
    %s256 = ssub.s32 %s22, %s34
    %s257 = ssub.s32 %s23, %s30
    %s258 = sor.u32 %s256, %s257
    %p259 = scmp.eq.s32.totalorder %s258, 0
    %s261 = sadd.s32 %s260, 1
    %s262 = scalar_select %p259, %s260, %s261
    %p265 = pneg %p259
    %p266 = scmp.eq.s32.totalorder %s15, 3
    %p267 = por %p265, %p266
    %p268 = scmp.ne.s32.totalorder %s260, %s263
    %p269 = scmp.eq.s32.totalorder %s15, 0
    %p270 = por %p268, %p269
    %p271 = scmp.ne.s32.totalorder %s260, %s263
    %p272 = scmp.eq.s32.totalorder %s20, 3
    %p273 = por %p271, %p272
    %p274 = scmp.ne.s32.totalorder %s263, %s264
    %p275 = scmp.eq.s32.totalorder %s20, 0
    %p276 = por %p274, %p275
    %p277 = scmp.ne.s32.totalorder %s263, %s264
    %p278 = scmp.eq.s32.totalorder %s21, 3
    %p279 = por %p277, %p278
    %p281 = scmp.ne.s32.totalorder %s264, %s280
    %p282 = scmp.eq.s32.totalorder %s21, 0
    %p283 = por %p281, %p282
    %s284 = ssub.s32 %s22, %s34
    %s285 = ssub.s32 %s23, %s30
    %s286 = sor.u32 %s284, %s285
    %p287 = scmp.eq.s32.totalorder %s286, 0
    %s289 = sadd.s32 %s288, 1
    %s290 = scalar_select %p287, %s288, %s289
    %p293 = pneg %p287
    %p294 = scmp.eq.s32.totalorder %s15, 3
    %p295 = por %p293, %p294
    %p296 = scmp.ne.s32.totalorder %s288, %s291
    %p297 = scmp.eq.s32.totalorder %s15, 0
    %p298 = por %p296, %p297
    %p299 = scmp.ne.s32.totalorder %s288, %s291
    %p300 = scmp.eq.s32.totalorder %s20, 3
    %p301 = por %p299, %p300
    %p302 = scmp.ne.s32.totalorder %s291, %s292
    %p303 = scmp.eq.s32.totalorder %s20, 0
    %p304 = por %p302, %p303
    %p305 = scmp.ne.s32.totalorder %s291, %s292
    %p306 = scmp.eq.s32.totalorder %s21, 3
    %p307 = por %p305, %p306
    %p309 = scmp.ne.s32.totalorder %s292, %s308
    %p310 = scmp.eq.s32.totalorder %s21, 0
    %p311 = por %p309, %p310
    %p312 = scmp.le.s32.totalorder 1, %s15
    %p313 = scmp.lt.s32.totalorder %s15, 5
    %p314 = pnand %p312, %p313
    %p315 = pneg %p314
    // Predicated region
    $region9: #{up_block_forward.5} parent=5 // pred_check
      _
    $region10: #{up_block_forward.5} parent=5 // pred_check_branch
      %317 = sbr.rel (%p314) target = $region12
    $region11: #{up_block_forward.5} parent=5 // pred_region
      %s318 = ssub.s32 %s15, 1
      // Predicated region
      $region13: #{up_block_forward.5} parent=11 // pred_check
        %p319 = pneg %p248
      $region14: #{up_block_forward.5} parent=11 // pred_check_branch
        %321 = sbr.rel (%p319) target = $region16
      $region15: #{up_block_forward.5} parent=11 // pred_region
        _
      $region16: #{up_block_forward.5} parent=11 // pred_fallthru
        _
    $region12: #{up_block_forward.5} parent=5 // pred_fallthru
      _
    %p322 = scmp.lt.s32.totalorder %s15, 4
    // Predicated region
    $region17: #{up_block_forward.5} parent=5 // pred_check
      %p323 = pneg %p322
    $region18: #{up_block_forward.5} parent=5 // pred_check_branch
      %325 = sbr.rel (%p323) target = $region20
    $region19: #{up_block_forward.5} parent=5 // pred_region
      // Predicated region
      $region21: #{up_block_forward.5} parent=19 // pred_check
        %p326 = pneg %p49
      $region22: #{up_block_forward.5} parent=19 // pred_check_branch
        %328 = sbr.rel (%p326) target = $region24
      $region23: #{up_block_forward.5} parent=19 // pred_region
        %s329 = smul.u32 8, %s23
        %p330 = scmp.lt.s32.totalorder %s22, 1
        %s331 = scalar_select %p330, %s22, 1
        %p332 = scmp.lt.s32.totalorder %s329, 15
        %s333 = scalar_select %p332, %s329, 15
        %s334 = smul.addr %s333, 2
        %s335 = smul.addr %s331, 32
        %s336 = sadd.s32 %s334, %s335
        %s337 = smul.addr %s336, 4
        %s338 = scalar_lea.vmem %s0, %s337
        %s339 = smul.u32 8, %s23
      $region24: #{up_block_forward.5} parent=19 // pred_fallthru
        _
      // Predicated region
      $region25: #{up_block_forward.5} parent=19 // pred_check
        %p340 = pneg %p85
      $region26: #{up_block_forward.5} parent=19 // pred_check_branch
        %342 = sbr.rel (%p340) target = $region28
      $region27: #{up_block_forward.5} parent=19 // pred_region
        %s343 = smul.u32 %s23, 8
        %s344 = ssub.s32 %s343, 1
        %p345 = scmp.gt.s32.totalorder %s344, 0
        %s346 = scalar_select %p345, %s344, 0
        %p347 = scmp.lt.s32.totalorder %s22, 1
        %s348 = scalar_select %p347, %s22, 1
        %p349 = scmp.lt.s32.totalorder %s346, 15
        %s350 = scalar_select %p349, %s346, 15
        %s351 = smul.addr %s350, 2
        %s352 = smul.addr %s348, 32
        %s353 = sadd.s32 %s351, %s352
        %s354 = smul.addr %s353, 4
        %s355 = scalar_lea.vmem %s1, %s354
        %s356 = smul.u32 %s23, 8
        %s357 = ssub.s32 %s356, 1
        %p358 = scmp.gt.s32.totalorder %s357, 0
        %s359 = scalar_select %p358, %s357, 0
      $region28: #{up_block_forward.5} parent=19 // pred_fallthru
        _
      // Predicated region
      $region29: #{up_block_forward.5} parent=19 // pred_check
        %p360 = pneg %p121
      $region30: #{up_block_forward.5} parent=19 // pred_check_branch
        %362 = sbr.rel (%p360) target = $region32
      $region31: #{up_block_forward.5} parent=19 // pred_region
        %s363 = smul.u32 %s23, 8
        %s364 = sadd.s32 %s363, 8
        %p365 = scmp.lt.s32.totalorder %s364, 15
        %s366 = scalar_select %p365, %s364, 15
        %p367 = scmp.lt.s32.totalorder %s22, 1
        %s368 = scalar_select %p367, %s22, 1
        %p369 = scmp.lt.s32.totalorder %s366, 15
        %s370 = scalar_select %p369, %s366, 15
        %s371 = smul.addr %s370, 2
        %s372 = smul.addr %s368, 32
        %s373 = sadd.s32 %s371, %s372
        %s374 = smul.addr %s373, 4
        %s375 = scalar_lea.vmem %s2, %s374
        %s376 = smul.u32 %s23, 8
        %s377 = sadd.s32 %s376, 8
        %p378 = scmp.lt.s32.totalorder %s377, 15
        %s379 = scalar_select %p378, %s377, 15
      $region32: #{up_block_forward.5} parent=19 // pred_fallthru
        _
      // Predicated region
      $region33: #{up_block_forward.5} parent=19 // pred_check
        %p380 = pneg %p149
      $region34: #{up_block_forward.5} parent=19 // pred_check_branch
        %382 = sbr.rel (%p380) target = $region36
      $region35: #{up_block_forward.5} parent=19 // pred_region
        %s383 = smul.u32 8, %s23
        %p384 = scmp.lt.s32.totalorder %s22, 1
        %s385 = scalar_select %p384, %s22, 1
        %p386 = scmp.lt.s32.totalorder %s383, 15
        %s387 = scalar_select %p386, %s383, 15
        %s388 = smul.addr %s387, 2
        %s389 = smul.addr %s385, 32
        %s390 = sadd.s32 %s388, %s389
        %s391 = smul.addr %s390, 4
        %s392 = scalar_lea.vmem %s3, %s391
        %s393 = smul.u32 8, %s23
      $region36: #{up_block_forward.5} parent=19 // pred_fallthru
        _
      // Predicated region
      $region37: #{up_block_forward.5} parent=19 // pred_check
        %p394 = pneg %p185
      $region38: #{up_block_forward.5} parent=19 // pred_check_branch
        %396 = sbr.rel (%p394) target = $region40
      $region39: #{up_block_forward.5} parent=19 // pred_region
        %s397 = smul.u32 %s23, 8
        %s398 = ssub.s32 %s397, 1
        %p399 = scmp.gt.s32.totalorder %s398, 0
        %s400 = scalar_select %p399, %s398, 0
        %p401 = scmp.lt.s32.totalorder %s22, 1
        %s402 = scalar_select %p401, %s22, 1
        %p403 = scmp.lt.s32.totalorder %s400, 15
        %s404 = scalar_select %p403, %s400, 15
        %s405 = smul.addr %s404, 2
        %s406 = smul.addr %s402, 32
        %s407 = sadd.s32 %s405, %s406
        %s408 = smul.addr %s407, 4
        %s409 = scalar_lea.vmem %s4, %s408
        %s410 = smul.u32 %s23, 8
        %s411 = ssub.s32 %s410, 1
        %p412 = scmp.gt.s32.totalorder %s411, 0
        %s413 = scalar_select %p412, %s411, 0
      $region40: #{up_block_forward.5} parent=19 // pred_fallthru
        _
      // Predicated region
      $region41: #{up_block_forward.5} parent=19 // pred_check
        %p414 = pneg %p221
      $region42: #{up_block_forward.5} parent=19 // pred_check_branch
        %416 = sbr.rel (%p414) target = $region44
      $region43: #{up_block_forward.5} parent=19 // pred_region
        %s417 = smul.u32 %s23, 8
        %s418 = sadd.s32 %s417, 8
        %p419 = scmp.lt.s32.totalorder %s418, 15
        %s420 = scalar_select %p419, %s418, 15
        %p421 = scmp.lt.s32.totalorder %s22, 1
        %s422 = scalar_select %p421, %s22, 1
        %p423 = scmp.lt.s32.totalorder %s420, 15
        %s424 = scalar_select %p423, %s420, 15
        %s425 = smul.addr %s424, 2
        %s426 = smul.addr %s422, 32
        %s427 = sadd.s32 %s425, %s426
        %s428 = smul.addr %s427, 4
        %s429 = scalar_lea.vmem %s5, %s428
        %s430 = smul.u32 %s23, 8
        %s431 = sadd.s32 %s430, 8
        %p432 = scmp.lt.s32.totalorder %s431, 15
        %s433 = scalar_select %p432, %s431, 15
      $region44: #{up_block_forward.5} parent=19 // pred_fallthru
        _
    $region20: #{up_block_forward.5} parent=5 // pred_fallthru
      _
    %p434 = scmp.le.s32.totalorder 1, %s15
    %p435 = scmp.lt.s32.totalorder %s15, 5
    %p436 = pnand %p434, %p435
    %p437 = pneg %p436
    // Predicated region
    $region45: #{up_block_forward.5} parent=5 // pred_check
      _
    $region46: #{up_block_forward.5} parent=5 // pred_check_branch
      %439 = sbr.rel (%p436) target = $region48
    $region47: #{up_block_forward.5} parent=5 // pred_region
      %s440 = ssub.s32 %s15, 1
      %s441 = smul.u32 8, %s25
      %p442 = scmp.lt.s32.totalorder %s24, 1
      %s443 = scalar_select %p442, %s24, 1
      %p444 = scmp.lt.s32.totalorder %s441, 15
      %s445 = scalar_select %p444, %s441, 15
      %s446 = smul.addr %s445, 2
      %s447 = smul.addr %s443, 32
      %s448 = sadd.s32 %s446, %s447
      %s449 = smul.addr %s448, 4
      %s450 = scalar_lea.vmem %s0, %s449
      %p451 = pneg %p55
      %p452 = pneg %p52
      %s453 = smul.u32 %s25, 8
      %s454 = ssub.s32 %s453, 1
      %p455 = scmp.gt.s32.totalorder %s454, 0
      %s456 = scalar_select %p455, %s454, 0
      %p457 = scmp.lt.s32.totalorder %s24, 1
      %s458 = scalar_select %p457, %s24, 1
      %p459 = scmp.lt.s32.totalorder %s456, 15
      %s460 = scalar_select %p459, %s456, 15
      %s461 = smul.addr %s460, 2
      %s462 = smul.addr %s458, 32
      %s463 = sadd.s32 %s461, %s462
      %s464 = smul.addr %s463, 4
      %s465 = scalar_lea.vmem %s1, %s464
      %p466 = pneg %p91
      %p467 = pneg %p88
      %s468 = smul.u32 %s25, 8
      %s469 = sadd.s32 %s468, 8
      %p470 = scmp.lt.s32.totalorder %s469, 15
      %s471 = scalar_select %p470, %s469, 15
      %p472 = scmp.lt.s32.totalorder %s24, 1
      %s473 = scalar_select %p472, %s24, 1
      %p474 = scmp.lt.s32.totalorder %s471, 15
      %s475 = scalar_select %p474, %s471, 15
      %s476 = smul.addr %s475, 2
      %s477 = smul.addr %s473, 32
      %s478 = sadd.s32 %s476, %s477
      %s479 = smul.addr %s478, 4
      %s480 = scalar_lea.vmem %s2, %s479
      %p481 = pneg %p127
      %p482 = pneg %p124
      %s483 = smul.u32 8, %s25
      %p484 = scmp.lt.s32.totalorder %s24, 1
      %s485 = scalar_select %p484, %s24, 1
      %p486 = scmp.lt.s32.totalorder %s483, 15
      %s487 = scalar_select %p486, %s483, 15
      %s488 = smul.addr %s487, 2
      %s489 = smul.addr %s485, 32
      %s490 = sadd.s32 %s488, %s489
      %s491 = smul.addr %s490, 4
      %s492 = scalar_lea.vmem %s3, %s491
      %p493 = pneg %p155
      %p494 = pneg %p152
      %s495 = smul.u32 %s25, 8
      %s496 = ssub.s32 %s495, 1
      %p497 = scmp.gt.s32.totalorder %s496, 0
      %s498 = scalar_select %p497, %s496, 0
      %p499 = scmp.lt.s32.totalorder %s24, 1
      %s500 = scalar_select %p499, %s24, 1
      %p501 = scmp.lt.s32.totalorder %s498, 15
      %s502 = scalar_select %p501, %s498, 15
      %s503 = smul.addr %s502, 2
      %s504 = smul.addr %s500, 32
      %s505 = sadd.s32 %s503, %s504
      %s506 = smul.addr %s505, 4
      %s507 = scalar_lea.vmem %s4, %s506
      %p508 = pneg %p191
      %p509 = pneg %p188
      %s510 = smul.u32 %s25, 8
      %s511 = sadd.s32 %s510, 8
      %p512 = scmp.lt.s32.totalorder %s511, 15
      %s513 = scalar_select %p512, %s511, 15
      %p514 = scmp.lt.s32.totalorder %s24, 1
      %s515 = scalar_select %p514, %s24, 1
      %p516 = scmp.lt.s32.totalorder %s513, 15
      %s517 = scalar_select %p516, %s513, 15
      %s518 = smul.addr %s517, 2
      %s519 = smul.addr %s515, 32
      %s520 = sadd.s32 %s518, %s519
      %s521 = smul.addr %s520, 4
      %s522 = scalar_lea.vmem %s5, %s521
      %p523 = pneg %p227
      %p524 = pneg %p224
      %p525 = pneg %p248
      %p526 = pneg %p245
      %p527 = pneg %p276
      %p528 = pneg %p273
      %s529 = smul.u32 8, %s25
      %p530 = scmp.lt.s32.totalorder %s24, 1
      %s531 = scalar_select %p530, %s24, 1
      %p532 = scmp.lt.s32.totalorder %s529, 15
      %s533 = scalar_select %p532, %s529, 15
      %s534 = smul.addr %s533, 2
      %s535 = smul.addr %s531, 32
      %s536 = sadd.s32 %s534, %s535
      %s537 = smul.addr %s536, 4
      %s538 = scalar_lea.vmem %s7, %s537
      %p539 = pneg %p304
      %p540 = pneg %p301
      %p541 = scmp.lt.s32.totalorder %s24, 1
      %s542 = scalar_select %p541, %s24, 1
      %p543 = scmp.lt.s32.totalorder %s25, 1
      %s544 = scalar_select %p543, %s25, 1
      %s545 = smul.addr %s542, 2
      %s546 = sadd.s32 %s544, %s545
      %s547 = smul.addr %s546, 8
      %s548 = scalar_lea.vmem %s8, %s547
      %s549 = smul.u32 8, %s25
      %p550 = scmp.lt.s32.totalorder %s24, 1
      %s551 = scalar_select %p550, %s24, 1
      %p552 = scmp.lt.s32.totalorder %s549, 15
      %s553 = scalar_select %p552, %s549, 15
      %s554 = smul.addr %s553, 2
      %s555 = smul.addr %s551, 32
      %s556 = sadd.s32 %s554, %s555
      %s557 = smul.addr %s556, 4
      %s558 = scalar_lea.vmem %s0, %s557
      %s559 = smul.u32 8, %s25
      %s560 = smul.u32 %s25, 8
      %s561 = ssub.s32 %s560, 1
      %p562 = scmp.gt.s32.totalorder %s561, 0
      %s563 = scalar_select %p562, %s561, 0
      %p564 = scmp.lt.s32.totalorder %s24, 1
      %s565 = scalar_select %p564, %s24, 1
      %p566 = scmp.lt.s32.totalorder %s563, 15
      %s567 = scalar_select %p566, %s563, 15
      %s568 = smul.addr %s567, 2
      %s569 = smul.addr %s565, 32
      %s570 = sadd.s32 %s568, %s569
      %s571 = smul.addr %s570, 4
      %s572 = scalar_lea.vmem %s1, %s571
      %s573 = smul.u32 %s25, 8
      %s574 = ssub.s32 %s573, 1
      %p575 = scmp.gt.s32.totalorder %s574, 0
      %s576 = scalar_select %p575, %s574, 0
      %s577 = smul.u32 %s25, 8
      %s578 = sadd.s32 %s577, 8
      %p579 = scmp.lt.s32.totalorder %s578, 15
      %s580 = scalar_select %p579, %s578, 15
      %p581 = scmp.lt.s32.totalorder %s24, 1
      %s582 = scalar_select %p581, %s24, 1
      %p583 = scmp.lt.s32.totalorder %s580, 15
      %s584 = scalar_select %p583, %s580, 15
      %s585 = smul.addr %s584, 2
      %s586 = smul.addr %s582, 32
      %s587 = sadd.s32 %s585, %s586
      %s588 = smul.addr %s587, 4
      %s589 = scalar_lea.vmem %s2, %s588
      %s590 = smul.u32 %s25, 8
      %s591 = sadd.s32 %s590, 8
      %p592 = scmp.lt.s32.totalorder %s591, 15
      %s593 = scalar_select %p592, %s591, 15
      %s594 = smul.u32 8, %s25
      %p595 = scmp.lt.s32.totalorder %s24, 1
      %s596 = scalar_select %p595, %s24, 1
      %p597 = scmp.lt.s32.totalorder %s594, 15
      %s598 = scalar_select %p597, %s594, 15
      %s599 = smul.addr %s598, 2
      %s600 = smul.addr %s596, 32
      %s601 = sadd.s32 %s599, %s600
      %s602 = smul.addr %s601, 4
      %s603 = scalar_lea.vmem %s3, %s602
      %s604 = smul.u32 8, %s25
      %s605 = smul.u32 %s25, 8
      %s606 = ssub.s32 %s605, 1
      %p607 = scmp.gt.s32.totalorder %s606, 0
      %s608 = scalar_select %p607, %s606, 0
      %p609 = scmp.lt.s32.totalorder %s24, 1
      %s610 = scalar_select %p609, %s24, 1
      %p611 = scmp.lt.s32.totalorder %s608, 15
      %s612 = scalar_select %p611, %s608, 15
      %s613 = smul.addr %s612, 2
      %s614 = smul.addr %s610, 32
      %s615 = sadd.s32 %s613, %s614
      %s616 = smul.addr %s615, 4
      %s617 = scalar_lea.vmem %s4, %s616
      %s618 = smul.u32 %s25, 8
      %s619 = ssub.s32 %s618, 1
      %p620 = scmp.gt.s32.totalorder %s619, 0
      %s621 = scalar_select %p620, %s619, 0
      %s622 = smul.u32 %s25, 8
      %s623 = sadd.s32 %s622, 8
      %p624 = scmp.lt.s32.totalorder %s623, 15
      %s625 = scalar_select %p624, %s623, 15
      %p626 = scmp.lt.s32.totalorder %s24, 1
      %s627 = scalar_select %p626, %s24, 1
      %p628 = scmp.lt.s32.totalorder %s625, 15
      %s629 = scalar_select %p628, %s625, 15
      %s630 = smul.addr %s629, 2
      %s631 = smul.addr %s627, 32
      %s632 = sadd.s32 %s630, %s631
      %s633 = smul.addr %s632, 4
      %s634 = scalar_lea.vmem %s5, %s633
      %s635 = smul.u32 %s25, 8
      %s636 = sadd.s32 %s635, 8
      %p637 = scmp.lt.s32.totalorder %s636, 15
      %s638 = scalar_select %p637, %s636, 15
      %s639 = smul.u32 8, %s25
      %p640 = scmp.lt.s32.totalorder %s24, 1
      %s641 = scalar_select %p640, %s24, 1
      %p642 = scmp.lt.s32.totalorder %s639, 15
      %s643 = scalar_select %p642, %s639, 15
      %s644 = smul.addr %s643, 2
      %s645 = smul.addr %s641, 32
      %s646 = sadd.s32 %s644, %s645
      %s647 = smul.addr %s646, 4
      %s648 = scalar_lea.vmem %s7, %s647
      %s649 = smul.u32 8, %s25
      %p650 = scmp.lt.s32.totalorder %s24, 1
      %s651 = scalar_select %p650, %s24, 1
      %p652 = scmp.lt.s32.totalorder %s25, 1
      %s653 = scalar_select %p652, %s25, 1
      %s654 = smul.addr %s651, 2
      %s655 = sadd.s32 %s653, %s654
      %s656 = smul.addr %s655, 8
      %s657 = scalar_lea.vmem %s8, %s656
      %p659 = scmp.gt.s32.totalorder %s25, 0
      %s660 = scalar_select %p659, 1, 0
      %s661 = scvt.s32.f32 %s660
      %p663 = scmp.ne.f32.partialorder %s661, %s661
      %s664 = sshrl.u32 %s661, 16
      %s665 = sand.u32 %s664, 1
      %s666 = sadd.s32 32767, %s665
      %s667 = sadd.s32 %s661, %s666
      %s668 = sand.u32 %s667, 4294901760
      %s669 = scalar_select %p663, 2143289344, %s668
      %s671 = sshrl.u32 %s669, 16
      %p672 = scmp.lt.s32.totalorder %s25, 1
      %s673 = scalar_select %p672, 1, 0
      %s674 = scvt.s32.f32 %s673
      %p676 = scmp.ne.f32.partialorder %s674, %s674
      %s677 = sshrl.u32 %s674, 16
      %s678 = sand.u32 %s677, 1
      %s679 = sadd.s32 32767, %s678
      %s680 = sadd.s32 %s674, %s679
      %s681 = sand.u32 %s680, 4294901760
      %s682 = scalar_select %p676, 2143289344, %s681
      %s684 = sshrl.u32 %s682, 16
      %v685 = vld [vmem:[%s558] sm:$0xf]
      %v686 = vld [vmem:[%s558 + $0x4] sm:$0xf]
      %v687 = vld [vmem:[%s558 + $0x8] sm:$0xf]
      %v688 = vld [vmem:[%s558 + $0xc] sm:$0xf]
      %v689 = vld [vmem:[%s558 + $0x10] sm:$0xf]
      %v690 = vld [vmem:[%s558 + $0x14] sm:$0xf]
      %v691 = vld [vmem:[%s558 + $0x18] sm:$0xf]
      %v692 = vld [vmem:[%s558 + $0x1c] sm:$0xf]
      %v693 = vld [vmem:[%s558 + $0x20] sm:$0xf]
      %v694 = vld [vmem:[%s558 + $0x24] sm:$0xf]
      %v695 = vld [vmem:[%s558 + $0x28] sm:$0xf]
      %v696 = vld [vmem:[%s558 + $0x2c] sm:$0xf]
      %v697 = vld [vmem:[%s558 + $0x30] sm:$0xf]
      %v698 = vld [vmem:[%s558 + $0x34] sm:$0xf]
      %v699 = vld [vmem:[%s558 + $0x38] sm:$0xf]
      %v700 = vld [vmem:[%s558 + $0x3c] sm:$0xf]
      %v701 = vld [vmem:[%s572] sm:$0xf]
      %v702 = vld [vmem:[%s572 + $0x4] sm:$0xf]
      %s703 = sshll.u32 %s671, 16
      %s704 = sor.u32 %s671, %s703
      %v705 = vstv %s704
      %v707 = vmul.bf16 %v701, %v705
      %v708 = vmul.bf16 %v702, %v705
      %v709 = vld [vmem:[%s589] sm:$0xf]
      %v710 = vld [vmem:[%s589 + $0x4] sm:$0xf]
      %s711 = sshll.u32 %s684, 16
      %s712 = sor.u32 %s684, %s711
      %v713 = vstv %s712
      %v715 = vmul.bf16 %v709, %v713
      %v716 = vmul.bf16 %v710, %v713
      %v717 = vld [vmem:[%s603] sm:$0xf]
      %v718 = vld [vmem:[%s603 + $0x4] sm:$0xf]
      %v719 = vld [vmem:[%s603 + $0x8] sm:$0xf]
      %v720 = vld [vmem:[%s603 + $0xc] sm:$0xf]
      %v721 = vld [vmem:[%s603 + $0x10] sm:$0xf]
      %v722 = vld [vmem:[%s603 + $0x14] sm:$0xf]
      %v723 = vld [vmem:[%s603 + $0x18] sm:$0xf]
      %v724 = vld [vmem:[%s603 + $0x1c] sm:$0xf]
      %v725 = vld [vmem:[%s603 + $0x20] sm:$0xf]
      %v726 = vld [vmem:[%s603 + $0x24] sm:$0xf]
      %v727 = vld [vmem:[%s603 + $0x28] sm:$0xf]
      %v728 = vld [vmem:[%s603 + $0x2c] sm:$0xf]
      %v729 = vld [vmem:[%s603 + $0x30] sm:$0xf]
      %v730 = vld [vmem:[%s603 + $0x34] sm:$0xf]
      %v731 = vld [vmem:[%s603 + $0x38] sm:$0xf]
      %v732 = vld [vmem:[%s603 + $0x3c] sm:$0xf]
      %v733 = vld [vmem:[%s617] sm:$0xf]
      %v734 = vld [vmem:[%s617 + $0x4] sm:$0xf]
      %v735 = vmul.bf16 %v733, %v705
      %v736 = vmul.bf16 %v734, %v705
      %v737 = vld [vmem:[%s634] sm:$0xf]
      %v738 = vld [vmem:[%s634 + $0x4] sm:$0xf]
      %v739 = vmul.bf16 %v737, %v713
      %v740 = vmul.bf16 %v738, %v713
      %v761 = vunpack.c.l.b16 %v707
      %v762 = vunpack.c.l.b16 %v708
      %v763 = vunpack.c.l.b16 %v685
      %v764 = vunpack.c.l.b16 %v686
      %v765 = vunpack.c.l.b16 %v687
      %v766 = vunpack.c.l.b16 %v688
      %v767 = vunpack.c.l.b16 %v689
      %v768 = vunpack.c.l.b16 %v690
      %v769 = vunpack.c.l.b16 %v691
      %v770 = vunpack.c.l.b16 %v692
      %v771 = vunpack.c.l.b16 %v693
      %v772 = vunpack.c.l.b16 %v694
      %v773 = vunpack.c.l.b16 %v695
      %v774 = vunpack.c.l.b16 %v696
      %v775 = vunpack.c.l.b16 %v697
      %v776 = vunpack.c.l.b16 %v698
      %v777 = vunpack.c.l.b16 %v699
      %v778 = vunpack.c.l.b16 %v700
      %v779 = vunpack.c.l.b16 %v715
      %v780 = vunpack.c.l.b16 %v716
      %v781 = vpack.c.b16 %v762, %v761
      %v782 = vpack.c.b16 %v764, %v763
      %v783 = vpack.c.b16 %v766, %v765
      %v784 = vpack.c.b16 %v768, %v767
      %v785 = vpack.c.b16 %v770, %v769
      %v786 = vpack.c.b16 %v772, %v771
      %v787 = vpack.c.b16 %v774, %v773
      %v788 = vpack.c.b16 %v776, %v775
      %v789 = vpack.c.b16 %v778, %v777
      %v790 = vpack.c.b16 %v780, %v779
      %v811 = vunpack.c.l.b16 %v735
      %v812 = vunpack.c.l.b16 %v736
      %v813 = vunpack.c.l.b16 %v717
      %v814 = vunpack.c.l.b16 %v718
      %v815 = vunpack.c.l.b16 %v719
      %v816 = vunpack.c.l.b16 %v720
      %v817 = vunpack.c.l.b16 %v721
      %v818 = vunpack.c.l.b16 %v722
      %v819 = vunpack.c.l.b16 %v723
      %v820 = vunpack.c.l.b16 %v724
      %v821 = vunpack.c.l.b16 %v725
      %v822 = vunpack.c.l.b16 %v726
      %v823 = vunpack.c.l.b16 %v727
      %v824 = vunpack.c.l.b16 %v728
      %v825 = vunpack.c.l.b16 %v729
      %v826 = vunpack.c.l.b16 %v730
      %v827 = vunpack.c.l.b16 %v731
      %v828 = vunpack.c.l.b16 %v732
      %v829 = vunpack.c.l.b16 %v739
      %v830 = vunpack.c.l.b16 %v740
      %v831 = vpack.c.b16 %v812, %v811
      %v832 = vpack.c.b16 %v814, %v813
      %v833 = vpack.c.b16 %v816, %v815
      %v834 = vpack.c.b16 %v818, %v817
      %v835 = vpack.c.b16 %v820, %v819
      %v836 = vpack.c.b16 %v822, %v821
      %v837 = vpack.c.b16 %v824, %v823
      %v838 = vpack.c.b16 %v826, %v825
      %v839 = vpack.c.b16 %v828, %v827
      %v840 = vpack.c.b16 %v830, %v829
      %841 = vrot.lane.b32.xlu0 %v831, 4
      %v842 = vpop.permute.xlu0 %841
      %843 = vrot.lane.b32.xlu0 %v832, 4
      %v844 = vpop.permute.xlu0 %843
      %845 = vrot.lane.b32.xlu0 %v833, 4
      %v846 = vpop.permute.xlu0 %845
      %847 = vrot.lane.b32.xlu0 %v834, 4
      %v848 = vpop.permute.xlu0 %847
      %849 = vrot.lane.b32.xlu0 %v835, 4
      %v850 = vpop.permute.xlu0 %849
      %851 = vrot.lane.b32.xlu0 %v836, 4
      %v852 = vpop.permute.xlu0 %851
      %853 = vrot.lane.b32.xlu0 %v837, 4
      %v854 = vpop.permute.xlu0 %853
      %855 = vrot.lane.b32.xlu0 %v838, 4
      %v856 = vpop.permute.xlu0 %855
      %857 = vrot.lane.b32.xlu0 %v839, 4
      %v858 = vpop.permute.xlu0 %857
      %859 = vrot.lane.b32.xlu0 %v840, 4
      %v860 = vpop.permute.xlu0 %859
      %vm861 = vcmask 31744
      %v864 = vsel %vm861, %v781, %v842
      %v867 = vsel %vm861, %v782, %v844
      %v870 = vsel %vm861, %v783, %v846
      %v873 = vsel %vm861, %v784, %v848
      %v876 = vsel %vm861, %v785, %v850
      %v879 = vsel %vm861, %v786, %v852
      %v882 = vsel %vm861, %v787, %v854
      %v885 = vsel %vm861, %v788, %v856
      %v888 = vsel %vm861, %v789, %v858
      %v891 = vsel %vm861, %v790, %v860
      %v892 = vshrl.u32 %v864, 16
      %v894 = vrot.slane %v892, 7
      %v895 = vshll.u32 %v864, 16
      %v897 = vor.u32 %v894, %v895
      %v898 = vshrl.u32 %v867, 16
      %v900 = vrot.slane %v898, 7
      %v901 = vshll.u32 %v867, 16
      %v903 = vor.u32 %v900, %v901
      %v904 = vshrl.u32 %v870, 16
      %v906 = vrot.slane %v904, 7
      %v907 = vshll.u32 %v870, 16
      %v909 = vor.u32 %v906, %v907
      %v910 = vshrl.u32 %v873, 16
      %v912 = vrot.slane %v910, 7
      %v913 = vshll.u32 %v873, 16
      %v915 = vor.u32 %v912, %v913
      %v916 = vshrl.u32 %v876, 16
      %v918 = vrot.slane %v916, 7
      %v919 = vshll.u32 %v876, 16
      %v921 = vor.u32 %v918, %v919
      %v922 = vshrl.u32 %v879, 16
      %v924 = vrot.slane %v922, 7
      %v925 = vshll.u32 %v879, 16
      %v927 = vor.u32 %v924, %v925
      %v928 = vshrl.u32 %v882, 16
      %v930 = vrot.slane %v928, 7
      %v931 = vshll.u32 %v882, 16
      %v933 = vor.u32 %v930, %v931
      %v934 = vshrl.u32 %v885, 16
      %v936 = vrot.slane %v934, 7
      %v937 = vshll.u32 %v885, 16
      %v939 = vor.u32 %v936, %v937
      %v940 = vshrl.u32 %v888, 16
      %v942 = vrot.slane %v940, 7
      %v943 = vshll.u32 %v888, 16
      %v945 = vor.u32 %v942, %v943
      %v946 = vshrl.u32 %v891, 16
      %v948 = vrot.slane %v946, 7
      %v949 = vshll.u32 %v891, 16
      %v951 = vor.u32 %v948, %v949
      %vm972 = vcmask 1040384
      %vm973 = vsmask.f32 256
      %vm974 = vmand %vm972, %vm973
      %v975 = vsel %vm974, 0, %v897
      %v976 = vsel %vm974, 0, %v903
      %v977 = vsel %vm974, 0, %v909
      %v978 = vsel %vm974, 0, %v915
      %v979 = vsel %vm974, 0, %v921
      %v980 = vsel %vm974, 0, %v927
      %v981 = vsel %vm974, 0, %v933
      %v982 = vsel %vm974, 0, %v939
      %v983 = vsel %vm974, 0, %v945
      %v984 = vsel %vm974, 0, %v951
      %v985 = vsel %vm974, %v894, 0
      %v986 = vsel %vm974, %v900, 0
      %v987 = vsel %vm974, %v906, 0
      %v988 = vsel %vm974, %v912, 0
      %v989 = vsel %vm974, %v918, 0
      %v990 = vsel %vm974, %v924, 0
      %v991 = vsel %vm974, %v930, 0
      %v992 = vsel %vm974, %v936, 0
      %v993 = vsel %vm974, %v942, 0
      %v994 = vsel %vm974, %v948, 0
      %v995 = vld [vmem:[%s6] sm:$0xf]
      %s996 = scalar_lea.vmem %s6, 12
      %v997 = vld [vmem:[%s996] sm:$0xf]
      %vm998 = vcmask 64512
      %v1000 = vsel %vm998, %v976, 0
      %v1003 = vsel %vm998, %v977, 0
      %v1006 = vsel %vm998, %v978, 0
      %v1009 = vsel %vm998, %v979, 0
      %v1012 = vsel %vm998, %v980, 0
      %v1015 = vsel %vm998, %v981, 0
      %v1018 = vsel %vm998, %v982, 0
      %v1021 = vsel %vm998, %v983, 0
      %vm1023 = vcmask 1043456
      %v1025 = vsel %vm1023, %v997, 0
      %1027 = vmatprep.subr.bf16.mxu0 0
      %1028 = vmatpush1.bf16.msra.mxu0 0
      %1029 = vmatprep.subr.bf16.mxu0 0
      %1030 = vmatpush1.bf16.msra.mxu0 0
      %1031 = vmatprep.subr.bf16.mxu0 0
      %1032 = vmatpush1.bf16.msra.mxu0 0
      %1033 = vmatprep.subr.bf16.mxu0 0
      %1034 = vmatpush1.bf16.msra.mxu0 0
      %1035 = vmatprep.subr.bf16.mxu0 0
      %1036 = vmatpush1.bf16.msra.mxu0 0
      %1037 = vmatprep.subr.bf16.mxu0 0
      %1038 = vmatpush1.bf16.msra.mxu0 0
      %1039 = vmatprep.subr.bf16.mxu0 0
      %1040 = vmatpush1.bf16.msra.mxu0 0
      %1041 = vmatprep.subr.bf16.mxu0 0
      %1042 = vmatpush1.bf16.msra.mxu0 %v1025
      %1043 = vmatprep.subr.bf16.mxu0 0
      %1044 = vmatpush2.bf16.msra.mxu0 0
      %1045 = vmatprep.subr.bf16.mxu0 0
      %1046 = vmatpush2.bf16.msra.mxu0 0
      %1047 = vmatprep.subr.bf16.mxu0 0
      %1048 = vmatpush2.bf16.msra.mxu0 0
      %1049 = vmatprep.subr.bf16.mxu0 0
      %1050 = vmatpush2.bf16.msra.mxu0 0
      %1051 = vmatprep.subr.bf16.mxu0 0
      %1052 = vmatpush2.bf16.msra.mxu0 0
      %1053 = vmatprep.subr.bf16.mxu0 0
      %1054 = vmatpush2.bf16.msra.mxu0 0
      %1055 = vmatprep.subr.bf16.mxu0 0
      %1056 = vmatpush2.bf16.msra.mxu0 0
      %1057 = vmatprep.subr.bf16.mxu0 0
      %1058 = vmatpush2.bf16.msra.mxu0 0
      %1059 = vmatprep.mubr.bf16.mxu0 0
      %1060 = vmatmul.mubr.bf16.gmra.mxu0 %v1000
      %v1061 = vpop.f32.mrf.mxu0
      %v1062 = vadd.f32 0.0, %v1061
      %v1063 = vpop.f32.mrf.mxu0
      %v1064 = vpop.f32.mrf.mxu0
      %v1065 = vadd.f32 0.0, %v1064
      %v1066 = vpop.f32.mrf.mxu0
      %1067 = vmatprep.mubr.bf16.mxu0 0
      %1068 = vmatmul.mubr.bf16.gmra.mxu0 %v1003
      %v1069 = vpop.f32.mrf.mxu0
      %v1070 = vadd.f32 0.0, %v1069
      %v1071 = vpop.f32.mrf.mxu0
      %v1072 = vpop.f32.mrf.mxu0
      %v1073 = vadd.f32 0.0, %v1072
      %v1074 = vpop.f32.mrf.mxu0
      %1075 = vmatprep.mubr.bf16.mxu0 0
      %1076 = vmatmul.mubr.bf16.gmra.mxu0 %v1006
      %v1077 = vpop.f32.mrf.mxu0
      %v1078 = vadd.f32 0.0, %v1077
      %v1079 = vpop.f32.mrf.mxu0
      %v1080 = vpop.f32.mrf.mxu0
      %v1081 = vadd.f32 0.0, %v1080
      %v1082 = vpop.f32.mrf.mxu0
      %1083 = vmatprep.mubr.bf16.mxu0 0
      %1084 = vmatmul.mubr.bf16.gmra.mxu0 %v1009
      %v1085 = vpop.f32.mrf.mxu0
      %v1086 = vadd.f32 0.0, %v1085
      %v1087 = vpop.f32.mrf.mxu0
      %v1088 = vpop.f32.mrf.mxu0
      %v1089 = vadd.f32 0.0, %v1088
      %v1090 = vpop.f32.mrf.mxu0
      %1091 = vmatprep.mubr.bf16.mxu0 0
      %1092 = vmatmul.mubr.bf16.gmra.mxu0 %v1012
      %v1093 = vpop.f32.mrf.mxu0
      %v1094 = vadd.f32 0.0, %v1093
      %v1095 = vpop.f32.mrf.mxu0
      %v1096 = vpop.f32.mrf.mxu0
      %v1097 = vadd.f32 0.0, %v1096
      %v1098 = vpop.f32.mrf.mxu0
      %1099 = vmatprep.mubr.bf16.mxu0 0
      %1100 = vmatmul.mubr.bf16.gmra.mxu0 %v1015
      %v1101 = vpop.f32.mrf.mxu0
      %v1102 = vadd.f32 0.0, %v1101
      %v1103 = vpop.f32.mrf.mxu0
      %v1104 = vpop.f32.mrf.mxu0
      %v1105 = vadd.f32 0.0, %v1104
      %v1106 = vpop.f32.mrf.mxu0
      %1107 = vmatprep.mubr.bf16.mxu0 0
      %1108 = vmatmul.mubr.bf16.gmra.mxu0 %v1018
      %v1109 = vpop.f32.mrf.mxu0
      %v1110 = vadd.f32 0.0, %v1109
      %v1111 = vpop.f32.mrf.mxu0
      %v1112 = vpop.f32.mrf.mxu0
      %v1113 = vadd.f32 0.0, %v1112
      %v1114 = vpop.f32.mrf.mxu0
      %1115 = vmatprep.mubr.bf16.mxu0 0
      %1116 = vmatmul.mubr.bf16.gmra.mxu0 %v1021
      %v1117 = vpop.f32.mrf.mxu0
      %v1118 = vadd.f32 0.0, %v1117
      %v1119 = vpop.f32.mrf.mxu0
      %v1120 = vpop.f32.mrf.mxu0
      %v1121 = vadd.f32 0.0, %v1120
      %v1122 = vpop.f32.mrf.mxu0
      %1123 = vdwg.mxu0
      %v1125 = vsel %vm998, %v975, 0
      %v1128 = vsel %vm1023, %v995, 0
      %1130 = vmatprep.subr.bf16.mxu0 0
      %1131 = vmatpush1.bf16.msra.mxu0 0
      %1132 = vmatprep.subr.bf16.mxu0 0
      %1133 = vmatpush1.bf16.msra.mxu0 0
      %1134 = vmatprep.subr.bf16.mxu0 0
      %1135 = vmatpush1.bf16.msra.mxu0 0
      %1136 = vmatprep.subr.bf16.mxu0 0
      %1137 = vmatpush1.bf16.msra.mxu0 0
      %1138 = vmatprep.subr.bf16.mxu0 0
      %1139 = vmatpush1.bf16.msra.mxu0 0
      %1140 = vmatprep.subr.bf16.mxu0 0
      %1141 = vmatpush1.bf16.msra.mxu0 0
      %1142 = vmatprep.subr.bf16.mxu0 0
      %1143 = vmatpush1.bf16.msra.mxu0 0
      %1144 = vmatprep.subr.bf16.mxu0 0
      %1145 = vmatpush1.bf16.msra.mxu0 %v1128
      %1146 = vmatprep.subr.bf16.mxu0 0
      %1147 = vmatpush2.bf16.msra.mxu0 0
      %1148 = vmatprep.subr.bf16.mxu0 0
      %1149 = vmatpush2.bf16.msra.mxu0 0
      %1150 = vmatprep.subr.bf16.mxu0 0
      %1151 = vmatpush2.bf16.msra.mxu0 0
      %1152 = vmatprep.subr.bf16.mxu0 0
      %1153 = vmatpush2.bf16.msra.mxu0 0
      %1154 = vmatprep.subr.bf16.mxu0 0
      %1155 = vmatpush2.bf16.msra.mxu0 0
      %1156 = vmatprep.subr.bf16.mxu0 0
      %1157 = vmatpush2.bf16.msra.mxu0 0
      %1158 = vmatprep.subr.bf16.mxu0 0
      %1159 = vmatpush2.bf16.msra.mxu0 0
      %1160 = vmatprep.subr.bf16.mxu0 0
      %1161 = vmatpush2.bf16.msra.mxu0 0
      %1162 = vmatprep.mubr.bf16.mxu0 0
      %1163 = vmatmul.mubr.bf16.gmra.mxu0 %v1125
      %v1164 = vpop.f32.mrf.mxu0
      %v1165 = vadd.f32 %v1062, %v1164
      %v1166 = vpop.f32.mrf.mxu0
      %v1167 = vpop.f32.mrf.mxu0
      %v1168 = vadd.f32 %v1065, %v1167
      %v1169 = vpop.f32.mrf.mxu0
      %1170 = vmatprep.mubr.bf16.mxu0 0
      %1171 = vmatmul.mubr.bf16.gmra.mxu0 %v1000
      %v1172 = vpop.f32.mrf.mxu0
      %v1173 = vadd.f32 %v1070, %v1172
      %v1174 = vpop.f32.mrf.mxu0
      %v1175 = vpop.f32.mrf.mxu0
      %v1176 = vadd.f32 %v1073, %v1175
      %v1177 = vpop.f32.mrf.mxu0
      %1178 = vmatprep.mubr.bf16.mxu0 0
      %1179 = vmatmul.mubr.bf16.gmra.mxu0 %v1003
      %v1180 = vpop.f32.mrf.mxu0
      %v1181 = vadd.f32 %v1078, %v1180
      %v1182 = vpop.f32.mrf.mxu0
      %v1183 = vpop.f32.mrf.mxu0
      %v1184 = vadd.f32 %v1081, %v1183
      %v1185 = vpop.f32.mrf.mxu0
      %1186 = vmatprep.mubr.bf16.mxu0 0
      %1187 = vmatmul.mubr.bf16.gmra.mxu0 %v1006
      %v1188 = vpop.f32.mrf.mxu0
      %v1189 = vadd.f32 %v1086, %v1188
      %v1190 = vpop.f32.mrf.mxu0
      %v1191 = vpop.f32.mrf.mxu0
      %v1192 = vadd.f32 %v1089, %v1191
      %v1193 = vpop.f32.mrf.mxu0
      %1194 = vmatprep.mubr.bf16.mxu0 0
      %1195 = vmatmul.mubr.bf16.gmra.mxu0 %v1009
      %v1196 = vpop.f32.mrf.mxu0
      %v1197 = vadd.f32 %v1094, %v1196
      %v1198 = vpop.f32.mrf.mxu0
      %v1199 = vpop.f32.mrf.mxu0
      %v1200 = vadd.f32 %v1097, %v1199
      %v1201 = vpop.f32.mrf.mxu0
      %1202 = vmatprep.mubr.bf16.mxu0 0
      %1203 = vmatmul.mubr.bf16.gmra.mxu0 %v1012
      %v1204 = vpop.f32.mrf.mxu0
      %v1205 = vadd.f32 %v1102, %v1204
      %v1206 = vpop.f32.mrf.mxu0
      %v1207 = vpop.f32.mrf.mxu0
      %v1208 = vadd.f32 %v1105, %v1207
      %v1209 = vpop.f32.mrf.mxu0
      %1210 = vmatprep.mubr.bf16.mxu0 0
      %1211 = vmatmul.mubr.bf16.gmra.mxu0 %v1015
      %v1212 = vpop.f32.mrf.mxu0
      %v1213 = vadd.f32 %v1110, %v1212
      %v1214 = vpop.f32.mrf.mxu0
      %v1215 = vpop.f32.mrf.mxu0
      %v1216 = vadd.f32 %v1113, %v1215
      %v1217 = vpop.f32.mrf.mxu0
      %1218 = vmatprep.mubr.bf16.mxu0 0
      %1219 = vmatmul.mubr.bf16.gmra.mxu0 %v1018
      %v1220 = vpop.f32.mrf.mxu0
      %v1221 = vadd.f32 %v1118, %v1220
      %v1222 = vpop.f32.mrf.mxu0
      %v1223 = vpop.f32.mrf.mxu0
      %v1224 = vadd.f32 %v1121, %v1223
      %v1225 = vpop.f32.mrf.mxu0
      %1226 = vdwg.mxu0
      %s1227 = scalar_lea.vmem %s6, 24
      %v1228 = vld [vmem:[%s1227] sm:$0xf]
      %v1230 = vsel %vm998, %v984, 0
      %v1233 = vsel %vm1023, %v1228, 0
      %1235 = vmatprep.subr.bf16.mxu0 0
      %1236 = vmatpush1.bf16.msra.mxu0 0
      %1237 = vmatprep.subr.bf16.mxu0 0
      %1238 = vmatpush1.bf16.msra.mxu0 0
      %1239 = vmatprep.subr.bf16.mxu0 0
      %1240 = vmatpush1.bf16.msra.mxu0 0
      %1241 = vmatprep.subr.bf16.mxu0 0
      %1242 = vmatpush1.bf16.msra.mxu0 0
      %1243 = vmatprep.subr.bf16.mxu0 0
      %1244 = vmatpush1.bf16.msra.mxu0 0
      %1245 = vmatprep.subr.bf16.mxu0 0
      %1246 = vmatpush1.bf16.msra.mxu0 0
      %1247 = vmatprep.subr.bf16.mxu0 0
      %1248 = vmatpush1.bf16.msra.mxu0 0
      %1249 = vmatprep.subr.bf16.mxu0 0
      %1250 = vmatpush1.bf16.msra.mxu0 %v1233
      %1251 = vmatprep.subr.bf16.mxu0 0
      %1252 = vmatpush2.bf16.msra.mxu0 0
      %1253 = vmatprep.subr.bf16.mxu0 0
      %1254 = vmatpush2.bf16.msra.mxu0 0
      %1255 = vmatprep.subr.bf16.mxu0 0
      %1256 = vmatpush2.bf16.msra.mxu0 0
      %1257 = vmatprep.subr.bf16.mxu0 0
      %1258 = vmatpush2.bf16.msra.mxu0 0
      %1259 = vmatprep.subr.bf16.mxu0 0
      %1260 = vmatpush2.bf16.msra.mxu0 0
      %1261 = vmatprep.subr.bf16.mxu0 0
      %1262 = vmatpush2.bf16.msra.mxu0 0
      %1263 = vmatprep.subr.bf16.mxu0 0
      %1264 = vmatpush2.bf16.msra.mxu0 0
      %1265 = vmatprep.subr.bf16.mxu0 0
      %1266 = vmatpush2.bf16.msra.mxu0 0
      %1267 = vmatprep.mubr.bf16.mxu0 0
      %1268 = vmatmul.mubr.bf16.gmra.mxu0 %v1003
      %v1269 = vpop.f32.mrf.mxu0
      %v1270 = vadd.f32 0.0, %v1269
      %v1271 = vpop.f32.mrf.mxu0
      %v1272 = vpop.f32.mrf.mxu0
      %v1273 = vadd.f32 0.0, %v1272
      %v1274 = vpop.f32.mrf.mxu0
      %1275 = vmatprep.mubr.bf16.mxu0 0
      %1276 = vmatmul.mubr.bf16.gmra.mxu0 %v1006
      %v1277 = vpop.f32.mrf.mxu0
      %v1278 = vadd.f32 0.0, %v1277
      %v1279 = vpop.f32.mrf.mxu0
      %v1280 = vpop.f32.mrf.mxu0
      %v1281 = vadd.f32 0.0, %v1280
      %v1282 = vpop.f32.mrf.mxu0
      %1283 = vmatprep.mubr.bf16.mxu0 0
      %1284 = vmatmul.mubr.bf16.gmra.mxu0 %v1009
      %v1285 = vpop.f32.mrf.mxu0
      %v1286 = vadd.f32 0.0, %v1285
      %v1287 = vpop.f32.mrf.mxu0
      %v1288 = vpop.f32.mrf.mxu0
      %v1289 = vadd.f32 0.0, %v1288
      %v1290 = vpop.f32.mrf.mxu0
      %1291 = vmatprep.mubr.bf16.mxu0 0
      %1292 = vmatmul.mubr.bf16.gmra.mxu0 %v1012
      %v1293 = vpop.f32.mrf.mxu0
      %v1294 = vadd.f32 0.0, %v1293
      %v1295 = vpop.f32.mrf.mxu0
      %v1296 = vpop.f32.mrf.mxu0
      %v1297 = vadd.f32 0.0, %v1296
      %v1298 = vpop.f32.mrf.mxu0
      %1299 = vmatprep.mubr.bf16.mxu0 0
      %1300 = vmatmul.mubr.bf16.gmra.mxu0 %v1015
      %v1301 = vpop.f32.mrf.mxu0
      %v1302 = vadd.f32 0.0, %v1301
      %v1303 = vpop.f32.mrf.mxu0
      %v1304 = vpop.f32.mrf.mxu0
      %v1305 = vadd.f32 0.0, %v1304
      %v1306 = vpop.f32.mrf.mxu0
      %1307 = vmatprep.mubr.bf16.mxu0 0
      %1308 = vmatmul.mubr.bf16.gmra.mxu0 %v1018
      %v1309 = vpop.f32.mrf.mxu0
      %v1310 = vadd.f32 0.0, %v1309
      %v1311 = vpop.f32.mrf.mxu0
      %v1312 = vpop.f32.mrf.mxu0
      %v1313 = vadd.f32 0.0, %v1312
      %v1314 = vpop.f32.mrf.mxu0
      %1315 = vmatprep.mubr.bf16.mxu0 0
      %1316 = vmatmul.mubr.bf16.gmra.mxu0 %v1021
      %v1317 = vpop.f32.mrf.mxu0
      %v1318 = vadd.f32 0.0, %v1317
      %v1319 = vpop.f32.mrf.mxu0
      %v1320 = vpop.f32.mrf.mxu0
      %v1321 = vadd.f32 0.0, %v1320
      %v1322 = vpop.f32.mrf.mxu0
      %1323 = vmatprep.mubr.bf16.mxu0 0
      %1324 = vmatmul.mubr.bf16.gmra.mxu0 %v1230
      %v1325 = vpop.f32.mrf.mxu0
      %v1326 = vadd.f32 0.0, %v1325
      %v1327 = vpop.f32.mrf.mxu0
      %v1328 = vpop.f32.mrf.mxu0
      %v1329 = vadd.f32 0.0, %v1328
      %v1330 = vpop.f32.mrf.mxu0
      %1331 = vdwg.mxu0
      %v1332 = vadd.f32 %v1165, %v1270
      %v1333 = vadd.f32 %v1168, %v1273
      %v1334 = vadd.f32 %v1173, %v1278
      %v1335 = vadd.f32 %v1176, %v1281
      %v1336 = vadd.f32 %v1181, %v1286
      %v1337 = vadd.f32 %v1184, %v1289
      %v1338 = vadd.f32 %v1189, %v1294
      %v1339 = vadd.f32 %v1192, %v1297
      %v1340 = vadd.f32 %v1197, %v1302
      %v1341 = vadd.f32 %v1200, %v1305
      %v1342 = vadd.f32 %v1205, %v1310
      %v1343 = vadd.f32 %v1208, %v1313
      %v1344 = vadd.f32 %v1213, %v1318
      %v1345 = vadd.f32 %v1216, %v1321
      %v1346 = vadd.f32 %v1221, %v1326
      %v1347 = vadd.f32 %v1224, %v1329
      %vm1348 = vsmask.f32 7424
      %v1349 = vshrl.u32 %v975, 16
      %v1351 = vshll.u32 %v975, 16
      %v1353 = vrot.slane %v1351, 1
      %v1354 = vor.u32 %v1349, %v1353
      %v1356 = vshll.u32 %v985, 16
      %v1358 = vrot.slane %v1356, 1
      %v1359 = vsel %vm1348, %v1354, %v1358
      %v1360 = vshrl.u32 %v976, 16
      %v1362 = vshll.u32 %v976, 16
      %v1364 = vrot.slane %v1362, 1
      %v1365 = vor.u32 %v1360, %v1364
      %v1367 = vshll.u32 %v986, 16
      %v1369 = vrot.slane %v1367, 1
      %v1370 = vsel %vm1348, %v1365, %v1369
      %v1371 = vshrl.u32 %v977, 16
      %v1373 = vshll.u32 %v977, 16
      %v1375 = vrot.slane %v1373, 1
      %v1376 = vor.u32 %v1371, %v1375
      %v1378 = vshll.u32 %v987, 16
      %v1380 = vrot.slane %v1378, 1
      %v1381 = vsel %vm1348, %v1376, %v1380
      %v1382 = vshrl.u32 %v978, 16
      %v1384 = vshll.u32 %v978, 16
      %v1386 = vrot.slane %v1384, 1
      %v1387 = vor.u32 %v1382, %v1386
      %v1389 = vshll.u32 %v988, 16
      %v1391 = vrot.slane %v1389, 1
      %v1392 = vsel %vm1348, %v1387, %v1391
      %v1393 = vshrl.u32 %v979, 16
      %v1395 = vshll.u32 %v979, 16
      %v1397 = vrot.slane %v1395, 1
      %v1398 = vor.u32 %v1393, %v1397
      %v1400 = vshll.u32 %v989, 16
      %v1402 = vrot.slane %v1400, 1
      %v1403 = vsel %vm1348, %v1398, %v1402
      %v1404 = vshrl.u32 %v980, 16
      %v1406 = vshll.u32 %v980, 16
      %v1408 = vrot.slane %v1406, 1
      %v1409 = vor.u32 %v1404, %v1408
      %v1411 = vshll.u32 %v990, 16
      %v1413 = vrot.slane %v1411, 1
      %v1414 = vsel %vm1348, %v1409, %v1413
      %v1415 = vshrl.u32 %v981, 16
      %v1417 = vshll.u32 %v981, 16
      %v1419 = vrot.slane %v1417, 1
      %v1420 = vor.u32 %v1415, %v1419
      %v1422 = vshll.u32 %v991, 16
      %v1424 = vrot.slane %v1422, 1
      %v1425 = vsel %vm1348, %v1420, %v1424
      %v1426 = vshrl.u32 %v982, 16
      %v1428 = vshll.u32 %v982, 16
      %v1430 = vrot.slane %v1428, 1
      %v1431 = vor.u32 %v1426, %v1430
      %v1433 = vshll.u32 %v992, 16
      %v1435 = vrot.slane %v1433, 1
      %v1436 = vsel %vm1348, %v1431, %v1435
      %v1437 = vshrl.u32 %v983, 16
      %v1439 = vshll.u32 %v983, 16
      %v1441 = vrot.slane %v1439, 1
      %v1442 = vor.u32 %v1437, %v1441
      %v1444 = vshll.u32 %v993, 16
      %v1446 = vrot.slane %v1444, 1
      %v1447 = vsel %vm1348, %v1442, %v1446
      %v1448 = vshrl.u32 %v984, 16
      %v1450 = vshll.u32 %v984, 16
      %v1452 = vrot.slane %v1450, 1
      %v1453 = vor.u32 %v1448, %v1452
      %v1455 = vshll.u32 %v994, 16
      %v1457 = vrot.slane %v1455, 1
      %v1458 = vsel %vm1348, %v1453, %v1457
      %s1459 = scalar_lea.vmem %s6, 4
      %v1460 = vld [vmem:[%s1459] sm:$0xf]
      %v1462 = vsel %vm998, %v1359, 0
      %v1465 = vsel %vm998, %v1370, 0
      %v1468 = vsel %vm998, %v1381, 0
      %v1471 = vsel %vm998, %v1392, 0
      %v1474 = vsel %vm998, %v1403, 0
      %v1477 = vsel %vm998, %v1414, 0
      %v1480 = vsel %vm998, %v1425, 0
      %v1483 = vsel %vm998, %v1436, 0
      %v1486 = vsel %vm1023, %v1460, 0
      %1488 = vmatprep.subr.bf16.mxu0 0
      %1489 = vmatpush1.bf16.msra.mxu0 0
      %1490 = vmatprep.subr.bf16.mxu0 0
      %1491 = vmatpush1.bf16.msra.mxu0 0
      %1492 = vmatprep.subr.bf16.mxu0 0
      %1493 = vmatpush1.bf16.msra.mxu0 0
      %1494 = vmatprep.subr.bf16.mxu0 0
      %1495 = vmatpush1.bf16.msra.mxu0 0
      %1496 = vmatprep.subr.bf16.mxu0 0
      %1497 = vmatpush1.bf16.msra.mxu0 0
      %1498 = vmatprep.subr.bf16.mxu0 0
      %1499 = vmatpush1.bf16.msra.mxu0 0
      %1500 = vmatprep.subr.bf16.mxu0 0
      %1501 = vmatpush1.bf16.msra.mxu0 0
      %1502 = vmatprep.subr.bf16.mxu0 0
      %1503 = vmatpush1.bf16.msra.mxu0 %v1486
      %1504 = vmatprep.subr.bf16.mxu0 0
      %1505 = vmatpush2.bf16.msra.mxu0 0
      %1506 = vmatprep.subr.bf16.mxu0 0
      %1507 = vmatpush2.bf16.msra.mxu0 0
      %1508 = vmatprep.subr.bf16.mxu0 0
      %1509 = vmatpush2.bf16.msra.mxu0 0
      %1510 = vmatprep.subr.bf16.mxu0 0
      %1511 = vmatpush2.bf16.msra.mxu0 0
      %1512 = vmatprep.subr.bf16.mxu0 0
      %1513 = vmatpush2.bf16.msra.mxu0 0
      %1514 = vmatprep.subr.bf16.mxu0 0
      %1515 = vmatpush2.bf16.msra.mxu0 0
      %1516 = vmatprep.subr.bf16.mxu0 0
      %1517 = vmatpush2.bf16.msra.mxu0 0
      %1518 = vmatprep.subr.bf16.mxu0 0
      %1519 = vmatpush2.bf16.msra.mxu0 0
      %1520 = vmatprep.mubr.bf16.mxu0 0
      %1521 = vmatmul.mubr.bf16.gmra.mxu0 %v1462
      %v1522 = vpop.f32.mrf.mxu0
      %v1523 = vadd.f32 0.0, %v1522
      %v1524 = vpop.f32.mrf.mxu0
      %v1525 = vpop.f32.mrf.mxu0
      %v1526 = vadd.f32 0.0, %v1525
      %v1527 = vpop.f32.mrf.mxu0
      %1528 = vmatprep.mubr.bf16.mxu0 0
      %1529 = vmatmul.mubr.bf16.gmra.mxu0 %v1465
      %v1530 = vpop.f32.mrf.mxu0
      %v1531 = vadd.f32 0.0, %v1530
      %v1532 = vpop.f32.mrf.mxu0
      %v1533 = vpop.f32.mrf.mxu0
      %v1534 = vadd.f32 0.0, %v1533
      %v1535 = vpop.f32.mrf.mxu0
      %1536 = vmatprep.mubr.bf16.mxu0 0
      %1537 = vmatmul.mubr.bf16.gmra.mxu0 %v1468
      %v1538 = vpop.f32.mrf.mxu0
      %v1539 = vadd.f32 0.0, %v1538
      %v1540 = vpop.f32.mrf.mxu0
      %v1541 = vpop.f32.mrf.mxu0
      %v1542 = vadd.f32 0.0, %v1541
      %v1543 = vpop.f32.mrf.mxu0
      %1544 = vmatprep.mubr.bf16.mxu0 0
      %1545 = vmatmul.mubr.bf16.gmra.mxu0 %v1471
      %v1546 = vpop.f32.mrf.mxu0
      %v1547 = vadd.f32 0.0, %v1546
      %v1548 = vpop.f32.mrf.mxu0
      %v1549 = vpop.f32.mrf.mxu0
      %v1550 = vadd.f32 0.0, %v1549
      %v1551 = vpop.f32.mrf.mxu0
      %1552 = vmatprep.mubr.bf16.mxu0 0
      %1553 = vmatmul.mubr.bf16.gmra.mxu0 %v1474
      %v1554 = vpop.f32.mrf.mxu0
      %v1555 = vadd.f32 0.0, %v1554
      %v1556 = vpop.f32.mrf.mxu0
      %v1557 = vpop.f32.mrf.mxu0
      %v1558 = vadd.f32 0.0, %v1557
      %v1559 = vpop.f32.mrf.mxu0
      %1560 = vmatprep.mubr.bf16.mxu0 0
      %1561 = vmatmul.mubr.bf16.gmra.mxu0 %v1477
      %v1562 = vpop.f32.mrf.mxu0
      %v1563 = vadd.f32 0.0, %v1562
      %v1564 = vpop.f32.mrf.mxu0
      %v1565 = vpop.f32.mrf.mxu0
      %v1566 = vadd.f32 0.0, %v1565
      %v1567 = vpop.f32.mrf.mxu0
      %1568 = vmatprep.mubr.bf16.mxu0 0
      %1569 = vmatmul.mubr.bf16.gmra.mxu0 %v1480
      %v1570 = vpop.f32.mrf.mxu0
      %v1571 = vadd.f32 0.0, %v1570
      %v1572 = vpop.f32.mrf.mxu0
      %v1573 = vpop.f32.mrf.mxu0
      %v1574 = vadd.f32 0.0, %v1573
      %v1575 = vpop.f32.mrf.mxu0
      %1576 = vmatprep.mubr.bf16.mxu0 0
      %1577 = vmatmul.mubr.bf16.gmra.mxu0 %v1483
      %v1578 = vpop.f32.mrf.mxu0
      %v1579 = vadd.f32 0.0, %v1578
      %v1580 = vpop.f32.mrf.mxu0
      %v1581 = vpop.f32.mrf.mxu0
      %v1582 = vadd.f32 0.0, %v1581
      %v1583 = vpop.f32.mrf.mxu0
      %1584 = vdwg.mxu0
      %v1585 = vadd.f32 %v1332, %v1523
      %v1586 = vadd.f32 %v1333, %v1526
      %v1587 = vadd.f32 %v1334, %v1531
      %v1588 = vadd.f32 %v1335, %v1534
      %v1589 = vadd.f32 %v1336, %v1539
      %v1590 = vadd.f32 %v1337, %v1542
      %v1591 = vadd.f32 %v1338, %v1547
      %v1592 = vadd.f32 %v1339, %v1550
      %v1593 = vadd.f32 %v1340, %v1555
      %v1594 = vadd.f32 %v1341, %v1558
      %v1595 = vadd.f32 %v1342, %v1563
      %v1596 = vadd.f32 %v1343, %v1566
      %v1597 = vadd.f32 %v1344, %v1571
      %v1598 = vadd.f32 %v1345, %v1574
      %v1599 = vadd.f32 %v1346, %v1579
      %v1600 = vadd.f32 %v1347, %v1582
      %s1601 = scalar_lea.vmem %s6, 16
      %v1602 = vld [vmem:[%s1601] sm:$0xf]
      %v1604 = vsel %vm998, %v1447, 0
      %v1607 = vsel %vm1023, %v1602, 0
      %1609 = vmatprep.subr.bf16.mxu0 0
      %1610 = vmatpush1.bf16.msra.mxu0 0
      %1611 = vmatprep.subr.bf16.mxu0 0
      %1612 = vmatpush1.bf16.msra.mxu0 0
      %1613 = vmatprep.subr.bf16.mxu0 0
      %1614 = vmatpush1.bf16.msra.mxu0 0
      %1615 = vmatprep.subr.bf16.mxu0 0
      %1616 = vmatpush1.bf16.msra.mxu0 0
      %1617 = vmatprep.subr.bf16.mxu0 0
      %1618 = vmatpush1.bf16.msra.mxu0 0
      %1619 = vmatprep.subr.bf16.mxu0 0
      %1620 = vmatpush1.bf16.msra.mxu0 0
      %1621 = vmatprep.subr.bf16.mxu0 0
      %1622 = vmatpush1.bf16.msra.mxu0 0
      %1623 = vmatprep.subr.bf16.mxu0 0
      %1624 = vmatpush1.bf16.msra.mxu0 %v1607
      %1625 = vmatprep.subr.bf16.mxu0 0
      %1626 = vmatpush2.bf16.msra.mxu0 0
      %1627 = vmatprep.subr.bf16.mxu0 0
      %1628 = vmatpush2.bf16.msra.mxu0 0
      %1629 = vmatprep.subr.bf16.mxu0 0
      %1630 = vmatpush2.bf16.msra.mxu0 0
      %1631 = vmatprep.subr.bf16.mxu0 0
      %1632 = vmatpush2.bf16.msra.mxu0 0
      %1633 = vmatprep.subr.bf16.mxu0 0
      %1634 = vmatpush2.bf16.msra.mxu0 0
      %1635 = vmatprep.subr.bf16.mxu0 0
      %1636 = vmatpush2.bf16.msra.mxu0 0
      %1637 = vmatprep.subr.bf16.mxu0 0
      %1638 = vmatpush2.bf16.msra.mxu0 0
      %1639 = vmatprep.subr.bf16.mxu0 0
      %1640 = vmatpush2.bf16.msra.mxu0 0
      %1641 = vmatprep.mubr.bf16.mxu0 0
      %1642 = vmatmul.mubr.bf16.gmra.mxu0 %v1465
      %v1643 = vpop.f32.mrf.mxu0
      %v1644 = vadd.f32 0.0, %v1643
      %v1645 = vpop.f32.mrf.mxu0
      %v1646 = vpop.f32.mrf.mxu0
      %v1647 = vadd.f32 0.0, %v1646
      %v1648 = vpop.f32.mrf.mxu0
      %1649 = vmatprep.mubr.bf16.mxu0 0
      %1650 = vmatmul.mubr.bf16.gmra.mxu0 %v1468
      %v1651 = vpop.f32.mrf.mxu0
      %v1652 = vadd.f32 0.0, %v1651
      %v1653 = vpop.f32.mrf.mxu0
      %v1654 = vpop.f32.mrf.mxu0
      %v1655 = vadd.f32 0.0, %v1654
      %v1656 = vpop.f32.mrf.mxu0
      %1657 = vmatprep.mubr.bf16.mxu0 0
      %1658 = vmatmul.mubr.bf16.gmra.mxu0 %v1471
      %v1659 = vpop.f32.mrf.mxu0
      %v1660 = vadd.f32 0.0, %v1659
      %v1661 = vpop.f32.mrf.mxu0
      %v1662 = vpop.f32.mrf.mxu0
      %v1663 = vadd.f32 0.0, %v1662
      %v1664 = vpop.f32.mrf.mxu0
      %1665 = vmatprep.mubr.bf16.mxu0 0
      %1666 = vmatmul.mubr.bf16.gmra.mxu0 %v1474
      %v1667 = vpop.f32.mrf.mxu0
      %v1668 = vadd.f32 0.0, %v1667
      %v1669 = vpop.f32.mrf.mxu0
      %v1670 = vpop.f32.mrf.mxu0
      %v1671 = vadd.f32 0.0, %v1670
      %v1672 = vpop.f32.mrf.mxu0
      %1673 = vmatprep.mubr.bf16.mxu0 0
      %1674 = vmatmul.mubr.bf16.gmra.mxu0 %v1477
      %v1675 = vpop.f32.mrf.mxu0
      %v1676 = vadd.f32 0.0, %v1675
      %v1677 = vpop.f32.mrf.mxu0
      %v1678 = vpop.f32.mrf.mxu0
      %v1679 = vadd.f32 0.0, %v1678
      %v1680 = vpop.f32.mrf.mxu0
      %1681 = vmatprep.mubr.bf16.mxu0 0
      %1682 = vmatmul.mubr.bf16.gmra.mxu0 %v1480
      %v1683 = vpop.f32.mrf.mxu0
      %v1684 = vadd.f32 0.0, %v1683
      %v1685 = vpop.f32.mrf.mxu0
      %v1686 = vpop.f32.mrf.mxu0
      %v1687 = vadd.f32 0.0, %v1686
      %v1688 = vpop.f32.mrf.mxu0
      %1689 = vmatprep.mubr.bf16.mxu0 0
      %1690 = vmatmul.mubr.bf16.gmra.mxu0 %v1483
      %v1691 = vpop.f32.mrf.mxu0
      %v1692 = vadd.f32 0.0, %v1691
      %v1693 = vpop.f32.mrf.mxu0
      %v1694 = vpop.f32.mrf.mxu0
      %v1695 = vadd.f32 0.0, %v1694
      %v1696 = vpop.f32.mrf.mxu0
      %1697 = vmatprep.mubr.bf16.mxu0 0
      %1698 = vmatmul.mubr.bf16.gmra.mxu0 %v1604
      %v1699 = vpop.f32.mrf.mxu0
      %v1700 = vadd.f32 0.0, %v1699
      %v1701 = vpop.f32.mrf.mxu0
      %v1702 = vpop.f32.mrf.mxu0
      %v1703 = vadd.f32 0.0, %v1702
      %v1704 = vpop.f32.mrf.mxu0
      %1705 = vdwg.mxu0
      %v1706 = vadd.f32 %v1585, %v1644
      %v1707 = vadd.f32 %v1586, %v1647
      %v1708 = vadd.f32 %v1587, %v1652
      %v1709 = vadd.f32 %v1588, %v1655
      %v1710 = vadd.f32 %v1589, %v1660
      %v1711 = vadd.f32 %v1590, %v1663
      %v1712 = vadd.f32 %v1591, %v1668
      %v1713 = vadd.f32 %v1592, %v1671
      %v1714 = vadd.f32 %v1593, %v1676
      %v1715 = vadd.f32 %v1594, %v1679
      %v1716 = vadd.f32 %v1595, %v1684
      %v1717 = vadd.f32 %v1596, %v1687
      %v1718 = vadd.f32 %v1597, %v1692
      %v1719 = vadd.f32 %v1598, %v1695
      %v1720 = vadd.f32 %v1599, %v1700
      %v1721 = vadd.f32 %v1600, %v1703
      %s1722 = scalar_lea.vmem %s6, 28
      %v1723 = vld [vmem:[%s1722] sm:$0xf]
      %v1725 = vsel %vm998, %v1458, 0
      %v1728 = vsel %vm1023, %v1723, 0
      %1730 = vmatprep.subr.bf16.mxu0 0
      %1731 = vmatpush1.bf16.msra.mxu0 0
      %1732 = vmatprep.subr.bf16.mxu0 0
      %1733 = vmatpush1.bf16.msra.mxu0 0
      %1734 = vmatprep.subr.bf16.mxu0 0
      %1735 = vmatpush1.bf16.msra.mxu0 0
      %1736 = vmatprep.subr.bf16.mxu0 0
      %1737 = vmatpush1.bf16.msra.mxu0 0
      %1738 = vmatprep.subr.bf16.mxu0 0
      %1739 = vmatpush1.bf16.msra.mxu0 0
      %1740 = vmatprep.subr.bf16.mxu0 0
      %1741 = vmatpush1.bf16.msra.mxu0 0
      %1742 = vmatprep.subr.bf16.mxu0 0
      %1743 = vmatpush1.bf16.msra.mxu0 0
      %1744 = vmatprep.subr.bf16.mxu0 0
      %1745 = vmatpush1.bf16.msra.mxu0 %v1728
      %1746 = vmatprep.subr.bf16.mxu0 0
      %1747 = vmatpush2.bf16.msra.mxu0 0
      %1748 = vmatprep.subr.bf16.mxu0 0
      %1749 = vmatpush2.bf16.msra.mxu0 0
      %1750 = vmatprep.subr.bf16.mxu0 0
      %1751 = vmatpush2.bf16.msra.mxu0 0
      %1752 = vmatprep.subr.bf16.mxu0 0
      %1753 = vmatpush2.bf16.msra.mxu0 0
      %1754 = vmatprep.subr.bf16.mxu0 0
      %1755 = vmatpush2.bf16.msra.mxu0 0
      %1756 = vmatprep.subr.bf16.mxu0 0
      %1757 = vmatpush2.bf16.msra.mxu0 0
      %1758 = vmatprep.subr.bf16.mxu0 0
      %1759 = vmatpush2.bf16.msra.mxu0 0
      %1760 = vmatprep.subr.bf16.mxu0 0
      %1761 = vmatpush2.bf16.msra.mxu0 0
      %1762 = vmatprep.mubr.bf16.mxu0 0
      %1763 = vmatmul.mubr.bf16.gmra.mxu0 %v1468
      %v1764 = vpop.f32.mrf.mxu0
      %v1765 = vadd.f32 0.0, %v1764
      %v1766 = vpop.f32.mrf.mxu0
      %v1767 = vpop.f32.mrf.mxu0
      %v1768 = vadd.f32 0.0, %v1767
      %v1769 = vpop.f32.mrf.mxu0
      %1770 = vmatprep.mubr.bf16.mxu0 0
      %1771 = vmatmul.mubr.bf16.gmra.mxu0 %v1471
      %v1772 = vpop.f32.mrf.mxu0
      %v1773 = vadd.f32 0.0, %v1772
      %v1774 = vpop.f32.mrf.mxu0
      %v1775 = vpop.f32.mrf.mxu0
      %v1776 = vadd.f32 0.0, %v1775
      %v1777 = vpop.f32.mrf.mxu0
      %1778 = vmatprep.mubr.bf16.mxu0 0
      %1779 = vmatmul.mubr.bf16.gmra.mxu0 %v1474
      %v1780 = vpop.f32.mrf.mxu0
      %v1781 = vadd.f32 0.0, %v1780
      %v1782 = vpop.f32.mrf.mxu0
      %v1783 = vpop.f32.mrf.mxu0
      %v1784 = vadd.f32 0.0, %v1783
      %v1785 = vpop.f32.mrf.mxu0
      %1786 = vmatprep.mubr.bf16.mxu0 0
      %1787 = vmatmul.mubr.bf16.gmra.mxu0 %v1477
      %v1788 = vpop.f32.mrf.mxu0
      %v1789 = vadd.f32 0.0, %v1788
      %v1790 = vpop.f32.mrf.mxu0
      %v1791 = vpop.f32.mrf.mxu0
      %v1792 = vadd.f32 0.0, %v1791
      %v1793 = vpop.f32.mrf.mxu0
      %1794 = vmatprep.mubr.bf16.mxu0 0
      %1795 = vmatmul.mubr.bf16.gmra.mxu0 %v1480
      %v1796 = vpop.f32.mrf.mxu0
      %v1797 = vadd.f32 0.0, %v1796
      %v1798 = vpop.f32.mrf.mxu0
      %v1799 = vpop.f32.mrf.mxu0
      %v1800 = vadd.f32 0.0, %v1799
      %v1801 = vpop.f32.mrf.mxu0
      %1802 = vmatprep.mubr.bf16.mxu0 0
      %1803 = vmatmul.mubr.bf16.gmra.mxu0 %v1483
      %v1804 = vpop.f32.mrf.mxu0
      %v1805 = vadd.f32 0.0, %v1804
      %v1806 = vpop.f32.mrf.mxu0
      %v1807 = vpop.f32.mrf.mxu0
      %v1808 = vadd.f32 0.0, %v1807
      %v1809 = vpop.f32.mrf.mxu0
      %1810 = vmatprep.mubr.bf16.mxu0 0
      %1811 = vmatmul.mubr.bf16.gmra.mxu0 %v1604
      %v1812 = vpop.f32.mrf.mxu0
      %v1813 = vadd.f32 0.0, %v1812
      %v1814 = vpop.f32.mrf.mxu0
      %v1815 = vpop.f32.mrf.mxu0
      %v1816 = vadd.f32 0.0, %v1815
      %v1817 = vpop.f32.mrf.mxu0
      %1818 = vmatprep.mubr.bf16.mxu0 0
      %1819 = vmatmul.mubr.bf16.gmra.mxu0 %v1725
      %v1820 = vpop.f32.mrf.mxu0
      %v1821 = vadd.f32 0.0, %v1820
      %v1822 = vpop.f32.mrf.mxu0
      %v1823 = vpop.f32.mrf.mxu0
      %v1824 = vadd.f32 0.0, %v1823
      %v1825 = vpop.f32.mrf.mxu0
      %1826 = vdwg.mxu0
      %v1827 = vadd.f32 %v1706, %v1765
      %v1828 = vadd.f32 %v1707, %v1768
      %v1829 = vadd.f32 %v1708, %v1773
      %v1830 = vadd.f32 %v1709, %v1776
      %v1831 = vadd.f32 %v1710, %v1781
      %v1832 = vadd.f32 %v1711, %v1784
      %v1833 = vadd.f32 %v1712, %v1789
      %v1834 = vadd.f32 %v1713, %v1792
      %v1835 = vadd.f32 %v1714, %v1797
      %v1836 = vadd.f32 %v1715, %v1800
      %v1837 = vadd.f32 %v1716, %v1805
      %v1838 = vadd.f32 %v1717, %v1808
      %v1839 = vadd.f32 %v1718, %v1813
      %v1840 = vadd.f32 %v1719, %v1816
      %v1841 = vadd.f32 %v1720, %v1821
      %v1842 = vadd.f32 %v1721, %v1824
      %vm1863 = vcmask 1046528
      %v1864 = vrot.slane %v975, 1
      %v1865 = vrot.slane %v985, 1
      %v1866 = vsel %vm1863, %v1864, %v1865
      %v1867 = vrot.slane %v976, 1
      %v1868 = vrot.slane %v986, 1
      %v1869 = vsel %vm1863, %v1867, %v1868
      %v1870 = vrot.slane %v977, 1
      %v1871 = vrot.slane %v987, 1
      %v1872 = vsel %vm1863, %v1870, %v1871
      %v1873 = vrot.slane %v978, 1
      %v1874 = vrot.slane %v988, 1
      %v1875 = vsel %vm1863, %v1873, %v1874
      %v1876 = vrot.slane %v979, 1
      %v1877 = vrot.slane %v989, 1
      %v1878 = vsel %vm1863, %v1876, %v1877
      %v1879 = vrot.slane %v980, 1
      %v1880 = vrot.slane %v990, 1
      %v1881 = vsel %vm1863, %v1879, %v1880
      %v1882 = vrot.slane %v981, 1
      %v1883 = vrot.slane %v991, 1
      %v1884 = vsel %vm1863, %v1882, %v1883
      %v1885 = vrot.slane %v982, 1
      %v1886 = vrot.slane %v992, 1
      %v1887 = vsel %vm1863, %v1885, %v1886
      %v1888 = vrot.slane %v983, 1
      %v1889 = vrot.slane %v993, 1
      %v1890 = vsel %vm1863, %v1888, %v1889
      %v1891 = vrot.slane %v984, 1
      %v1892 = vrot.slane %v994, 1
      %v1893 = vsel %vm1863, %v1891, %v1892
      %s1894 = scalar_lea.vmem %s6, 8
      %v1895 = vld [vmem:[%s1894] sm:$0xf]
      %v1897 = vsel %vm998, %v1866, 0
      %v1900 = vsel %vm998, %v1869, 0
      %v1903 = vsel %vm998, %v1872, 0
      %v1906 = vsel %vm998, %v1875, 0
      %v1909 = vsel %vm998, %v1878, 0
      %v1912 = vsel %vm998, %v1881, 0
      %v1915 = vsel %vm998, %v1884, 0
      %v1918 = vsel %vm998, %v1887, 0
      %v1921 = vsel %vm1023, %v1895, 0
      %1923 = vmatprep.subr.bf16.mxu0 0
      %1924 = vmatpush1.bf16.msra.mxu0 0
      %1925 = vmatprep.subr.bf16.mxu0 0
      %1926 = vmatpush1.bf16.msra.mxu0 0
      %1927 = vmatprep.subr.bf16.mxu0 0
      %1928 = vmatpush1.bf16.msra.mxu0 0
      %1929 = vmatprep.subr.bf16.mxu0 0
      %1930 = vmatpush1.bf16.msra.mxu0 0
      %1931 = vmatprep.subr.bf16.mxu0 0
      %1932 = vmatpush1.bf16.msra.mxu0 0
      %1933 = vmatprep.subr.bf16.mxu0 0
      %1934 = vmatpush1.bf16.msra.mxu0 0
      %1935 = vmatprep.subr.bf16.mxu0 0
      %1936 = vmatpush1.bf16.msra.mxu0 0
      %1937 = vmatprep.subr.bf16.mxu0 0
      %1938 = vmatpush1.bf16.msra.mxu0 %v1921
      %1939 = vmatprep.subr.bf16.mxu0 0
      %1940 = vmatpush2.bf16.msra.mxu0 0
      %1941 = vmatprep.subr.bf16.mxu0 0
      %1942 = vmatpush2.bf16.msra.mxu0 0
      %1943 = vmatprep.subr.bf16.mxu0 0
      %1944 = vmatpush2.bf16.msra.mxu0 0
      %1945 = vmatprep.subr.bf16.mxu0 0
      %1946 = vmatpush2.bf16.msra.mxu0 0
      %1947 = vmatprep.subr.bf16.mxu0 0
      %1948 = vmatpush2.bf16.msra.mxu0 0
      %1949 = vmatprep.subr.bf16.mxu0 0
      %1950 = vmatpush2.bf16.msra.mxu0 0
      %1951 = vmatprep.subr.bf16.mxu0 0
      %1952 = vmatpush2.bf16.msra.mxu0 0
      %1953 = vmatprep.subr.bf16.mxu0 0
      %1954 = vmatpush2.bf16.msra.mxu0 0
      %1955 = vmatprep.mubr.bf16.mxu0 0
      %1956 = vmatmul.mubr.bf16.gmra.mxu0 %v1897
      %v1957 = vpop.f32.mrf.mxu0
      %v1958 = vadd.f32 0.0, %v1957
      %v1959 = vpop.f32.mrf.mxu0
      %v1960 = vpop.f32.mrf.mxu0
      %v1961 = vadd.f32 0.0, %v1960
      %v1962 = vpop.f32.mrf.mxu0
      %1963 = vmatprep.mubr.bf16.mxu0 0
      %1964 = vmatmul.mubr.bf16.gmra.mxu0 %v1900
      %v1965 = vpop.f32.mrf.mxu0
      %v1966 = vadd.f32 0.0, %v1965
      %v1967 = vpop.f32.mrf.mxu0
      %v1968 = vpop.f32.mrf.mxu0
      %v1969 = vadd.f32 0.0, %v1968
      %v1970 = vpop.f32.mrf.mxu0
      %1971 = vmatprep.mubr.bf16.mxu0 0
      %1972 = vmatmul.mubr.bf16.gmra.mxu0 %v1903
      %v1973 = vpop.f32.mrf.mxu0
      %v1974 = vadd.f32 0.0, %v1973
      %v1975 = vpop.f32.mrf.mxu0
      %v1976 = vpop.f32.mrf.mxu0
      %v1977 = vadd.f32 0.0, %v1976
      %v1978 = vpop.f32.mrf.mxu0
      %1979 = vmatprep.mubr.bf16.mxu0 0
      %1980 = vmatmul.mubr.bf16.gmra.mxu0 %v1906
      %v1981 = vpop.f32.mrf.mxu0
      %v1982 = vadd.f32 0.0, %v1981
      %v1983 = vpop.f32.mrf.mxu0
      %v1984 = vpop.f32.mrf.mxu0
      %v1985 = vadd.f32 0.0, %v1984
      %v1986 = vpop.f32.mrf.mxu0
      %1987 = vmatprep.mubr.bf16.mxu0 0
      %1988 = vmatmul.mubr.bf16.gmra.mxu0 %v1909
      %v1989 = vpop.f32.mrf.mxu0
      %v1990 = vadd.f32 0.0, %v1989
      %v1991 = vpop.f32.mrf.mxu0
      %v1992 = vpop.f32.mrf.mxu0
      %v1993 = vadd.f32 0.0, %v1992
      %v1994 = vpop.f32.mrf.mxu0
      %1995 = vmatprep.mubr.bf16.mxu0 0
      %1996 = vmatmul.mubr.bf16.gmra.mxu0 %v1912
      %v1997 = vpop.f32.mrf.mxu0
      %v1998 = vadd.f32 0.0, %v1997
      %v1999 = vpop.f32.mrf.mxu0
      %v2000 = vpop.f32.mrf.mxu0
      %v2001 = vadd.f32 0.0, %v2000
      %v2002 = vpop.f32.mrf.mxu0
      %2003 = vmatprep.mubr.bf16.mxu0 0
      %2004 = vmatmul.mubr.bf16.gmra.mxu0 %v1915
      %v2005 = vpop.f32.mrf.mxu0
      %v2006 = vadd.f32 0.0, %v2005
      %v2007 = vpop.f32.mrf.mxu0
      %v2008 = vpop.f32.mrf.mxu0
      %v2009 = vadd.f32 0.0, %v2008
      %v2010 = vpop.f32.mrf.mxu0
      %2011 = vmatprep.mubr.bf16.mxu0 0
      %2012 = vmatmul.mubr.bf16.gmra.mxu0 %v1918
      %v2013 = vpop.f32.mrf.mxu0
      %v2014 = vadd.f32 0.0, %v2013
      %v2015 = vpop.f32.mrf.mxu0
      %v2016 = vpop.f32.mrf.mxu0
      %v2017 = vadd.f32 0.0, %v2016
      %v2018 = vpop.f32.mrf.mxu0
      %2019 = vdwg.mxu0
      %v2020 = vadd.f32 %v1827, %v1958
      %v2021 = vadd.f32 %v1828, %v1961
      %v2022 = vadd.f32 %v1829, %v1966
      %v2023 = vadd.f32 %v1830, %v1969
      %v2024 = vadd.f32 %v1831, %v1974
      %v2025 = vadd.f32 %v1832, %v1977
      %v2026 = vadd.f32 %v1833, %v1982
      %v2027 = vadd.f32 %v1834, %v1985
      %v2028 = vadd.f32 %v1835, %v1990
      %v2029 = vadd.f32 %v1836, %v1993
      %v2030 = vadd.f32 %v1837, %v1998
      %v2031 = vadd.f32 %v1838, %v2001
      %v2032 = vadd.f32 %v1839, %v2006
      %v2033 = vadd.f32 %v1840, %v2009
      %v2034 = vadd.f32 %v1841, %v2014
      %v2035 = vadd.f32 %v1842, %v2017
      %s2036 = scalar_lea.vmem %s6, 20
      %v2037 = vld [vmem:[%s2036] sm:$0xf]
      %v2039 = vsel %vm998, %v1890, 0
      %v2042 = vsel %vm1023, %v2037, 0
      %2044 = vmatprep.subr.bf16.mxu0 0
      %2045 = vmatpush1.bf16.msra.mxu0 0
      %2046 = vmatprep.subr.bf16.mxu0 0
      %2047 = vmatpush1.bf16.msra.mxu0 0
      %2048 = vmatprep.subr.bf16.mxu0 0
      %2049 = vmatpush1.bf16.msra.mxu0 0
      %2050 = vmatprep.subr.bf16.mxu0 0
      %2051 = vmatpush1.bf16.msra.mxu0 0
      %2052 = vmatprep.subr.bf16.mxu0 0
      %2053 = vmatpush1.bf16.msra.mxu0 0
      %2054 = vmatprep.subr.bf16.mxu0 0
      %2055 = vmatpush1.bf16.msra.mxu0 0
      %2056 = vmatprep.subr.bf16.mxu0 0
      %2057 = vmatpush1.bf16.msra.mxu0 0
      %2058 = vmatprep.subr.bf16.mxu0 0
      %2059 = vmatpush1.bf16.msra.mxu0 %v2042
      %2060 = vmatprep.subr.bf16.mxu0 0
      %2061 = vmatpush2.bf16.msra.mxu0 0
      %2062 = vmatprep.subr.bf16.mxu0 0
      %2063 = vmatpush2.bf16.msra.mxu0 0
      %2064 = vmatprep.subr.bf16.mxu0 0
      %2065 = vmatpush2.bf16.msra.mxu0 0
      %2066 = vmatprep.subr.bf16.mxu0 0
      %2067 = vmatpush2.bf16.msra.mxu0 0
      %2068 = vmatprep.subr.bf16.mxu0 0
      %2069 = vmatpush2.bf16.msra.mxu0 0
      %2070 = vmatprep.subr.bf16.mxu0 0
      %2071 = vmatpush2.bf16.msra.mxu0 0
      %2072 = vmatprep.subr.bf16.mxu0 0
      %2073 = vmatpush2.bf16.msra.mxu0 0
      %2074 = vmatprep.subr.bf16.mxu0 0
      %2075 = vmatpush2.bf16.msra.mxu0 0
      %2076 = vmatprep.mubr.bf16.mxu0 0
      %2077 = vmatmul.mubr.bf16.gmra.mxu0 %v1900
      %v2078 = vpop.f32.mrf.mxu0
      %v2079 = vadd.f32 0.0, %v2078
      %v2080 = vpop.f32.mrf.mxu0
      %v2081 = vpop.f32.mrf.mxu0
      %v2082 = vadd.f32 0.0, %v2081
      %v2083 = vpop.f32.mrf.mxu0
      %2084 = vmatprep.mubr.bf16.mxu0 0
      %2085 = vmatmul.mubr.bf16.gmra.mxu0 %v1903
      %v2086 = vpop.f32.mrf.mxu0
      %v2087 = vadd.f32 0.0, %v2086
      %v2088 = vpop.f32.mrf.mxu0
      %v2089 = vpop.f32.mrf.mxu0
      %v2090 = vadd.f32 0.0, %v2089
      %v2091 = vpop.f32.mrf.mxu0
      %2092 = vmatprep.mubr.bf16.mxu0 0
      %2093 = vmatmul.mubr.bf16.gmra.mxu0 %v1906
      %v2094 = vpop.f32.mrf.mxu0
      %v2095 = vadd.f32 0.0, %v2094
      %v2096 = vpop.f32.mrf.mxu0
      %v2097 = vpop.f32.mrf.mxu0
      %v2098 = vadd.f32 0.0, %v2097
      %v2099 = vpop.f32.mrf.mxu0
      %2100 = vmatprep.mubr.bf16.mxu0 0
      %2101 = vmatmul.mubr.bf16.gmra.mxu0 %v1909
      %v2102 = vpop.f32.mrf.mxu0
      %v2103 = vadd.f32 0.0, %v2102
      %v2104 = vpop.f32.mrf.mxu0
      %v2105 = vpop.f32.mrf.mxu0
      %v2106 = vadd.f32 0.0, %v2105
      %v2107 = vpop.f32.mrf.mxu0
      %2108 = vmatprep.mubr.bf16.mxu0 0
      %2109 = vmatmul.mubr.bf16.gmra.mxu0 %v1912
      %v2110 = vpop.f32.mrf.mxu0
      %v2111 = vadd.f32 0.0, %v2110
      %v2112 = vpop.f32.mrf.mxu0
      %v2113 = vpop.f32.mrf.mxu0
      %v2114 = vadd.f32 0.0, %v2113
      %v2115 = vpop.f32.mrf.mxu0
      %2116 = vmatprep.mubr.bf16.mxu0 0
      %2117 = vmatmul.mubr.bf16.gmra.mxu0 %v1915
      %v2118 = vpop.f32.mrf.mxu0
      %v2119 = vadd.f32 0.0, %v2118
      %v2120 = vpop.f32.mrf.mxu0
      %v2121 = vpop.f32.mrf.mxu0
      %v2122 = vadd.f32 0.0, %v2121
      %v2123 = vpop.f32.mrf.mxu0
      %2124 = vmatprep.mubr.bf16.mxu0 0
      %2125 = vmatmul.mubr.bf16.gmra.mxu0 %v1918
      %v2126 = vpop.f32.mrf.mxu0
      %v2127 = vadd.f32 0.0, %v2126
      %v2128 = vpop.f32.mrf.mxu0
      %v2129 = vpop.f32.mrf.mxu0
      %v2130 = vadd.f32 0.0, %v2129
      %v2131 = vpop.f32.mrf.mxu0
      %2132 = vmatprep.mubr.bf16.mxu0 0
      %2133 = vmatmul.mubr.bf16.gmra.mxu0 %v2039
      %v2134 = vpop.f32.mrf.mxu0
      %v2135 = vadd.f32 0.0, %v2134
      %v2136 = vpop.f32.mrf.mxu0
      %v2137 = vpop.f32.mrf.mxu0
      %v2138 = vadd.f32 0.0, %v2137
      %v2139 = vpop.f32.mrf.mxu0
      %2140 = vdwg.mxu0
      %v2141 = vadd.f32 %v2020, %v2079
      %v2142 = vadd.f32 %v2021, %v2082
      %v2143 = vadd.f32 %v2022, %v2087
      %v2144 = vadd.f32 %v2023, %v2090
      %v2145 = vadd.f32 %v2024, %v2095
      %v2146 = vadd.f32 %v2025, %v2098
      %v2147 = vadd.f32 %v2026, %v2103
      %v2148 = vadd.f32 %v2027, %v2106
      %v2149 = vadd.f32 %v2028, %v2111
      %v2150 = vadd.f32 %v2029, %v2114
      %v2151 = vadd.f32 %v2030, %v2119
      %v2152 = vadd.f32 %v2031, %v2122
      %v2153 = vadd.f32 %v2032, %v2127
      %v2154 = vadd.f32 %v2033, %v2130
      %v2155 = vadd.f32 %v2034, %v2135
      %v2156 = vadd.f32 %v2035, %v2138
      %s2157 = scalar_lea.vmem %s6, 32
      %v2158 = vld [vmem:[%s2157] sm:$0xf]
      %v2160 = vsel %vm998, %v1893, 0
      %v2163 = vsel %vm1023, %v2158, 0
      %2165 = vmatprep.subr.bf16.mxu0 0
      %2166 = vmatpush1.bf16.msra.mxu0 0
      %2167 = vmatprep.subr.bf16.mxu0 0
      %2168 = vmatpush1.bf16.msra.mxu0 0
      %2169 = vmatprep.subr.bf16.mxu0 0
      %2170 = vmatpush1.bf16.msra.mxu0 0
      %2171 = vmatprep.subr.bf16.mxu0 0
      %2172 = vmatpush1.bf16.msra.mxu0 0
      %2173 = vmatprep.subr.bf16.mxu0 0
      %2174 = vmatpush1.bf16.msra.mxu0 0
      %2175 = vmatprep.subr.bf16.mxu0 0
      %2176 = vmatpush1.bf16.msra.mxu0 0
      %2177 = vmatprep.subr.bf16.mxu0 0
      %2178 = vmatpush1.bf16.msra.mxu0 0
      %2179 = vmatprep.subr.bf16.mxu0 0
      %2180 = vmatpush1.bf16.msra.mxu0 %v2163
      %2181 = vmatprep.subr.bf16.mxu0 0
      %2182 = vmatpush2.bf16.msra.mxu0 0
      %2183 = vmatprep.subr.bf16.mxu0 0
      %2184 = vmatpush2.bf16.msra.mxu0 0
      %2185 = vmatprep.subr.bf16.mxu0 0
      %2186 = vmatpush2.bf16.msra.mxu0 0
      %2187 = vmatprep.subr.bf16.mxu0 0
      %2188 = vmatpush2.bf16.msra.mxu0 0
      %2189 = vmatprep.subr.bf16.mxu0 0
      %2190 = vmatpush2.bf16.msra.mxu0 0
      %2191 = vmatprep.subr.bf16.mxu0 0
      %2192 = vmatpush2.bf16.msra.mxu0 0
      %2193 = vmatprep.subr.bf16.mxu0 0
      %2194 = vmatpush2.bf16.msra.mxu0 0
      %2195 = vmatprep.subr.bf16.mxu0 0
      %2196 = vmatpush2.bf16.msra.mxu0 0
      %2197 = vmatprep.mubr.bf16.mxu0 0
      %2198 = vmatmul.mubr.bf16.gmra.mxu0 %v1903
      %v2199 = vpop.f32.mrf.mxu0
      %v2200 = vadd.f32 0.0, %v2199
      %v2201 = vpop.f32.mrf.mxu0
      %v2202 = vpop.f32.mrf.mxu0
      %v2203 = vadd.f32 0.0, %v2202
      %v2204 = vpop.f32.mrf.mxu0
      %2205 = vmatprep.mubr.bf16.mxu0 0
      %2206 = vmatmul.mubr.bf16.gmra.mxu0 %v1906
      %v2207 = vpop.f32.mrf.mxu0
      %v2208 = vadd.f32 0.0, %v2207
      %v2209 = vpop.f32.mrf.mxu0
      %v2210 = vpop.f32.mrf.mxu0
      %v2211 = vadd.f32 0.0, %v2210
      %v2212 = vpop.f32.mrf.mxu0
      %2213 = vmatprep.mubr.bf16.mxu0 0
      %2214 = vmatmul.mubr.bf16.gmra.mxu0 %v1909
      %v2215 = vpop.f32.mrf.mxu0
      %v2216 = vadd.f32 0.0, %v2215
      %v2217 = vpop.f32.mrf.mxu0
      %v2218 = vpop.f32.mrf.mxu0
      %v2219 = vadd.f32 0.0, %v2218
      %v2220 = vpop.f32.mrf.mxu0
      %2221 = vmatprep.mubr.bf16.mxu0 0
      %2222 = vmatmul.mubr.bf16.gmra.mxu0 %v1912
      %v2223 = vpop.f32.mrf.mxu0
      %v2224 = vadd.f32 0.0, %v2223
      %v2225 = vpop.f32.mrf.mxu0
      %v2226 = vpop.f32.mrf.mxu0
      %v2227 = vadd.f32 0.0, %v2226
      %v2228 = vpop.f32.mrf.mxu0
      %2229 = vmatprep.mubr.bf16.mxu0 0
      %2230 = vmatmul.mubr.bf16.gmra.mxu0 %v1915
      %v2231 = vpop.f32.mrf.mxu0
      %v2232 = vadd.f32 0.0, %v2231
      %v2233 = vpop.f32.mrf.mxu0
      %v2234 = vpop.f32.mrf.mxu0
      %v2235 = vadd.f32 0.0, %v2234
      %v2236 = vpop.f32.mrf.mxu0
      %2237 = vmatprep.mubr.bf16.mxu0 0
      %2238 = vmatmul.mubr.bf16.gmra.mxu0 %v1918
      %v2239 = vpop.f32.mrf.mxu0
      %v2240 = vadd.f32 0.0, %v2239
      %v2241 = vpop.f32.mrf.mxu0
      %v2242 = vpop.f32.mrf.mxu0
      %v2243 = vadd.f32 0.0, %v2242
      %v2244 = vpop.f32.mrf.mxu0
      %2245 = vmatprep.mubr.bf16.mxu0 0
      %2246 = vmatmul.mubr.bf16.gmra.mxu0 %v2039
      %v2247 = vpop.f32.mrf.mxu0
      %v2248 = vadd.f32 0.0, %v2247
      %v2249 = vpop.f32.mrf.mxu0
      %v2250 = vpop.f32.mrf.mxu0
      %v2251 = vadd.f32 0.0, %v2250
      %v2252 = vpop.f32.mrf.mxu0
      %2253 = vmatprep.mubr.bf16.mxu0 0
      %2254 = vmatmul.mubr.bf16.gmra.mxu0 %v2160
      %v2255 = vpop.f32.mrf.mxu0
      %v2256 = vadd.f32 0.0, %v2255
      %v2257 = vpop.f32.mrf.mxu0
      %v2258 = vpop.f32.mrf.mxu0
      %v2259 = vadd.f32 0.0, %v2258
      %v2260 = vpop.f32.mrf.mxu0
      %2261 = vdwg.mxu0
      %v2262 = vadd.f32 %v2141, %v2200
      %v2263 = vadd.f32 %v2142, %v2203
      %v2264 = vadd.f32 %v2143, %v2208
      %v2265 = vadd.f32 %v2144, %v2211
      %v2266 = vadd.f32 %v2145, %v2216
      %v2267 = vadd.f32 %v2146, %v2219
      %v2268 = vadd.f32 %v2147, %v2224
      %v2269 = vadd.f32 %v2148, %v2227
      %v2270 = vadd.f32 %v2149, %v2232
      %v2271 = vadd.f32 %v2150, %v2235
      %v2272 = vadd.f32 %v2151, %v2240
      %v2273 = vadd.f32 %v2152, %v2243
      %v2274 = vadd.f32 %v2153, %v2248
      %v2275 = vadd.f32 %v2154, %v2251
      %v2276 = vadd.f32 %v2155, %v2256
      %v2277 = vadd.f32 %v2156, %v2259
      %v2278 = vpack.c.bf16 %v2263, %v2262
      %v2279 = vpack.c.bf16 %v2265, %v2264
      %v2280 = vpack.c.bf16 %v2267, %v2266
      %v2281 = vpack.c.bf16 %v2269, %v2268
      %v2282 = vpack.c.bf16 %v2271, %v2270
      %v2283 = vpack.c.bf16 %v2273, %v2272
      %v2284 = vpack.c.bf16 %v2275, %v2274
      %v2285 = vpack.c.bf16 %v2277, %v2276
      %v2294 = vunpack.c.l.b16 %v2278
      %v2295 = vunpack.c.h.b16 %v2278
      %v2296 = vunpack.c.l.b16 %v2279
      %v2297 = vunpack.c.h.b16 %v2279
      %v2298 = vunpack.c.l.b16 %v2280
      %v2299 = vunpack.c.h.b16 %v2280
      %v2300 = vunpack.c.l.b16 %v2281
      %v2301 = vunpack.c.h.b16 %v2281
      %v2302 = vunpack.c.l.b16 %v2282
      %v2303 = vunpack.c.h.b16 %v2282
      %v2304 = vunpack.c.l.b16 %v2283
      %v2305 = vunpack.c.h.b16 %v2283
      %v2306 = vunpack.c.l.b16 %v2284
      %v2307 = vunpack.c.h.b16 %v2284
      %v2308 = vunpack.c.l.b16 %v2285
      %v2309 = vunpack.c.h.b16 %v2285
      %v2310 = vpack.c.b16 %v2294, %v2294
      %v2311 = vpack.c.b16 %v2295, %v2295
      %v2312 = vpack.c.b16 %v2296, %v2296
      %v2313 = vpack.c.b16 %v2297, %v2297
      %v2314 = vpack.c.b16 %v2298, %v2298
      %v2315 = vpack.c.b16 %v2299, %v2299
      %v2316 = vpack.c.b16 %v2300, %v2300
      %v2317 = vpack.c.b16 %v2301, %v2301
      %v2318 = vpack.c.b16 %v2302, %v2302
      %v2319 = vpack.c.b16 %v2303, %v2303
      %v2320 = vpack.c.b16 %v2304, %v2304
      %v2321 = vpack.c.b16 %v2305, %v2305
      %v2322 = vpack.c.b16 %v2306, %v2306
      %v2323 = vpack.c.b16 %v2307, %v2307
      %v2324 = vpack.c.b16 %v2308, %v2308
      %v2325 = vpack.c.b16 %v2309, %v2309
      %vm2342 = vcmask 27648
      %2343 = vst.msk [vmem:[%s648] sm:$0xf] %vm2342, %v2310
      %2344 = vst.msk [vmem:[%s648 + $0x4] sm:$0xf] %vm2342, %v2311
      %2345 = vst.msk [vmem:[%s648 + $0x8] sm:$0xf] %vm2342, %v2312
      %2346 = vst.msk [vmem:[%s648 + $0xc] sm:$0xf] %vm2342, %v2313
      %2347 = vst.msk [vmem:[%s648 + $0x10] sm:$0xf] %vm2342, %v2314
      %2348 = vst.msk [vmem:[%s648 + $0x14] sm:$0xf] %vm2342, %v2315
      %2349 = vst.msk [vmem:[%s648 + $0x18] sm:$0xf] %vm2342, %v2316
      %2350 = vst.msk [vmem:[%s648 + $0x1c] sm:$0xf] %vm2342, %v2317
      %2351 = vst.msk [vmem:[%s648 + $0x20] sm:$0xf] %vm2342, %v2318
      %2352 = vst.msk [vmem:[%s648 + $0x24] sm:$0xf] %vm2342, %v2319
      %2353 = vst.msk [vmem:[%s648 + $0x28] sm:$0xf] %vm2342, %v2320
      %2354 = vst.msk [vmem:[%s648 + $0x2c] sm:$0xf] %vm2342, %v2321
      %2355 = vst.msk [vmem:[%s648 + $0x30] sm:$0xf] %vm2342, %v2322
      %2356 = vst.msk [vmem:[%s648 + $0x34] sm:$0xf] %vm2342, %v2323
      %2357 = vst.msk [vmem:[%s648 + $0x38] sm:$0xf] %vm2342, %v2324
      %2358 = vst.msk [vmem:[%s648 + $0x3c] sm:$0xf] %vm2342, %v2325
      %v2359 = vsel %vm861, %v2262, 0.0
      %v2360 = vsel %vm861, %v2263, 0.0
      %v2361 = vadd.f32 %v2359, %v2360
      %v2362 = vsel %vm861, %v2264, 0.0
      %v2363 = vadd.f32 %v2361, %v2362
      %v2364 = vsel %vm861, %v2265, 0.0
      %v2365 = vadd.f32 %v2363, %v2364
      %v2366 = vsel %vm861, %v2266, 0.0
      %v2367 = vadd.f32 %v2365, %v2366
      %v2368 = vsel %vm861, %v2267, 0.0
      %v2369 = vadd.f32 %v2367, %v2368
      %v2370 = vsel %vm861, %v2268, 0.0
      %v2371 = vadd.f32 %v2369, %v2370
      %v2372 = vsel %vm861, %v2269, 0.0
      %v2373 = vadd.f32 %v2371, %v2372
      %v2374 = vsel %vm861, %v2270, 0.0
      %v2375 = vadd.f32 %v2373, %v2374
      %v2376 = vsel %vm861, %v2271, 0.0
      %v2377 = vadd.f32 %v2375, %v2376
      %v2378 = vsel %vm861, %v2272, 0.0
      %v2379 = vadd.f32 %v2377, %v2378
      %v2380 = vsel %vm861, %v2273, 0.0
      %v2381 = vadd.f32 %v2379, %v2380
      %v2382 = vsel %vm861, %v2274, 0.0
      %v2383 = vadd.f32 %v2381, %v2382
      %v2384 = vsel %vm861, %v2275, 0.0
      %v2385 = vadd.f32 %v2383, %v2384
      %v2386 = vsel %vm861, %v2276, 0.0
      %v2387 = vadd.f32 %v2385, %v2386
      %v2388 = vsel %vm861, %v2277, 0.0
      %v2389 = vadd.f32 %v2387, %v2388
      %v2390 = vrot.slane %v2389, 4
      %v2391 = vadd.f32 %v2389, %v2390
      %v2392 = vrot.slane %v2391, 2
      %v2393 = vadd.f32 %v2391, %v2392
      %v2394 = vrot.slane %v2393, 1
      %v2395 = vadd.f32 %v2393, %v2394
      %v2396 = vmul.f32 %v2262, %v2262
      %v2397 = vmul.f32 %v2263, %v2263
      %v2398 = vmul.f32 %v2264, %v2264
      %v2399 = vmul.f32 %v2265, %v2265
      %v2400 = vmul.f32 %v2266, %v2266
      %v2401 = vmul.f32 %v2267, %v2267
      %v2402 = vmul.f32 %v2268, %v2268
      %v2403 = vmul.f32 %v2269, %v2269
      %v2404 = vmul.f32 %v2270, %v2270
      %v2405 = vmul.f32 %v2271, %v2271
      %v2406 = vmul.f32 %v2272, %v2272
      %v2407 = vmul.f32 %v2273, %v2273
      %v2408 = vmul.f32 %v2274, %v2274
      %v2409 = vmul.f32 %v2275, %v2275
      %v2410 = vmul.f32 %v2276, %v2276
      %v2411 = vmul.f32 %v2277, %v2277
      %v2412 = vsel %vm861, %v2396, 0.0
      %v2413 = vsel %vm861, %v2397, 0.0
      %v2414 = vadd.f32 %v2412, %v2413
      %v2415 = vsel %vm861, %v2398, 0.0
      %v2416 = vadd.f32 %v2414, %v2415
      %v2417 = vsel %vm861, %v2399, 0.0
      %v2418 = vadd.f32 %v2416, %v2417
      %v2419 = vsel %vm861, %v2400, 0.0
      %v2420 = vadd.f32 %v2418, %v2419
      %v2421 = vsel %vm861, %v2401, 0.0
      %v2422 = vadd.f32 %v2420, %v2421
      %v2423 = vsel %vm861, %v2402, 0.0
      %v2424 = vadd.f32 %v2422, %v2423
      %v2425 = vsel %vm861, %v2403, 0.0
      %v2426 = vadd.f32 %v2424, %v2425
      %v2427 = vsel %vm861, %v2404, 0.0
      %v2428 = vadd.f32 %v2426, %v2427
      %v2429 = vsel %vm861, %v2405, 0.0
      %v2430 = vadd.f32 %v2428, %v2429
      %v2431 = vsel %vm861, %v2406, 0.0
      %v2432 = vadd.f32 %v2430, %v2431
      %v2433 = vsel %vm861, %v2407, 0.0
      %v2434 = vadd.f32 %v2432, %v2433
      %v2435 = vsel %vm861, %v2408, 0.0
      %v2436 = vadd.f32 %v2434, %v2435
      %v2437 = vsel %vm861, %v2409, 0.0
      %v2438 = vadd.f32 %v2436, %v2437
      %v2439 = vsel %vm861, %v2410, 0.0
      %v2440 = vadd.f32 %v2438, %v2439
      %v2441 = vsel %vm861, %v2411, 0.0
      %v2442 = vadd.f32 %v2440, %v2441
      %v2443 = vrot.slane %v2442, 4
      %v2444 = vadd.f32 %v2442, %v2443
      %v2445 = vrot.slane %v2444, 2
      %v2446 = vadd.f32 %v2444, %v2445
      %v2447 = vrot.slane %v2446, 1
      %v2448 = vadd.f32 %v2446, %v2447
      %v2449 = vlaneseq
      %v2450 = vshrl.u32 %v2449, 7
      %vm2451 = vcmp.eq.s32.totalorder %v2450, 0
      %vm2452 = vcmp.eq.s32.totalorder %v2450, 1
      %v2453 = vsel %vm2452, %v2448, 0.0
      %v2454 = vsel %vm2451, %v2395, %v2453
      %2455 = vst.msk [vmem:[%s657] sm:$0xff] %vm861, %v2454
      %s2456 = smul.u32 8, %s25
      %p2457 = scmp.lt.s32.totalorder %s24, 1
      %s2458 = scalar_select %p2457, %s24, 1
      %p2459 = scmp.lt.s32.totalorder %s2456, 15
      %s2460 = scalar_select %p2459, %s2456, 15
      %s2461 = smul.addr %s2460, 2
      %s2462 = smul.addr %s2458, 32
      %s2463 = sadd.s32 %s2461, %s2462
      %s2464 = smul.addr %s2463, 4
      %s2465 = scalar_lea.vmem %s7, %s2464
      %p2466 = scmp.lt.s32.totalorder %s24, 1
      %s2467 = scalar_select %p2466, %s24, 1
      %p2468 = scmp.lt.s32.totalorder %s25, 1
      %s2469 = scalar_select %p2468, %s25, 1
      %s2470 = smul.addr %s2467, 2
      %s2471 = sadd.s32 %s2469, %s2470
      %s2472 = smul.addr %s2471, 8
      %s2473 = scalar_lea.vmem %s8, %s2472
      // Predicated region
      $region49: #{up_block_forward.5} parent=47 // pred_check
        %p2474 = pneg %p273
      $region50: #{up_block_forward.5} parent=47 // pred_check_branch
        %2476 = sbr.rel (%p2474) target = $region52
      $region51: #{up_block_forward.5} parent=47 // pred_region
        %s2477 = smul.u32 8, %s25
      $region52: #{up_block_forward.5} parent=47 // pred_fallthru
        _
      // Predicated region
      $region53: #{up_block_forward.5} parent=47 // pred_check
        %p2478 = pneg %p301
      $region54: #{up_block_forward.5} parent=47 // pred_check_branch
        %2480 = sbr.rel (%p2478) target = $region56
      $region55: #{up_block_forward.5} parent=47 // pred_region
        _
      $region56: #{up_block_forward.5} parent=47 // pred_fallthru
        _
    $region48: #{up_block_forward.5} parent=5 // pred_fallthru
      _
    %p2481 = scmp.le.s32.totalorder 2, %s15
    // Predicated region
    $region57: #{up_block_forward.5} parent=5 // pred_check
      %p2482 = pneg %p2481
    $region58: #{up_block_forward.5} parent=5 // pred_check_branch
      %2484 = sbr.rel (%p2482) target = $region60
    $region59: #{up_block_forward.5} parent=5 // pred_region
      %s2485 = ssub.s32 %s15, 2
      // Predicated region
      $region61: #{up_block_forward.5} parent=59 // pred_check
        %p2486 = pneg %p279
      $region62: #{up_block_forward.5} parent=59 // pred_check_branch
        %2488 = sbr.rel (%p2486) target = $region64
      $region63: #{up_block_forward.5} parent=59 // pred_region
        %s2489 = smul.u32 8, %s27
        %p2490 = scmp.lt.s32.totalorder %s26, 1
        %s2491 = scalar_select %p2490, %s26, 1
        %p2492 = scmp.lt.s32.totalorder %s2489, 15
        %s2493 = scalar_select %p2492, %s2489, 15
        %s2494 = smul.addr %s2493, 2
        %s2495 = smul.addr %s2491, 32
        %s2496 = sadd.s32 %s2494, %s2495
        %s2497 = smul.addr %s2496, 4
        %s2498 = scalar_lea.vmem %s7, %s2497
      $region64: #{up_block_forward.5} parent=59 // pred_fallthru
        _
      // Predicated region
      $region65: #{up_block_forward.5} parent=59 // pred_check
        %p2499 = pneg %p307
      $region66: #{up_block_forward.5} parent=59 // pred_check_branch
        %2501 = sbr.rel (%p2499) target = $region68
      $region67: #{up_block_forward.5} parent=59 // pred_region
        %p2502 = scmp.lt.s32.totalorder %s26, 1
        %s2503 = scalar_select %p2502, %s26, 1
        %p2504 = scmp.lt.s32.totalorder %s27, 1
        %s2505 = scalar_select %p2504, %s27, 1
        %s2506 = smul.addr %s2503, 2
        %s2507 = sadd.s32 %s2505, %s2506
        %s2508 = smul.addr %s2507, 8
        %s2509 = scalar_lea.vmem %s8, %s2508
      $region68: #{up_block_forward.5} parent=59 // pred_fallthru
        _
    $region60: #{up_block_forward.5} parent=5 // pred_fallthru
      _
  $region6: #{up_block_forward.5} parent=0 // loop_footer
    %s19 = sadd.s32 1, %s15
  $region7: #{up_block_forward.5} parent=0 // loop_footer_branch
    %14 = sbr.rel target = $region3
  $region8: #{up_block_forward.5} parent=0 // loop_exit
    _

// kernel: up_block_forward.6
$region0: #{up_block_forward.6}
  #allocation0 [shape = 'u32[]', space=smem, size = 0x4, offset = 0x4, fixed_abs, tag = 'smem constant byte address 0x4 - core index']
  #allocation1 [shape = 'u32[144,128]{1,0:T(1,128)}', space=vmem, size = 0x12000, scoped, tag = 'internal scratch']
  %s0 = inlined_call_operand.vmem [shape: bf16[2,16,16,4], index: 0, kind: input, shape index: {}, may-alias: {0,1,2}]
  %s1 = inlined_call_operand.vmem [shape: bf16[2,16,16,4], index: 1, kind: input, shape index: {}, may-alias: {0,1,2}]
  %s2 = inlined_call_operand.vmem [shape: bf16[2,16,16,4], index: 2, kind: input, shape index: {}, may-alias: {0,1,2}]
  %s3 = inlined_call_operand.vmem [shape: bf16[3,3,4,4], index: 3, kind: input, shape index: {}]
  %s4 = inlined_call_operand.vmem [shape: f32[1,4], index: 4, kind: input, shape index: {}]
  %s5 = inlined_call_operand.vmem [shape: f32[1,4], index: 5, kind: input, shape index: {}]
  %s6 = inlined_call_operand.vmem [shape: bf16[2,16,16,4], index: 6, kind: output, shape index: {0}]
  %s7 = inlined_call_operand.vmem [shape: f32[2,2,8,4], index: 7, kind: output, shape index: {1}]
  %8 = xla_tuple %s6, %s7
  %s9 = sld [smem:[#allocation0]]
  $region65: #{up_block_forward.6} parent=0
    _
  %s11 = ssub.s32 1, %s9
  %s12 = scalar_select 0, %s11, %s9
  loop: start=0, step=1, limit=6
  $region2: #{up_block_forward.6} parent=0 // loop_pre_header
    _
  $region3: #{up_block_forward.6} parent=0 // loop_header
    %s14 = sphi 0, %s18
    %p15 = scmp.ge.s32.totalorder %s14, 6
    %s21 = sphi 0, %s33
    %s22 = sphi 0, %s29
    %s23 = sphi 0, %s21
    %s24 = sphi 0, %s22
    %s25 = sphi 0, %s23
    %s26 = sphi 0, %s24
    %s38 = sphi 0, %s40
    %s41 = sphi 0, %s38
    %s42 = sphi 0, %s41
    %s58 = sphi 0, %s42
    %s74 = sphi 0, %s76
    %s77 = sphi 0, %s74
    %s78 = sphi 0, %s77
    %s94 = sphi 0, %s78
    %s110 = sphi 0, %s112
    %s113 = sphi 0, %s110
    %s114 = sphi 0, %s113
    %s130 = sphi 0, %s114
    %s134 = sphi 0, %s134
    %s136 = sphi 0, %s134
    %s137 = sphi 0, %s136
    %s151 = sphi 0, %s137
    %s155 = sphi 0, %s155
    %s157 = sphi 0, %s155
    %s158 = sphi 0, %s157
    %s172 = sphi 0, %s158
    %s176 = sphi 0, %s176
    %s178 = sphi 0, %s176
    %s179 = sphi 0, %s178
    %s193 = sphi 0, %s179
    %s201 = sphi 0, %s203
    %s204 = sphi 0, %s201
    %s205 = sphi 0, %s204
    %s221 = sphi 0, %s205
    %s229 = sphi 0, %s231
    %s232 = sphi 0, %s229
    %s233 = sphi 0, %s232
    %s249 = sphi 0, %s233
  $region4: #{up_block_forward.6} parent=0 // loop_header_branch
    %17 = sbr.rel (%p15) target = $region8
  $region5: #{up_block_forward.6} parent=0 // loop_body
    %s19 = ssub.s32 %s14, 1
    %s20 = ssub.s32 %s14, 2
    %s27 = sadd.s32 1, %s22
    %p28 = scmp.ge.s32.totalorder %s27, 2
    %s29 = scalar_select %p28, 0, %s27
    %s30 = sadd.s32 1, %s21
    %s31 = scalar_select %p28, %s30, %s21
    %p32 = scmp.ge.s32.totalorder %s31, 2
    %s33 = scalar_select %p32, 0, %s31
    %s34 = ssub.s32 %s21, %s33
    %s35 = ssub.s32 %s22, %s29
    %s36 = sor.u32 %s34, %s35
    %p37 = scmp.eq.s32.totalorder %s36, 0
    %s39 = sadd.s32 %s38, 1
    %s40 = scalar_select %p37, %s38, %s39
    %p43 = pneg %p37
    %p44 = scmp.eq.s32.totalorder %s14, 3
    %p45 = por %p43, %p44
    %p46 = scmp.ne.s32.totalorder %s38, %s41
    %p47 = scmp.eq.s32.totalorder %s14, 0
    %p48 = por %p46, %p47
    %p49 = scmp.ne.s32.totalorder %s38, %s41
    %p50 = scmp.eq.s32.totalorder %s19, 3
    %p51 = por %p49, %p50
    %p52 = scmp.ne.s32.totalorder %s41, %s42
    %p53 = scmp.eq.s32.totalorder %s19, 0
    %p54 = por %p52, %p53
    %p55 = scmp.ne.s32.totalorder %s41, %s42
    %p56 = scmp.eq.s32.totalorder %s20, 3
    %p57 = por %p55, %p56
    %p59 = scmp.ne.s32.totalorder %s42, %s58
    %p60 = scmp.eq.s32.totalorder %s20, 0
    %p61 = por %p59, %p60
    %s62 = smul.u32 %s22, 8
    %s63 = ssub.s32 %s62, 1
    %p64 = scmp.gt.s32.totalorder %s63, 0
    %s65 = scalar_select %p64, %s63, 0
    %s66 = smul.u32 %s29, 8
    %s67 = ssub.s32 %s66, 1
    %p68 = scmp.gt.s32.totalorder %s67, 0
    %s69 = scalar_select %p68, %s67, 0
    %s70 = ssub.s32 %s21, %s33
    %s71 = ssub.s32 %s65, %s69
    %s72 = sor.u32 %s70, %s71
    %p73 = scmp.eq.s32.totalorder %s72, 0
    %s75 = sadd.s32 %s74, 1
    %s76 = scalar_select %p73, %s74, %s75
    %p79 = pneg %p73
    %p80 = scmp.eq.s32.totalorder %s14, 3
    %p81 = por %p79, %p80
    %p82 = scmp.ne.s32.totalorder %s74, %s77
    %p83 = scmp.eq.s32.totalorder %s14, 0
    %p84 = por %p82, %p83
    %p85 = scmp.ne.s32.totalorder %s74, %s77
    %p86 = scmp.eq.s32.totalorder %s19, 3
    %p87 = por %p85, %p86
    %p88 = scmp.ne.s32.totalorder %s77, %s78
    %p89 = scmp.eq.s32.totalorder %s19, 0
    %p90 = por %p88, %p89
    %p91 = scmp.ne.s32.totalorder %s77, %s78
    %p92 = scmp.eq.s32.totalorder %s20, 3
    %p93 = por %p91, %p92
    %p95 = scmp.ne.s32.totalorder %s78, %s94
    %p96 = scmp.eq.s32.totalorder %s20, 0
    %p97 = por %p95, %p96
    %s98 = smul.u32 %s22, 8
    %s99 = sadd.s32 %s98, 8
    %p100 = scmp.lt.s32.totalorder %s99, 15
    %s101 = scalar_select %p100, %s99, 15
    %s102 = smul.u32 %s29, 8
    %s103 = sadd.s32 %s102, 8
    %p104 = scmp.lt.s32.totalorder %s103, 15
    %s105 = scalar_select %p104, %s103, 15
    %s106 = ssub.s32 %s21, %s33
    %s107 = ssub.s32 %s101, %s105
    %s108 = sor.u32 %s106, %s107
    %p109 = scmp.eq.s32.totalorder %s108, 0
    %s111 = sadd.s32 %s110, 1
    %s112 = scalar_select %p109, %s110, %s111
    %p115 = pneg %p109
    %p116 = scmp.eq.s32.totalorder %s14, 3
    %p117 = por %p115, %p116
    %p118 = scmp.ne.s32.totalorder %s110, %s113
    %p119 = scmp.eq.s32.totalorder %s14, 0
    %p120 = por %p118, %p119
    %p121 = scmp.ne.s32.totalorder %s110, %s113
    %p122 = scmp.eq.s32.totalorder %s19, 3
    %p123 = por %p121, %p122
    %p124 = scmp.ne.s32.totalorder %s113, %s114
    %p125 = scmp.eq.s32.totalorder %s19, 0
    %p126 = por %p124, %p125
    %p127 = scmp.ne.s32.totalorder %s113, %s114
    %p128 = scmp.eq.s32.totalorder %s20, 3
    %p129 = por %p127, %p128
    %p131 = scmp.ne.s32.totalorder %s114, %s130
    %p132 = scmp.eq.s32.totalorder %s20, 0
    %p133 = por %p131, %p132
    %s135 = sadd.s32 %s134, 1
    %p138 = scmp.eq.s32.totalorder %s14, 3
    %p139 = scmp.ne.s32.totalorder %s134, %s136
    %p140 = scmp.eq.s32.totalorder %s14, 0
    %p141 = por %p139, %p140
    %p142 = scmp.ne.s32.totalorder %s134, %s136
    %p143 = scmp.eq.s32.totalorder %s19, 3
    %p144 = por %p142, %p143
    %p145 = scmp.ne.s32.totalorder %s136, %s137
    %p146 = scmp.eq.s32.totalorder %s19, 0
    %p147 = por %p145, %p146
    %p148 = scmp.ne.s32.totalorder %s136, %s137
    %p149 = scmp.eq.s32.totalorder %s20, 3
    %p150 = por %p148, %p149
    %p152 = scmp.ne.s32.totalorder %s137, %s151
    %p153 = scmp.eq.s32.totalorder %s20, 0
    %p154 = por %p152, %p153
    %s156 = sadd.s32 %s155, 1
    %p159 = scmp.eq.s32.totalorder %s14, 3
    %p160 = scmp.ne.s32.totalorder %s155, %s157
    %p161 = scmp.eq.s32.totalorder %s14, 0
    %p162 = por %p160, %p161
    %p163 = scmp.ne.s32.totalorder %s155, %s157
    %p164 = scmp.eq.s32.totalorder %s19, 3
    %p165 = por %p163, %p164
    %p166 = scmp.ne.s32.totalorder %s157, %s158
    %p167 = scmp.eq.s32.totalorder %s19, 0
    %p168 = por %p166, %p167
    %p169 = scmp.ne.s32.totalorder %s157, %s158
    %p170 = scmp.eq.s32.totalorder %s20, 3
    %p171 = por %p169, %p170
    %p173 = scmp.ne.s32.totalorder %s158, %s172
    %p174 = scmp.eq.s32.totalorder %s20, 0
    %p175 = por %p173, %p174
    %s177 = sadd.s32 %s176, 1
    %p180 = scmp.eq.s32.totalorder %s14, 3
    %p181 = scmp.ne.s32.totalorder %s176, %s178
    %p182 = scmp.eq.s32.totalorder %s14, 0
    %p183 = por %p181, %p182
    %p184 = scmp.ne.s32.totalorder %s176, %s178
    %p185 = scmp.eq.s32.totalorder %s19, 3
    %p186 = por %p184, %p185
    %p187 = scmp.ne.s32.totalorder %s178, %s179
    %p188 = scmp.eq.s32.totalorder %s19, 0
    %p189 = por %p187, %p188
    %p190 = scmp.ne.s32.totalorder %s178, %s179
    %p191 = scmp.eq.s32.totalorder %s20, 3
    %p192 = por %p190, %p191
    %p194 = scmp.ne.s32.totalorder %s179, %s193
    %p195 = scmp.eq.s32.totalorder %s20, 0
    %p196 = por %p194, %p195
    %s197 = ssub.s32 %s21, %s33
    %s198 = ssub.s32 %s22, %s29
    %s199 = sor.u32 %s197, %s198
    %p200 = scmp.eq.s32.totalorder %s199, 0
    %s202 = sadd.s32 %s201, 1
    %s203 = scalar_select %p200, %s201, %s202
    %p206 = pneg %p200
    %p207 = scmp.eq.s32.totalorder %s14, 3
    %p208 = por %p206, %p207
    %p209 = scmp.ne.s32.totalorder %s201, %s204
    %p210 = scmp.eq.s32.totalorder %s14, 0
    %p211 = por %p209, %p210
    %p212 = scmp.ne.s32.totalorder %s201, %s204
    %p213 = scmp.eq.s32.totalorder %s19, 3
    %p214 = por %p212, %p213
    %p215 = scmp.ne.s32.totalorder %s204, %s205
    %p216 = scmp.eq.s32.totalorder %s19, 0
    %p217 = por %p215, %p216
    %p218 = scmp.ne.s32.totalorder %s204, %s205
    %p219 = scmp.eq.s32.totalorder %s20, 3
    %p220 = por %p218, %p219
    %p222 = scmp.ne.s32.totalorder %s205, %s221
    %p223 = scmp.eq.s32.totalorder %s20, 0
    %p224 = por %p222, %p223
    %s225 = ssub.s32 %s21, %s33
    %s226 = ssub.s32 %s22, %s29
    %s227 = sor.u32 %s225, %s226
    %p228 = scmp.eq.s32.totalorder %s227, 0
    %s230 = sadd.s32 %s229, 1
    %s231 = scalar_select %p228, %s229, %s230
    %p234 = pneg %p228
    %p235 = scmp.eq.s32.totalorder %s14, 3
    %p236 = por %p234, %p235
    %p237 = scmp.ne.s32.totalorder %s229, %s232
    %p238 = scmp.eq.s32.totalorder %s14, 0
    %p239 = por %p237, %p238
    %p240 = scmp.ne.s32.totalorder %s229, %s232
    %p241 = scmp.eq.s32.totalorder %s19, 3
    %p242 = por %p240, %p241
    %p243 = scmp.ne.s32.totalorder %s232, %s233
    %p244 = scmp.eq.s32.totalorder %s19, 0
    %p245 = por %p243, %p244
    %p246 = scmp.ne.s32.totalorder %s232, %s233
    %p247 = scmp.eq.s32.totalorder %s20, 3
    %p248 = por %p246, %p247
    %p250 = scmp.ne.s32.totalorder %s233, %s249
    %p251 = scmp.eq.s32.totalorder %s20, 0
    %p252 = por %p250, %p251
    %p253 = scmp.le.s32.totalorder 1, %s14
    %p254 = scmp.lt.s32.totalorder %s14, 5
    %p255 = pnand %p253, %p254
    %p256 = pneg %p255
    // Predicated region
    $region9: #{up_block_forward.6} parent=5 // pred_check
      _
    $region10: #{up_block_forward.6} parent=5 // pred_check_branch
      %258 = sbr.rel (%p255) target = $region12
    $region11: #{up_block_forward.6} parent=5 // pred_region
      %s259 = ssub.s32 %s14, 1
      // Predicated region
      $region13: #{up_block_forward.6} parent=11 // pred_check
        %p260 = pneg %p147
      $region14: #{up_block_forward.6} parent=11 // pred_check_branch
        %262 = sbr.rel (%p260) target = $region16
      $region15: #{up_block_forward.6} parent=11 // pred_region
        _
      $region16: #{up_block_forward.6} parent=11 // pred_fallthru
        _
      // Predicated region
      $region17: #{up_block_forward.6} parent=11 // pred_check
        %p263 = pneg %p168
      $region18: #{up_block_forward.6} parent=11 // pred_check_branch
        %265 = sbr.rel (%p263) target = $region20
      $region19: #{up_block_forward.6} parent=11 // pred_region
        _
      $region20: #{up_block_forward.6} parent=11 // pred_fallthru
        _
      // Predicated region
      $region21: #{up_block_forward.6} parent=11 // pred_check
        %p266 = pneg %p189
      $region22: #{up_block_forward.6} parent=11 // pred_check_branch
        %268 = sbr.rel (%p266) target = $region24
      $region23: #{up_block_forward.6} parent=11 // pred_region
        _
      $region24: #{up_block_forward.6} parent=11 // pred_fallthru
        _
    $region12: #{up_block_forward.6} parent=5 // pred_fallthru
      _
    %p269 = scmp.lt.s32.totalorder %s14, 4
    // Predicated region
    $region25: #{up_block_forward.6} parent=5 // pred_check
      %p270 = pneg %p269
    $region26: #{up_block_forward.6} parent=5 // pred_check_branch
      %272 = sbr.rel (%p270) target = $region28
    $region27: #{up_block_forward.6} parent=5 // pred_region
      // Predicated region
      $region29: #{up_block_forward.6} parent=27 // pred_check
        %p273 = pneg %p48
      $region30: #{up_block_forward.6} parent=27 // pred_check_branch
        %275 = sbr.rel (%p273) target = $region32
      $region31: #{up_block_forward.6} parent=27 // pred_region
        %s276 = smul.u32 8, %s22
        %p277 = scmp.lt.s32.totalorder %s21, 1
        %s278 = scalar_select %p277, %s21, 1
        %p279 = scmp.lt.s32.totalorder %s276, 15
        %s280 = scalar_select %p279, %s276, 15
        %s281 = smul.addr %s280, 2
        %s282 = smul.addr %s278, 32
        %s283 = sadd.s32 %s281, %s282
        %s284 = smul.addr %s283, 4
        %s285 = scalar_lea.vmem %s0, %s284
        %s286 = smul.u32 8, %s22
      $region32: #{up_block_forward.6} parent=27 // pred_fallthru
        _
      // Predicated region
      $region33: #{up_block_forward.6} parent=27 // pred_check
        %p287 = pneg %p84
      $region34: #{up_block_forward.6} parent=27 // pred_check_branch
        %289 = sbr.rel (%p287) target = $region36
      $region35: #{up_block_forward.6} parent=27 // pred_region
        %s290 = smul.u32 %s22, 8
        %s291 = ssub.s32 %s290, 1
        %p292 = scmp.gt.s32.totalorder %s291, 0
        %s293 = scalar_select %p292, %s291, 0
        %p294 = scmp.lt.s32.totalorder %s21, 1
        %s295 = scalar_select %p294, %s21, 1
        %p296 = scmp.lt.s32.totalorder %s293, 15
        %s297 = scalar_select %p296, %s293, 15
        %s298 = smul.addr %s297, 2
        %s299 = smul.addr %s295, 32
        %s300 = sadd.s32 %s298, %s299
        %s301 = smul.addr %s300, 4
        %s302 = scalar_lea.vmem %s1, %s301
        %s303 = smul.u32 %s22, 8
        %s304 = ssub.s32 %s303, 1
        %p305 = scmp.gt.s32.totalorder %s304, 0
        %s306 = scalar_select %p305, %s304, 0
      $region36: #{up_block_forward.6} parent=27 // pred_fallthru
        _
      // Predicated region
      $region37: #{up_block_forward.6} parent=27 // pred_check
        %p307 = pneg %p120
      $region38: #{up_block_forward.6} parent=27 // pred_check_branch
        %309 = sbr.rel (%p307) target = $region40
      $region39: #{up_block_forward.6} parent=27 // pred_region
        %s310 = smul.u32 %s22, 8
        %s311 = sadd.s32 %s310, 8
        %p312 = scmp.lt.s32.totalorder %s311, 15
        %s313 = scalar_select %p312, %s311, 15
        %p314 = scmp.lt.s32.totalorder %s21, 1
        %s315 = scalar_select %p314, %s21, 1
        %p316 = scmp.lt.s32.totalorder %s313, 15
        %s317 = scalar_select %p316, %s313, 15
        %s318 = smul.addr %s317, 2
        %s319 = smul.addr %s315, 32
        %s320 = sadd.s32 %s318, %s319
        %s321 = smul.addr %s320, 4
        %s322 = scalar_lea.vmem %s2, %s321
        %s323 = smul.u32 %s22, 8
        %s324 = sadd.s32 %s323, 8
        %p325 = scmp.lt.s32.totalorder %s324, 15
        %s326 = scalar_select %p325, %s324, 15
      $region40: #{up_block_forward.6} parent=27 // pred_fallthru
        _
    $region28: #{up_block_forward.6} parent=5 // pred_fallthru
      _
    %p327 = scmp.le.s32.totalorder 1, %s14
    %p328 = scmp.lt.s32.totalorder %s14, 5
    %p329 = pnand %p327, %p328
    %p330 = pneg %p329
    // Predicated region
    $region41: #{up_block_forward.6} parent=5 // pred_check
      _
    $region42: #{up_block_forward.6} parent=5 // pred_check_branch
      %332 = sbr.rel (%p329) target = $region44
    $region43: #{up_block_forward.6} parent=5 // pred_region
      %s333 = ssub.s32 %s14, 1
      %s334 = smul.u32 8, %s24
      %p335 = scmp.lt.s32.totalorder %s23, 1
      %s336 = scalar_select %p335, %s23, 1
      %p337 = scmp.lt.s32.totalorder %s334, 15
      %s338 = scalar_select %p337, %s334, 15
      %s339 = smul.addr %s338, 2
      %s340 = smul.addr %s336, 32
      %s341 = sadd.s32 %s339, %s340
      %s342 = smul.addr %s341, 4
      %s343 = scalar_lea.vmem %s0, %s342
      %p344 = pneg %p54
      %p345 = pneg %p51
      %s346 = smul.u32 %s24, 8
      %s347 = ssub.s32 %s346, 1
      %p348 = scmp.gt.s32.totalorder %s347, 0
      %s349 = scalar_select %p348, %s347, 0
      %p350 = scmp.lt.s32.totalorder %s23, 1
      %s351 = scalar_select %p350, %s23, 1
      %p352 = scmp.lt.s32.totalorder %s349, 15
      %s353 = scalar_select %p352, %s349, 15
      %s354 = smul.addr %s353, 2
      %s355 = smul.addr %s351, 32
      %s356 = sadd.s32 %s354, %s355
      %s357 = smul.addr %s356, 4
      %s358 = scalar_lea.vmem %s1, %s357
      %p359 = pneg %p90
      %p360 = pneg %p87
      %s361 = smul.u32 %s24, 8
      %s362 = sadd.s32 %s361, 8
      %p363 = scmp.lt.s32.totalorder %s362, 15
      %s364 = scalar_select %p363, %s362, 15
      %p365 = scmp.lt.s32.totalorder %s23, 1
      %s366 = scalar_select %p365, %s23, 1
      %p367 = scmp.lt.s32.totalorder %s364, 15
      %s368 = scalar_select %p367, %s364, 15
      %s369 = smul.addr %s368, 2
      %s370 = smul.addr %s366, 32
      %s371 = sadd.s32 %s369, %s370
      %s372 = smul.addr %s371, 4
      %s373 = scalar_lea.vmem %s2, %s372
      %p374 = pneg %p126
      %p375 = pneg %p123
      %p376 = pneg %p147
      %p377 = pneg %p144
      %p378 = pneg %p168
      %p379 = pneg %p165
      %p380 = pneg %p189
      %p381 = pneg %p186
      %p382 = pneg %p217
      %p383 = pneg %p214
      %s384 = smul.u32 8, %s24
      %p385 = scmp.lt.s32.totalorder %s23, 1
      %s386 = scalar_select %p385, %s23, 1
      %p387 = scmp.lt.s32.totalorder %s384, 15
      %s388 = scalar_select %p387, %s384, 15
      %s389 = smul.addr %s388, 2
      %s390 = smul.addr %s386, 32
      %s391 = sadd.s32 %s389, %s390
      %s392 = smul.addr %s391, 4
      %s393 = scalar_lea.vmem %s6, %s392
      %p394 = pneg %p245
      %p395 = pneg %p242
      %p396 = scmp.lt.s32.totalorder %s23, 1
      %s397 = scalar_select %p396, %s23, 1
      %p398 = scmp.lt.s32.totalorder %s24, 1
      %s399 = scalar_select %p398, %s24, 1
      %s400 = smul.addr %s397, 2
      %s401 = sadd.s32 %s399, %s400
      %s402 = smul.addr %s401, 8
      %s403 = scalar_lea.vmem %s7, %s402
      %s404 = smul.u32 8, %s24
      %p405 = scmp.lt.s32.totalorder %s23, 1
      %s406 = scalar_select %p405, %s23, 1
      %p407 = scmp.lt.s32.totalorder %s404, 15
      %s408 = scalar_select %p407, %s404, 15
      %s409 = smul.addr %s408, 2
      %s410 = smul.addr %s406, 32
      %s411 = sadd.s32 %s409, %s410
      %s412 = smul.addr %s411, 4
      %s413 = scalar_lea.vmem %s0, %s412
      %s414 = smul.u32 8, %s24
      %s415 = smul.u32 %s24, 8
      %s416 = ssub.s32 %s415, 1
      %p417 = scmp.gt.s32.totalorder %s416, 0
      %s418 = scalar_select %p417, %s416, 0
      %p419 = scmp.lt.s32.totalorder %s23, 1
      %s420 = scalar_select %p419, %s23, 1
      %p421 = scmp.lt.s32.totalorder %s418, 15
      %s422 = scalar_select %p421, %s418, 15
      %s423 = smul.addr %s422, 2
      %s424 = smul.addr %s420, 32
      %s425 = sadd.s32 %s423, %s424
      %s426 = smul.addr %s425, 4
      %s427 = scalar_lea.vmem %s1, %s426
      %s428 = smul.u32 %s24, 8
      %s429 = ssub.s32 %s428, 1
      %p430 = scmp.gt.s32.totalorder %s429, 0
      %s431 = scalar_select %p430, %s429, 0
      %s432 = smul.u32 %s24, 8
      %s433 = sadd.s32 %s432, 8
      %p434 = scmp.lt.s32.totalorder %s433, 15
      %s435 = scalar_select %p434, %s433, 15
      %p436 = scmp.lt.s32.totalorder %s23, 1
      %s437 = scalar_select %p436, %s23, 1
      %p438 = scmp.lt.s32.totalorder %s435, 15
      %s439 = scalar_select %p438, %s435, 15
      %s440 = smul.addr %s439, 2
      %s441 = smul.addr %s437, 32
      %s442 = sadd.s32 %s440, %s441
      %s443 = smul.addr %s442, 4
      %s444 = scalar_lea.vmem %s2, %s443
      %s445 = smul.u32 %s24, 8
      %s446 = sadd.s32 %s445, 8
      %p447 = scmp.lt.s32.totalorder %s446, 15
      %s448 = scalar_select %p447, %s446, 15
      %s449 = smul.u32 8, %s24
      %p450 = scmp.lt.s32.totalorder %s23, 1
      %s451 = scalar_select %p450, %s23, 1
      %p452 = scmp.lt.s32.totalorder %s449, 15
      %s453 = scalar_select %p452, %s449, 15
      %s454 = smul.addr %s453, 2
      %s455 = smul.addr %s451, 32
      %s456 = sadd.s32 %s454, %s455
      %s457 = smul.addr %s456, 4
      %s458 = scalar_lea.vmem %s6, %s457
      %s459 = smul.u32 8, %s24
      %p460 = scmp.lt.s32.totalorder %s23, 1
      %s461 = scalar_select %p460, %s23, 1
      %p462 = scmp.lt.s32.totalorder %s24, 1
      %s463 = scalar_select %p462, %s24, 1
      %s464 = smul.addr %s461, 2
      %s465 = sadd.s32 %s463, %s464
      %s466 = smul.addr %s465, 8
      %s467 = scalar_lea.vmem %s7, %s466
      %p469 = scmp.gt.s32.totalorder %s24, 0
      %s470 = scalar_select %p469, 1, 0
      %s471 = scvt.s32.f32 %s470
      %p473 = scmp.ne.f32.partialorder %s471, %s471
      %s474 = sshrl.u32 %s471, 16
      %s475 = sand.u32 %s474, 1
      %s476 = sadd.s32 32767, %s475
      %s477 = sadd.s32 %s471, %s476
      %s478 = sand.u32 %s477, 4294901760
      %s479 = scalar_select %p473, 2143289344, %s478
      %s481 = sshrl.u32 %s479, 16
      %p482 = scmp.lt.s32.totalorder %s24, 1
      %s483 = scalar_select %p482, 1, 0
      %s484 = scvt.s32.f32 %s483
      %p486 = scmp.ne.f32.partialorder %s484, %s484
      %s487 = sshrl.u32 %s484, 16
      %s488 = sand.u32 %s487, 1
      %s489 = sadd.s32 32767, %s488
      %s490 = sadd.s32 %s484, %s489
      %s491 = sand.u32 %s490, 4294901760
      %s492 = scalar_select %p486, 2143289344, %s491
      %s494 = sshrl.u32 %s492, 16
      %v495 = vld [vmem:[%s413] sm:$0xf]
      %v496 = vld [vmem:[%s413 + $0x4] sm:$0xf]
      %v497 = vld [vmem:[%s413 + $0x8] sm:$0xf]
      %v498 = vld [vmem:[%s413 + $0xc] sm:$0xf]
      %v499 = vld [vmem:[%s413 + $0x10] sm:$0xf]
      %v500 = vld [vmem:[%s413 + $0x14] sm:$0xf]
      %v501 = vld [vmem:[%s413 + $0x18] sm:$0xf]
      %v502 = vld [vmem:[%s413 + $0x1c] sm:$0xf]
      %v503 = vld [vmem:[%s413 + $0x20] sm:$0xf]
      %v504 = vld [vmem:[%s413 + $0x24] sm:$0xf]
      %v505 = vld [vmem:[%s413 + $0x28] sm:$0xf]
      %v506 = vld [vmem:[%s413 + $0x2c] sm:$0xf]
      %v507 = vld [vmem:[%s413 + $0x30] sm:$0xf]
      %v508 = vld [vmem:[%s413 + $0x34] sm:$0xf]
      %v509 = vld [vmem:[%s413 + $0x38] sm:$0xf]
      %v510 = vld [vmem:[%s413 + $0x3c] sm:$0xf]
      %v511 = vunpack.c.l.bf16 %v495
      %v512 = vunpack.c.l.bf16 %v496
      %v513 = vunpack.c.l.bf16 %v497
      %v514 = vunpack.c.l.bf16 %v498
      %v515 = vunpack.c.l.bf16 %v499
      %v516 = vunpack.c.l.bf16 %v500
      %v517 = vunpack.c.l.bf16 %v501
      %v518 = vunpack.c.l.bf16 %v502
      %v519 = vunpack.c.l.bf16 %v503
      %v520 = vunpack.c.l.bf16 %v504
      %v521 = vunpack.c.l.bf16 %v505
      %v522 = vunpack.c.l.bf16 %v506
      %v523 = vunpack.c.l.bf16 %v507
      %v524 = vunpack.c.l.bf16 %v508
      %v525 = vunpack.c.l.bf16 %v509
      %v526 = vunpack.c.l.bf16 %v510
      %v527 = vld [vmem:[%s4] sm:$0x1]
      %v529 = vlaneseq
      %v530 = vshrl.u32 %v529, 7
      %v531 = vsub.s32 0, %v530
      %v532 = vrot.slane %v527, %v531
      %v534 = vmul.f32 %v511, %v532
      %v535 = vmul.f32 %v512, %v532
      %v536 = vmul.f32 %v513, %v532
      %v537 = vmul.f32 %v514, %v532
      %v538 = vmul.f32 %v515, %v532
      %v539 = vmul.f32 %v516, %v532
      %v540 = vmul.f32 %v517, %v532
      %v541 = vmul.f32 %v518, %v532
      %v542 = vmul.f32 %v519, %v532
      %v543 = vmul.f32 %v520, %v532
      %v544 = vmul.f32 %v521, %v532
      %v545 = vmul.f32 %v522, %v532
      %v546 = vmul.f32 %v523, %v532
      %v547 = vmul.f32 %v524, %v532
      %v548 = vmul.f32 %v525, %v532
      %v549 = vmul.f32 %v526, %v532
      %v550 = vld [vmem:[%s5] sm:$0x1]
      %v552 = vlaneseq
      %v553 = vshrl.u32 %v552, 7
      %v554 = vsub.s32 0, %v553
      %v555 = vrot.slane %v550, %v554
      %v557 = vadd.f32 %v534, %v555
      %v558 = vadd.f32 %v535, %v555
      %v559 = vadd.f32 %v536, %v555
      %v560 = vadd.f32 %v537, %v555
      %v561 = vadd.f32 %v538, %v555
      %v562 = vadd.f32 %v539, %v555
      %v563 = vadd.f32 %v540, %v555
      %v564 = vadd.f32 %v541, %v555
      %v565 = vadd.f32 %v542, %v555
      %v566 = vadd.f32 %v543, %v555
      %v567 = vadd.f32 %v544, %v555
      %v568 = vadd.f32 %v545, %v555
      %v569 = vadd.f32 %v546, %v555
      %v570 = vadd.f32 %v547, %v555
      %v571 = vadd.f32 %v548, %v555
      %v572 = vadd.f32 %v549, %v555
      %v573 = vmax.f32 %v557, 0.0
      %v574 = vmax.f32 %v558, 0.0
      %v575 = vmax.f32 %v559, 0.0
      %v576 = vmax.f32 %v560, 0.0
      %v577 = vmax.f32 %v561, 0.0
      %v578 = vmax.f32 %v562, 0.0
      %v579 = vmax.f32 %v563, 0.0
      %v580 = vmax.f32 %v564, 0.0
      %v581 = vmax.f32 %v565, 0.0
      %v582 = vmax.f32 %v566, 0.0
      %v583 = vmax.f32 %v567, 0.0
      %v584 = vmax.f32 %v568, 0.0
      %v585 = vmax.f32 %v569, 0.0
      %v586 = vmax.f32 %v570, 0.0
      %v587 = vmax.f32 %v571, 0.0
      %v588 = vmax.f32 %v572, 0.0
      %v589 = vpack.c.bf16 %v574, %v573
      %v590 = vpack.c.bf16 %v576, %v575
      %v591 = vpack.c.bf16 %v578, %v577
      %v592 = vpack.c.bf16 %v580, %v579
      %v593 = vpack.c.bf16 %v582, %v581
      %v594 = vpack.c.bf16 %v584, %v583
      %v595 = vpack.c.bf16 %v586, %v585
      %v596 = vpack.c.bf16 %v588, %v587
      %v597 = vld [vmem:[%s427] sm:$0xf]
      %v598 = vld [vmem:[%s427 + $0x4] sm:$0xf]
      %v599 = vunpack.c.l.bf16 %v597
      %v600 = vunpack.c.l.bf16 %v598
      %v601 = vmul.f32 %v599, %v532
      %v602 = vmul.f32 %v600, %v532
      %v603 = vadd.f32 %v601, %v555
      %v604 = vadd.f32 %v602, %v555
      %v605 = vmax.f32 %v603, 0.0
      %v606 = vmax.f32 %v604, 0.0
      %v607 = vpack.c.bf16 %v606, %v605
      %s608 = sshll.u32 %s481, 16
      %s609 = sor.u32 %s481, %s608
      %v610 = vstv %s609
      %v612 = vmul.bf16 %v607, %v610
      %v613 = vld [vmem:[%s444] sm:$0xf]
      %v614 = vld [vmem:[%s444 + $0x4] sm:$0xf]
      %v615 = vunpack.c.l.bf16 %v613
      %v616 = vunpack.c.l.bf16 %v614
      %v617 = vmul.f32 %v615, %v532
      %v618 = vmul.f32 %v616, %v532
      %v619 = vadd.f32 %v617, %v555
      %v620 = vadd.f32 %v618, %v555
      %v621 = vmax.f32 %v619, 0.0
      %v622 = vmax.f32 %v620, 0.0
      %v623 = vpack.c.bf16 %v622, %v621
      %s624 = sshll.u32 %s494, 16
      %s625 = sor.u32 %s494, %s624
      %v626 = vstv %s625
      %v628 = vmul.bf16 %v623, %v626
      %v630 = vshrl.u32 %v612, 16
      %v632 = vrot.slane %v630, 7
      %v633 = vshll.u32 %v612, 16
      %v635 = vor.u32 %v632, %v633
      %v637 = vshrl.u32 %v589, 16
      %v639 = vrot.slane %v637, 7
      %v640 = vshll.u32 %v589, 16
      %v642 = vor.u32 %v639, %v640
      %v644 = vshrl.u32 %v590, 16
      %v646 = vrot.slane %v644, 7
      %v647 = vshll.u32 %v590, 16
      %v649 = vor.u32 %v646, %v647
      %v651 = vshrl.u32 %v591, 16
      %v653 = vrot.slane %v651, 7
      %v654 = vshll.u32 %v591, 16
      %v656 = vor.u32 %v653, %v654
      %v658 = vshrl.u32 %v592, 16
      %v660 = vrot.slane %v658, 7
      %v661 = vshll.u32 %v592, 16
      %v663 = vor.u32 %v660, %v661
      %v665 = vshrl.u32 %v593, 16
      %v667 = vrot.slane %v665, 7
      %v668 = vshll.u32 %v593, 16
      %v670 = vor.u32 %v667, %v668
      %v672 = vshrl.u32 %v594, 16
      %v674 = vrot.slane %v672, 7
      %v675 = vshll.u32 %v594, 16
      %v677 = vor.u32 %v674, %v675
      %v679 = vshrl.u32 %v595, 16
      %v681 = vrot.slane %v679, 7
      %v682 = vshll.u32 %v595, 16
      %v684 = vor.u32 %v681, %v682
      %v686 = vshrl.u32 %v596, 16
      %v688 = vrot.slane %v686, 7
      %v689 = vshll.u32 %v596, 16
      %v691 = vor.u32 %v688, %v689
      %v693 = vshrl.u32 %v628, 16
      %v695 = vrot.slane %v693, 7
      %v696 = vshll.u32 %v628, 16
      %v698 = vor.u32 %v695, %v696
      %vm719 = vcmask 1040384
      %vm720 = vsmask.f32 256
      %vm721 = vmand %vm719, %vm720
      %v722 = vsel %vm721, 0, %v635
      %v723 = vsel %vm721, 0, %v642
      %v724 = vsel %vm721, 0, %v649
      %v725 = vsel %vm721, 0, %v656
      %v726 = vsel %vm721, 0, %v663
      %v727 = vsel %vm721, 0, %v670
      %v728 = vsel %vm721, 0, %v677
      %v729 = vsel %vm721, 0, %v684
      %v730 = vsel %vm721, 0, %v691
      %v731 = vsel %vm721, 0, %v698
      %v732 = vsel %vm721, %v632, 0
      %v733 = vsel %vm721, %v639, 0
      %v734 = vsel %vm721, %v646, 0
      %v735 = vsel %vm721, %v653, 0
      %v736 = vsel %vm721, %v660, 0
      %v737 = vsel %vm721, %v667, 0
      %v738 = vsel %vm721, %v674, 0
      %v739 = vsel %vm721, %v681, 0
      %v740 = vsel %vm721, %v688, 0
      %v741 = vsel %vm721, %v695, 0
      %v742 = vld [vmem:[%s3] sm:$0x3]
      %s743 = scalar_lea.vmem %s3, 6
      %v744 = vld [vmem:[%s743] sm:$0x3]
      %vm745 = vcmask 31744
      %v747 = vsel %vm745, %v723, 0
      %v750 = vsel %vm745, %v724, 0
      %v753 = vsel %vm745, %v725, 0
      %v756 = vsel %vm745, %v726, 0
      %v759 = vsel %vm745, %v727, 0
      %v762 = vsel %vm745, %v728, 0
      %v765 = vsel %vm745, %v729, 0
      %v768 = vsel %vm745, %v730, 0
      %vm770 = vcmask 1041408
      %v772 = vsel %vm770, %v744, 0
      %774 = vmatprep.subr.bf16.mxu0 0
      %775 = vmatpush1.bf16.msra.mxu0 0
      %776 = vmatprep.subr.bf16.mxu0 0
      %777 = vmatpush1.bf16.msra.mxu0 0
      %778 = vmatprep.subr.bf16.mxu0 0
      %779 = vmatpush1.bf16.msra.mxu0 0
      %780 = vmatprep.subr.bf16.mxu0 0
      %781 = vmatpush1.bf16.msra.mxu0 0
      %782 = vmatprep.subr.bf16.mxu0 0
      %783 = vmatpush1.bf16.msra.mxu0 0
      %784 = vmatprep.subr.bf16.mxu0 0
      %785 = vmatpush1.bf16.msra.mxu0 0
      %786 = vmatprep.subr.bf16.mxu0 0
      %787 = vmatpush1.bf16.msra.mxu0 0
      %788 = vmatprep.subr.bf16.mxu0 0
      %789 = vmatpush1.bf16.msra.mxu0 %v772
      %790 = vmatprep.subr.bf16.mxu0 0
      %791 = vmatpush2.bf16.msra.mxu0 0
      %792 = vmatprep.subr.bf16.mxu0 0
      %793 = vmatpush2.bf16.msra.mxu0 0
      %794 = vmatprep.subr.bf16.mxu0 0
      %795 = vmatpush2.bf16.msra.mxu0 0
      %796 = vmatprep.subr.bf16.mxu0 0
      %797 = vmatpush2.bf16.msra.mxu0 0
      %798 = vmatprep.subr.bf16.mxu0 0
      %799 = vmatpush2.bf16.msra.mxu0 0
      %800 = vmatprep.subr.bf16.mxu0 0
      %801 = vmatpush2.bf16.msra.mxu0 0
      %802 = vmatprep.subr.bf16.mxu0 0
      %803 = vmatpush2.bf16.msra.mxu0 0
      %804 = vmatprep.subr.bf16.mxu0 0
      %805 = vmatpush2.bf16.msra.mxu0 0
      %806 = vmatprep.mubr.bf16.mxu0 0
      %807 = vmatmul.mubr.bf16.gmra.mxu0 %v747
      %v808 = vpop.f32.mrf.mxu0
      %v809 = vadd.f32 0.0, %v808
      %v810 = vpop.f32.mrf.mxu0
      %v811 = vpop.f32.mrf.mxu0
      %v812 = vadd.f32 0.0, %v811
      %v813 = vpop.f32.mrf.mxu0
      %814 = vmatprep.mubr.bf16.mxu0 0
      %815 = vmatmul.mubr.bf16.gmra.mxu0 %v750
      %v816 = vpop.f32.mrf.mxu0
      %v817 = vadd.f32 0.0, %v816
      %v818 = vpop.f32.mrf.mxu0
      %v819 = vpop.f32.mrf.mxu0
      %v820 = vadd.f32 0.0, %v819
      %v821 = vpop.f32.mrf.mxu0
      %822 = vmatprep.mubr.bf16.mxu0 0
      %823 = vmatmul.mubr.bf16.gmra.mxu0 %v753
      %v824 = vpop.f32.mrf.mxu0
      %v825 = vadd.f32 0.0, %v824
      %v826 = vpop.f32.mrf.mxu0
      %v827 = vpop.f32.mrf.mxu0
      %v828 = vadd.f32 0.0, %v827
      %v829 = vpop.f32.mrf.mxu0
      %830 = vmatprep.mubr.bf16.mxu0 0
      %831 = vmatmul.mubr.bf16.gmra.mxu0 %v756
      %v832 = vpop.f32.mrf.mxu0
      %v833 = vadd.f32 0.0, %v832
      %v834 = vpop.f32.mrf.mxu0
      %v835 = vpop.f32.mrf.mxu0
      %v836 = vadd.f32 0.0, %v835
      %v837 = vpop.f32.mrf.mxu0
      %838 = vmatprep.mubr.bf16.mxu0 0
      %839 = vmatmul.mubr.bf16.gmra.mxu0 %v759
      %v840 = vpop.f32.mrf.mxu0
      %v841 = vadd.f32 0.0, %v840
      %v842 = vpop.f32.mrf.mxu0
      %v843 = vpop.f32.mrf.mxu0
      %v844 = vadd.f32 0.0, %v843
      %v845 = vpop.f32.mrf.mxu0
      %846 = vmatprep.mubr.bf16.mxu0 0
      %847 = vmatmul.mubr.bf16.gmra.mxu0 %v762
      %v848 = vpop.f32.mrf.mxu0
      %v849 = vadd.f32 0.0, %v848
      %v850 = vpop.f32.mrf.mxu0
      %v851 = vpop.f32.mrf.mxu0
      %v852 = vadd.f32 0.0, %v851
      %v853 = vpop.f32.mrf.mxu0
      %854 = vmatprep.mubr.bf16.mxu0 0
      %855 = vmatmul.mubr.bf16.gmra.mxu0 %v765
      %v856 = vpop.f32.mrf.mxu0
      %v857 = vadd.f32 0.0, %v856
      %v858 = vpop.f32.mrf.mxu0
      %v859 = vpop.f32.mrf.mxu0
      %v860 = vadd.f32 0.0, %v859
      %v861 = vpop.f32.mrf.mxu0
      %862 = vmatprep.mubr.bf16.mxu0 0
      %863 = vmatmul.mubr.bf16.gmra.mxu0 %v768
      %v864 = vpop.f32.mrf.mxu0
      %v865 = vadd.f32 0.0, %v864
      %v866 = vpop.f32.mrf.mxu0
      %v867 = vpop.f32.mrf.mxu0
      %v868 = vadd.f32 0.0, %v867
      %v869 = vpop.f32.mrf.mxu0
      %870 = vdwg.mxu0
      %v872 = vsel %vm745, %v722, 0
      %v875 = vsel %vm770, %v742, 0
      %877 = vmatprep.subr.bf16.mxu0 0
      %878 = vmatpush1.bf16.msra.mxu0 0
      %879 = vmatprep.subr.bf16.mxu0 0
      %880 = vmatpush1.bf16.msra.mxu0 0
      %881 = vmatprep.subr.bf16.mxu0 0
      %882 = vmatpush1.bf16.msra.mxu0 0
      %883 = vmatprep.subr.bf16.mxu0 0
      %884 = vmatpush1.bf16.msra.mxu0 0
      %885 = vmatprep.subr.bf16.mxu0 0
      %886 = vmatpush1.bf16.msra.mxu0 0
      %887 = vmatprep.subr.bf16.mxu0 0
      %888 = vmatpush1.bf16.msra.mxu0 0
      %889 = vmatprep.subr.bf16.mxu0 0
      %890 = vmatpush1.bf16.msra.mxu0 0
      %891 = vmatprep.subr.bf16.mxu0 0
      %892 = vmatpush1.bf16.msra.mxu0 %v875
      %893 = vmatprep.subr.bf16.mxu0 0
      %894 = vmatpush2.bf16.msra.mxu0 0
      %895 = vmatprep.subr.bf16.mxu0 0
      %896 = vmatpush2.bf16.msra.mxu0 0
      %897 = vmatprep.subr.bf16.mxu0 0
      %898 = vmatpush2.bf16.msra.mxu0 0
      %899 = vmatprep.subr.bf16.mxu0 0
      %900 = vmatpush2.bf16.msra.mxu0 0
      %901 = vmatprep.subr.bf16.mxu0 0
      %902 = vmatpush2.bf16.msra.mxu0 0
      %903 = vmatprep.subr.bf16.mxu0 0
      %904 = vmatpush2.bf16.msra.mxu0 0
      %905 = vmatprep.subr.bf16.mxu0 0
      %906 = vmatpush2.bf16.msra.mxu0 0
      %907 = vmatprep.subr.bf16.mxu0 0
      %908 = vmatpush2.bf16.msra.mxu0 0
      %909 = vmatprep.mubr.bf16.mxu0 0
      %910 = vmatmul.mubr.bf16.gmra.mxu0 %v872
      %v911 = vpop.f32.mrf.mxu0
      %v912 = vadd.f32 %v809, %v911
      %v913 = vpop.f32.mrf.mxu0
      %v914 = vpop.f32.mrf.mxu0
      %v915 = vadd.f32 %v812, %v914
      %v916 = vpop.f32.mrf.mxu0
      %917 = vmatprep.mubr.bf16.mxu0 0
      %918 = vmatmul.mubr.bf16.gmra.mxu0 %v747
      %v919 = vpop.f32.mrf.mxu0
      %v920 = vadd.f32 %v817, %v919
      %v921 = vpop.f32.mrf.mxu0
      %v922 = vpop.f32.mrf.mxu0
      %v923 = vadd.f32 %v820, %v922
      %v924 = vpop.f32.mrf.mxu0
      %925 = vmatprep.mubr.bf16.mxu0 0
      %926 = vmatmul.mubr.bf16.gmra.mxu0 %v750
      %v927 = vpop.f32.mrf.mxu0
      %v928 = vadd.f32 %v825, %v927
      %v929 = vpop.f32.mrf.mxu0
      %v930 = vpop.f32.mrf.mxu0
      %v931 = vadd.f32 %v828, %v930
      %v932 = vpop.f32.mrf.mxu0
      %933 = vmatprep.mubr.bf16.mxu0 0
      %934 = vmatmul.mubr.bf16.gmra.mxu0 %v753
      %v935 = vpop.f32.mrf.mxu0
      %v936 = vadd.f32 %v833, %v935
      %v937 = vpop.f32.mrf.mxu0
      %v938 = vpop.f32.mrf.mxu0
      %v939 = vadd.f32 %v836, %v938
      %v940 = vpop.f32.mrf.mxu0
      %941 = vmatprep.mubr.bf16.mxu0 0
      %942 = vmatmul.mubr.bf16.gmra.mxu0 %v756
      %v943 = vpop.f32.mrf.mxu0
      %v944 = vadd.f32 %v841, %v943
      %v945 = vpop.f32.mrf.mxu0
      %v946 = vpop.f32.mrf.mxu0
      %v947 = vadd.f32 %v844, %v946
      %v948 = vpop.f32.mrf.mxu0
      %949 = vmatprep.mubr.bf16.mxu0 0
      %950 = vmatmul.mubr.bf16.gmra.mxu0 %v759
      %v951 = vpop.f32.mrf.mxu0
      %v952 = vadd.f32 %v849, %v951
      %v953 = vpop.f32.mrf.mxu0
      %v954 = vpop.f32.mrf.mxu0
      %v955 = vadd.f32 %v852, %v954
      %v956 = vpop.f32.mrf.mxu0
      %957 = vmatprep.mubr.bf16.mxu0 0
      %958 = vmatmul.mubr.bf16.gmra.mxu0 %v762
      %v959 = vpop.f32.mrf.mxu0
      %v960 = vadd.f32 %v857, %v959
      %v961 = vpop.f32.mrf.mxu0
      %v962 = vpop.f32.mrf.mxu0
      %v963 = vadd.f32 %v860, %v962
      %v964 = vpop.f32.mrf.mxu0
      %965 = vmatprep.mubr.bf16.mxu0 0
      %966 = vmatmul.mubr.bf16.gmra.mxu0 %v765
      %v967 = vpop.f32.mrf.mxu0
      %v968 = vadd.f32 %v865, %v967
      %v969 = vpop.f32.mrf.mxu0
      %v970 = vpop.f32.mrf.mxu0
      %v971 = vadd.f32 %v868, %v970
      %v972 = vpop.f32.mrf.mxu0
      %973 = vdwg.mxu0
      %s974 = scalar_lea.vmem %s3, 12
      %v975 = vld [vmem:[%s974] sm:$0x3]
      %v977 = vsel %vm745, %v731, 0
      %v980 = vsel %vm770, %v975, 0
      %982 = vmatprep.subr.bf16.mxu0 0
      %983 = vmatpush1.bf16.msra.mxu0 0
      %984 = vmatprep.subr.bf16.mxu0 0
      %985 = vmatpush1.bf16.msra.mxu0 0
      %986 = vmatprep.subr.bf16.mxu0 0
      %987 = vmatpush1.bf16.msra.mxu0 0
      %988 = vmatprep.subr.bf16.mxu0 0
      %989 = vmatpush1.bf16.msra.mxu0 0
      %990 = vmatprep.subr.bf16.mxu0 0
      %991 = vmatpush1.bf16.msra.mxu0 0
      %992 = vmatprep.subr.bf16.mxu0 0
      %993 = vmatpush1.bf16.msra.mxu0 0
      %994 = vmatprep.subr.bf16.mxu0 0
      %995 = vmatpush1.bf16.msra.mxu0 0
      %996 = vmatprep.subr.bf16.mxu0 0
      %997 = vmatpush1.bf16.msra.mxu0 %v980
      %998 = vmatprep.subr.bf16.mxu0 0
      %999 = vmatpush2.bf16.msra.mxu0 0
      %1000 = vmatprep.subr.bf16.mxu0 0
      %1001 = vmatpush2.bf16.msra.mxu0 0
      %1002 = vmatprep.subr.bf16.mxu0 0
      %1003 = vmatpush2.bf16.msra.mxu0 0
      %1004 = vmatprep.subr.bf16.mxu0 0
      %1005 = vmatpush2.bf16.msra.mxu0 0
      %1006 = vmatprep.subr.bf16.mxu0 0
      %1007 = vmatpush2.bf16.msra.mxu0 0
      %1008 = vmatprep.subr.bf16.mxu0 0
      %1009 = vmatpush2.bf16.msra.mxu0 0
      %1010 = vmatprep.subr.bf16.mxu0 0
      %1011 = vmatpush2.bf16.msra.mxu0 0
      %1012 = vmatprep.subr.bf16.mxu0 0
      %1013 = vmatpush2.bf16.msra.mxu0 0
      %1014 = vmatprep.mubr.bf16.mxu0 0
      %1015 = vmatmul.mubr.bf16.gmra.mxu0 %v750
      %v1016 = vpop.f32.mrf.mxu0
      %v1017 = vadd.f32 0.0, %v1016
      %v1018 = vpop.f32.mrf.mxu0
      %v1019 = vpop.f32.mrf.mxu0
      %v1020 = vadd.f32 0.0, %v1019
      %v1021 = vpop.f32.mrf.mxu0
      %1022 = vmatprep.mubr.bf16.mxu0 0
      %1023 = vmatmul.mubr.bf16.gmra.mxu0 %v753
      %v1024 = vpop.f32.mrf.mxu0
      %v1025 = vadd.f32 0.0, %v1024
      %v1026 = vpop.f32.mrf.mxu0
      %v1027 = vpop.f32.mrf.mxu0
      %v1028 = vadd.f32 0.0, %v1027
      %v1029 = vpop.f32.mrf.mxu0
      %1030 = vmatprep.mubr.bf16.mxu0 0
      %1031 = vmatmul.mubr.bf16.gmra.mxu0 %v756
      %v1032 = vpop.f32.mrf.mxu0
      %v1033 = vadd.f32 0.0, %v1032
      %v1034 = vpop.f32.mrf.mxu0
      %v1035 = vpop.f32.mrf.mxu0
      %v1036 = vadd.f32 0.0, %v1035
      %v1037 = vpop.f32.mrf.mxu0
      %1038 = vmatprep.mubr.bf16.mxu0 0
      %1039 = vmatmul.mubr.bf16.gmra.mxu0 %v759
      %v1040 = vpop.f32.mrf.mxu0
      %v1041 = vadd.f32 0.0, %v1040
      %v1042 = vpop.f32.mrf.mxu0
      %v1043 = vpop.f32.mrf.mxu0
      %v1044 = vadd.f32 0.0, %v1043
      %v1045 = vpop.f32.mrf.mxu0
      %1046 = vmatprep.mubr.bf16.mxu0 0
      %1047 = vmatmul.mubr.bf16.gmra.mxu0 %v762
      %v1048 = vpop.f32.mrf.mxu0
      %v1049 = vadd.f32 0.0, %v1048
      %v1050 = vpop.f32.mrf.mxu0
      %v1051 = vpop.f32.mrf.mxu0
      %v1052 = vadd.f32 0.0, %v1051
      %v1053 = vpop.f32.mrf.mxu0
      %1054 = vmatprep.mubr.bf16.mxu0 0
      %1055 = vmatmul.mubr.bf16.gmra.mxu0 %v765
      %v1056 = vpop.f32.mrf.mxu0
      %v1057 = vadd.f32 0.0, %v1056
      %v1058 = vpop.f32.mrf.mxu0
      %v1059 = vpop.f32.mrf.mxu0
      %v1060 = vadd.f32 0.0, %v1059
      %v1061 = vpop.f32.mrf.mxu0
      %1062 = vmatprep.mubr.bf16.mxu0 0
      %1063 = vmatmul.mubr.bf16.gmra.mxu0 %v768
      %v1064 = vpop.f32.mrf.mxu0
      %v1065 = vadd.f32 0.0, %v1064
      %v1066 = vpop.f32.mrf.mxu0
      %v1067 = vpop.f32.mrf.mxu0
      %v1068 = vadd.f32 0.0, %v1067
      %v1069 = vpop.f32.mrf.mxu0
      %1070 = vmatprep.mubr.bf16.mxu0 0
      %1071 = vmatmul.mubr.bf16.gmra.mxu0 %v977
      %v1072 = vpop.f32.mrf.mxu0
      %v1073 = vadd.f32 0.0, %v1072
      %v1074 = vpop.f32.mrf.mxu0
      %v1075 = vpop.f32.mrf.mxu0
      %v1076 = vadd.f32 0.0, %v1075
      %v1077 = vpop.f32.mrf.mxu0
      %1078 = vdwg.mxu0
      %v1079 = vadd.f32 %v912, %v1017
      %v1080 = vadd.f32 %v915, %v1020
      %v1081 = vadd.f32 %v920, %v1025
      %v1082 = vadd.f32 %v923, %v1028
      %v1083 = vadd.f32 %v928, %v1033
      %v1084 = vadd.f32 %v931, %v1036
      %v1085 = vadd.f32 %v936, %v1041
      %v1086 = vadd.f32 %v939, %v1044
      %v1087 = vadd.f32 %v944, %v1049
      %v1088 = vadd.f32 %v947, %v1052
      %v1089 = vadd.f32 %v952, %v1057
      %v1090 = vadd.f32 %v955, %v1060
      %v1091 = vadd.f32 %v960, %v1065
      %v1092 = vadd.f32 %v963, %v1068
      %v1093 = vadd.f32 %v968, %v1073
      %v1094 = vadd.f32 %v971, %v1076
      %vm1095 = vsmask.f32 7424
      %v1096 = vshrl.u32 %v722, 16
      %v1098 = vshll.u32 %v722, 16
      %v1100 = vrot.slane %v1098, 1
      %v1101 = vor.u32 %v1096, %v1100
      %v1103 = vshll.u32 %v732, 16
      %v1105 = vrot.slane %v1103, 1
      %v1106 = vsel %vm1095, %v1101, %v1105
      %v1107 = vshrl.u32 %v723, 16
      %v1109 = vshll.u32 %v723, 16
      %v1111 = vrot.slane %v1109, 1
      %v1112 = vor.u32 %v1107, %v1111
      %v1114 = vshll.u32 %v733, 16
      %v1116 = vrot.slane %v1114, 1
      %v1117 = vsel %vm1095, %v1112, %v1116
      %v1118 = vshrl.u32 %v724, 16
      %v1120 = vshll.u32 %v724, 16
      %v1122 = vrot.slane %v1120, 1
      %v1123 = vor.u32 %v1118, %v1122
      %v1125 = vshll.u32 %v734, 16
      %v1127 = vrot.slane %v1125, 1
      %v1128 = vsel %vm1095, %v1123, %v1127
      %v1129 = vshrl.u32 %v725, 16
      %v1131 = vshll.u32 %v725, 16
      %v1133 = vrot.slane %v1131, 1
      %v1134 = vor.u32 %v1129, %v1133
      %v1136 = vshll.u32 %v735, 16
      %v1138 = vrot.slane %v1136, 1
      %v1139 = vsel %vm1095, %v1134, %v1138
      %v1140 = vshrl.u32 %v726, 16
      %v1142 = vshll.u32 %v726, 16
      %v1144 = vrot.slane %v1142, 1
      %v1145 = vor.u32 %v1140, %v1144
      %v1147 = vshll.u32 %v736, 16
      %v1149 = vrot.slane %v1147, 1
      %v1150 = vsel %vm1095, %v1145, %v1149
      %v1151 = vshrl.u32 %v727, 16
      %v1153 = vshll.u32 %v727, 16
      %v1155 = vrot.slane %v1153, 1
      %v1156 = vor.u32 %v1151, %v1155
      %v1158 = vshll.u32 %v737, 16
      %v1160 = vrot.slane %v1158, 1
      %v1161 = vsel %vm1095, %v1156, %v1160
      %v1162 = vshrl.u32 %v728, 16
      %v1164 = vshll.u32 %v728, 16
      %v1166 = vrot.slane %v1164, 1
      %v1167 = vor.u32 %v1162, %v1166
      %v1169 = vshll.u32 %v738, 16
      %v1171 = vrot.slane %v1169, 1
      %v1172 = vsel %vm1095, %v1167, %v1171
      %v1173 = vshrl.u32 %v729, 16
      %v1175 = vshll.u32 %v729, 16
      %v1177 = vrot.slane %v1175, 1
      %v1178 = vor.u32 %v1173, %v1177
      %v1180 = vshll.u32 %v739, 16
      %v1182 = vrot.slane %v1180, 1
      %v1183 = vsel %vm1095, %v1178, %v1182
      %v1184 = vshrl.u32 %v730, 16
      %v1186 = vshll.u32 %v730, 16
      %v1188 = vrot.slane %v1186, 1
      %v1189 = vor.u32 %v1184, %v1188
      %v1191 = vshll.u32 %v740, 16
      %v1193 = vrot.slane %v1191, 1
      %v1194 = vsel %vm1095, %v1189, %v1193
      %v1195 = vshrl.u32 %v731, 16
      %v1197 = vshll.u32 %v731, 16
      %v1199 = vrot.slane %v1197, 1
      %v1200 = vor.u32 %v1195, %v1199
      %v1202 = vshll.u32 %v741, 16
      %v1204 = vrot.slane %v1202, 1
      %v1205 = vsel %vm1095, %v1200, %v1204
      %s1206 = scalar_lea.vmem %s3, 2
      %v1207 = vld [vmem:[%s1206] sm:$0x3]
      %v1209 = vsel %vm745, %v1106, 0
      %v1212 = vsel %vm745, %v1117, 0
      %v1215 = vsel %vm745, %v1128, 0
      %v1218 = vsel %vm745, %v1139, 0
      %v1221 = vsel %vm745, %v1150, 0
      %v1224 = vsel %vm745, %v1161, 0
      %v1227 = vsel %vm745, %v1172, 0
      %v1230 = vsel %vm745, %v1183, 0
      %v1233 = vsel %vm770, %v1207, 0
      %1235 = vmatprep.subr.bf16.mxu0 0
      %1236 = vmatpush1.bf16.msra.mxu0 0
      %1237 = vmatprep.subr.bf16.mxu0 0
      %1238 = vmatpush1.bf16.msra.mxu0 0
      %1239 = vmatprep.subr.bf16.mxu0 0
      %1240 = vmatpush1.bf16.msra.mxu0 0
      %1241 = vmatprep.subr.bf16.mxu0 0
      %1242 = vmatpush1.bf16.msra.mxu0 0
      %1243 = vmatprep.subr.bf16.mxu0 0
      %1244 = vmatpush1.bf16.msra.mxu0 0
      %1245 = vmatprep.subr.bf16.mxu0 0
      %1246 = vmatpush1.bf16.msra.mxu0 0
      %1247 = vmatprep.subr.bf16.mxu0 0
      %1248 = vmatpush1.bf16.msra.mxu0 0
      %1249 = vmatprep.subr.bf16.mxu0 0
      %1250 = vmatpush1.bf16.msra.mxu0 %v1233
      %1251 = vmatprep.subr.bf16.mxu0 0
      %1252 = vmatpush2.bf16.msra.mxu0 0
      %1253 = vmatprep.subr.bf16.mxu0 0
      %1254 = vmatpush2.bf16.msra.mxu0 0
      %1255 = vmatprep.subr.bf16.mxu0 0
      %1256 = vmatpush2.bf16.msra.mxu0 0
      %1257 = vmatprep.subr.bf16.mxu0 0
      %1258 = vmatpush2.bf16.msra.mxu0 0
      %1259 = vmatprep.subr.bf16.mxu0 0
      %1260 = vmatpush2.bf16.msra.mxu0 0
      %1261 = vmatprep.subr.bf16.mxu0 0
      %1262 = vmatpush2.bf16.msra.mxu0 0
      %1263 = vmatprep.subr.bf16.mxu0 0
      %1264 = vmatpush2.bf16.msra.mxu0 0
      %1265 = vmatprep.subr.bf16.mxu0 0
      %1266 = vmatpush2.bf16.msra.mxu0 0
      %1267 = vmatprep.mubr.bf16.mxu0 0
      %1268 = vmatmul.mubr.bf16.gmra.mxu0 %v1209
      %v1269 = vpop.f32.mrf.mxu0
      %v1270 = vadd.f32 0.0, %v1269
      %v1271 = vpop.f32.mrf.mxu0
      %v1272 = vpop.f32.mrf.mxu0
      %v1273 = vadd.f32 0.0, %v1272
      %v1274 = vpop.f32.mrf.mxu0
      %1275 = vmatprep.mubr.bf16.mxu0 0
      %1276 = vmatmul.mubr.bf16.gmra.mxu0 %v1212
      %v1277 = vpop.f32.mrf.mxu0
      %v1278 = vadd.f32 0.0, %v1277
      %v1279 = vpop.f32.mrf.mxu0
      %v1280 = vpop.f32.mrf.mxu0
      %v1281 = vadd.f32 0.0, %v1280
      %v1282 = vpop.f32.mrf.mxu0
      %1283 = vmatprep.mubr.bf16.mxu0 0
      %1284 = vmatmul.mubr.bf16.gmra.mxu0 %v1215
      %v1285 = vpop.f32.mrf.mxu0
      %v1286 = vadd.f32 0.0, %v1285
      %v1287 = vpop.f32.mrf.mxu0
      %v1288 = vpop.f32.mrf.mxu0
      %v1289 = vadd.f32 0.0, %v1288
      %v1290 = vpop.f32.mrf.mxu0
      %1291 = vmatprep.mubr.bf16.mxu0 0
      %1292 = vmatmul.mubr.bf16.gmra.mxu0 %v1218
      %v1293 = vpop.f32.mrf.mxu0
      %v1294 = vadd.f32 0.0, %v1293
      %v1295 = vpop.f32.mrf.mxu0
      %v1296 = vpop.f32.mrf.mxu0
      %v1297 = vadd.f32 0.0, %v1296
      %v1298 = vpop.f32.mrf.mxu0
      %1299 = vmatprep.mubr.bf16.mxu0 0
      %1300 = vmatmul.mubr.bf16.gmra.mxu0 %v1221
      %v1301 = vpop.f32.mrf.mxu0
      %v1302 = vadd.f32 0.0, %v1301
      %v1303 = vpop.f32.mrf.mxu0
      %v1304 = vpop.f32.mrf.mxu0
      %v1305 = vadd.f32 0.0, %v1304
      %v1306 = vpop.f32.mrf.mxu0
      %1307 = vmatprep.mubr.bf16.mxu0 0
      %1308 = vmatmul.mubr.bf16.gmra.mxu0 %v1224
      %v1309 = vpop.f32.mrf.mxu0
      %v1310 = vadd.f32 0.0, %v1309
      %v1311 = vpop.f32.mrf.mxu0
      %v1312 = vpop.f32.mrf.mxu0
      %v1313 = vadd.f32 0.0, %v1312
      %v1314 = vpop.f32.mrf.mxu0
      %1315 = vmatprep.mubr.bf16.mxu0 0
      %1316 = vmatmul.mubr.bf16.gmra.mxu0 %v1227
      %v1317 = vpop.f32.mrf.mxu0
      %v1318 = vadd.f32 0.0, %v1317
      %v1319 = vpop.f32.mrf.mxu0
      %v1320 = vpop.f32.mrf.mxu0
      %v1321 = vadd.f32 0.0, %v1320
      %v1322 = vpop.f32.mrf.mxu0
      %1323 = vmatprep.mubr.bf16.mxu0 0
      %1324 = vmatmul.mubr.bf16.gmra.mxu0 %v1230
      %v1325 = vpop.f32.mrf.mxu0
      %v1326 = vadd.f32 0.0, %v1325
      %v1327 = vpop.f32.mrf.mxu0
      %v1328 = vpop.f32.mrf.mxu0
      %v1329 = vadd.f32 0.0, %v1328
      %v1330 = vpop.f32.mrf.mxu0
      %1331 = vdwg.mxu0
      %v1332 = vadd.f32 %v1079, %v1270
      %v1333 = vadd.f32 %v1080, %v1273
      %v1334 = vadd.f32 %v1081, %v1278
      %v1335 = vadd.f32 %v1082, %v1281
      %v1336 = vadd.f32 %v1083, %v1286
      %v1337 = vadd.f32 %v1084, %v1289
      %v1338 = vadd.f32 %v1085, %v1294
      %v1339 = vadd.f32 %v1086, %v1297
      %v1340 = vadd.f32 %v1087, %v1302
      %v1341 = vadd.f32 %v1088, %v1305
      %v1342 = vadd.f32 %v1089, %v1310
      %v1343 = vadd.f32 %v1090, %v1313
      %v1344 = vadd.f32 %v1091, %v1318
      %v1345 = vadd.f32 %v1092, %v1321
      %v1346 = vadd.f32 %v1093, %v1326
      %v1347 = vadd.f32 %v1094, %v1329
      %s1348 = scalar_lea.vmem %s3, 8
      %v1349 = vld [vmem:[%s1348] sm:$0x3]
      %v1351 = vsel %vm745, %v1194, 0
      %v1354 = vsel %vm770, %v1349, 0
      %1356 = vmatprep.subr.bf16.mxu0 0
      %1357 = vmatpush1.bf16.msra.mxu0 0
      %1358 = vmatprep.subr.bf16.mxu0 0
      %1359 = vmatpush1.bf16.msra.mxu0 0
      %1360 = vmatprep.subr.bf16.mxu0 0
      %1361 = vmatpush1.bf16.msra.mxu0 0
      %1362 = vmatprep.subr.bf16.mxu0 0
      %1363 = vmatpush1.bf16.msra.mxu0 0
      %1364 = vmatprep.subr.bf16.mxu0 0
      %1365 = vmatpush1.bf16.msra.mxu0 0
      %1366 = vmatprep.subr.bf16.mxu0 0
      %1367 = vmatpush1.bf16.msra.mxu0 0
      %1368 = vmatprep.subr.bf16.mxu0 0
      %1369 = vmatpush1.bf16.msra.mxu0 0
      %1370 = vmatprep.subr.bf16.mxu0 0
      %1371 = vmatpush1.bf16.msra.mxu0 %v1354
      %1372 = vmatprep.subr.bf16.mxu0 0
      %1373 = vmatpush2.bf16.msra.mxu0 0
      %1374 = vmatprep.subr.bf16.mxu0 0
      %1375 = vmatpush2.bf16.msra.mxu0 0
      %1376 = vmatprep.subr.bf16.mxu0 0
      %1377 = vmatpush2.bf16.msra.mxu0 0
      %1378 = vmatprep.subr.bf16.mxu0 0
      %1379 = vmatpush2.bf16.msra.mxu0 0
      %1380 = vmatprep.subr.bf16.mxu0 0
      %1381 = vmatpush2.bf16.msra.mxu0 0
      %1382 = vmatprep.subr.bf16.mxu0 0
      %1383 = vmatpush2.bf16.msra.mxu0 0
      %1384 = vmatprep.subr.bf16.mxu0 0
      %1385 = vmatpush2.bf16.msra.mxu0 0
      %1386 = vmatprep.subr.bf16.mxu0 0
      %1387 = vmatpush2.bf16.msra.mxu0 0
      %1388 = vmatprep.mubr.bf16.mxu0 0
      %1389 = vmatmul.mubr.bf16.gmra.mxu0 %v1212
      %v1390 = vpop.f32.mrf.mxu0
      %v1391 = vadd.f32 0.0, %v1390
      %v1392 = vpop.f32.mrf.mxu0
      %v1393 = vpop.f32.mrf.mxu0
      %v1394 = vadd.f32 0.0, %v1393
      %v1395 = vpop.f32.mrf.mxu0
      %1396 = vmatprep.mubr.bf16.mxu0 0
      %1397 = vmatmul.mubr.bf16.gmra.mxu0 %v1215
      %v1398 = vpop.f32.mrf.mxu0
      %v1399 = vadd.f32 0.0, %v1398
      %v1400 = vpop.f32.mrf.mxu0
      %v1401 = vpop.f32.mrf.mxu0
      %v1402 = vadd.f32 0.0, %v1401
      %v1403 = vpop.f32.mrf.mxu0
      %1404 = vmatprep.mubr.bf16.mxu0 0
      %1405 = vmatmul.mubr.bf16.gmra.mxu0 %v1218
      %v1406 = vpop.f32.mrf.mxu0
      %v1407 = vadd.f32 0.0, %v1406
      %v1408 = vpop.f32.mrf.mxu0
      %v1409 = vpop.f32.mrf.mxu0
      %v1410 = vadd.f32 0.0, %v1409
      %v1411 = vpop.f32.mrf.mxu0
      %1412 = vmatprep.mubr.bf16.mxu0 0
      %1413 = vmatmul.mubr.bf16.gmra.mxu0 %v1221
      %v1414 = vpop.f32.mrf.mxu0
      %v1415 = vadd.f32 0.0, %v1414
      %v1416 = vpop.f32.mrf.mxu0
      %v1417 = vpop.f32.mrf.mxu0
      %v1418 = vadd.f32 0.0, %v1417
      %v1419 = vpop.f32.mrf.mxu0
      %1420 = vmatprep.mubr.bf16.mxu0 0
      %1421 = vmatmul.mubr.bf16.gmra.mxu0 %v1224
      %v1422 = vpop.f32.mrf.mxu0
      %v1423 = vadd.f32 0.0, %v1422
      %v1424 = vpop.f32.mrf.mxu0
      %v1425 = vpop.f32.mrf.mxu0
      %v1426 = vadd.f32 0.0, %v1425
      %v1427 = vpop.f32.mrf.mxu0
      %1428 = vmatprep.mubr.bf16.mxu0 0
      %1429 = vmatmul.mubr.bf16.gmra.mxu0 %v1227
      %v1430 = vpop.f32.mrf.mxu0
      %v1431 = vadd.f32 0.0, %v1430
      %v1432 = vpop.f32.mrf.mxu0
      %v1433 = vpop.f32.mrf.mxu0
      %v1434 = vadd.f32 0.0, %v1433
      %v1435 = vpop.f32.mrf.mxu0
      %1436 = vmatprep.mubr.bf16.mxu0 0
      %1437 = vmatmul.mubr.bf16.gmra.mxu0 %v1230
      %v1438 = vpop.f32.mrf.mxu0
      %v1439 = vadd.f32 0.0, %v1438
      %v1440 = vpop.f32.mrf.mxu0
      %v1441 = vpop.f32.mrf.mxu0
      %v1442 = vadd.f32 0.0, %v1441
      %v1443 = vpop.f32.mrf.mxu0
      %1444 = vmatprep.mubr.bf16.mxu0 0
      %1445 = vmatmul.mubr.bf16.gmra.mxu0 %v1351
      %v1446 = vpop.f32.mrf.mxu0
      %v1447 = vadd.f32 0.0, %v1446
      %v1448 = vpop.f32.mrf.mxu0
      %v1449 = vpop.f32.mrf.mxu0
      %v1450 = vadd.f32 0.0, %v1449
      %v1451 = vpop.f32.mrf.mxu0
      %1452 = vdwg.mxu0
      %v1453 = vadd.f32 %v1332, %v1391
      %v1454 = vadd.f32 %v1333, %v1394
      %v1455 = vadd.f32 %v1334, %v1399
      %v1456 = vadd.f32 %v1335, %v1402
      %v1457 = vadd.f32 %v1336, %v1407
      %v1458 = vadd.f32 %v1337, %v1410
      %v1459 = vadd.f32 %v1338, %v1415
      %v1460 = vadd.f32 %v1339, %v1418
      %v1461 = vadd.f32 %v1340, %v1423
      %v1462 = vadd.f32 %v1341, %v1426
      %v1463 = vadd.f32 %v1342, %v1431
      %v1464 = vadd.f32 %v1343, %v1434
      %v1465 = vadd.f32 %v1344, %v1439
      %v1466 = vadd.f32 %v1345, %v1442
      %v1467 = vadd.f32 %v1346, %v1447
      %v1468 = vadd.f32 %v1347, %v1450
      %s1469 = scalar_lea.vmem %s3, 14
      %v1470 = vld [vmem:[%s1469] sm:$0x3]
      %v1472 = vsel %vm745, %v1205, 0
      %v1475 = vsel %vm770, %v1470, 0
      %1477 = vmatprep.subr.bf16.mxu0 0
      %1478 = vmatpush1.bf16.msra.mxu0 0
      %1479 = vmatprep.subr.bf16.mxu0 0
      %1480 = vmatpush1.bf16.msra.mxu0 0
      %1481 = vmatprep.subr.bf16.mxu0 0
      %1482 = vmatpush1.bf16.msra.mxu0 0
      %1483 = vmatprep.subr.bf16.mxu0 0
      %1484 = vmatpush1.bf16.msra.mxu0 0
      %1485 = vmatprep.subr.bf16.mxu0 0
      %1486 = vmatpush1.bf16.msra.mxu0 0
      %1487 = vmatprep.subr.bf16.mxu0 0
      %1488 = vmatpush1.bf16.msra.mxu0 0
      %1489 = vmatprep.subr.bf16.mxu0 0
      %1490 = vmatpush1.bf16.msra.mxu0 0
      %1491 = vmatprep.subr.bf16.mxu0 0
      %1492 = vmatpush1.bf16.msra.mxu0 %v1475
      %1493 = vmatprep.subr.bf16.mxu0 0
      %1494 = vmatpush2.bf16.msra.mxu0 0
      %1495 = vmatprep.subr.bf16.mxu0 0
      %1496 = vmatpush2.bf16.msra.mxu0 0
      %1497 = vmatprep.subr.bf16.mxu0 0
      %1498 = vmatpush2.bf16.msra.mxu0 0
      %1499 = vmatprep.subr.bf16.mxu0 0
      %1500 = vmatpush2.bf16.msra.mxu0 0
      %1501 = vmatprep.subr.bf16.mxu0 0
      %1502 = vmatpush2.bf16.msra.mxu0 0
      %1503 = vmatprep.subr.bf16.mxu0 0
      %1504 = vmatpush2.bf16.msra.mxu0 0
      %1505 = vmatprep.subr.bf16.mxu0 0
      %1506 = vmatpush2.bf16.msra.mxu0 0
      %1507 = vmatprep.subr.bf16.mxu0 0
      %1508 = vmatpush2.bf16.msra.mxu0 0
      %1509 = vmatprep.mubr.bf16.mxu0 0
      %1510 = vmatmul.mubr.bf16.gmra.mxu0 %v1215
      %v1511 = vpop.f32.mrf.mxu0
      %v1512 = vadd.f32 0.0, %v1511
      %v1513 = vpop.f32.mrf.mxu0
      %v1514 = vpop.f32.mrf.mxu0
      %v1515 = vadd.f32 0.0, %v1514
      %v1516 = vpop.f32.mrf.mxu0
      %1517 = vmatprep.mubr.bf16.mxu0 0
      %1518 = vmatmul.mubr.bf16.gmra.mxu0 %v1218
      %v1519 = vpop.f32.mrf.mxu0
      %v1520 = vadd.f32 0.0, %v1519
      %v1521 = vpop.f32.mrf.mxu0
      %v1522 = vpop.f32.mrf.mxu0
      %v1523 = vadd.f32 0.0, %v1522
      %v1524 = vpop.f32.mrf.mxu0
      %1525 = vmatprep.mubr.bf16.mxu0 0
      %1526 = vmatmul.mubr.bf16.gmra.mxu0 %v1221
      %v1527 = vpop.f32.mrf.mxu0
      %v1528 = vadd.f32 0.0, %v1527
      %v1529 = vpop.f32.mrf.mxu0
      %v1530 = vpop.f32.mrf.mxu0
      %v1531 = vadd.f32 0.0, %v1530
      %v1532 = vpop.f32.mrf.mxu0
      %1533 = vmatprep.mubr.bf16.mxu0 0
      %1534 = vmatmul.mubr.bf16.gmra.mxu0 %v1224
      %v1535 = vpop.f32.mrf.mxu0
      %v1536 = vadd.f32 0.0, %v1535
      %v1537 = vpop.f32.mrf.mxu0
      %v1538 = vpop.f32.mrf.mxu0
      %v1539 = vadd.f32 0.0, %v1538
      %v1540 = vpop.f32.mrf.mxu0
      %1541 = vmatprep.mubr.bf16.mxu0 0
      %1542 = vmatmul.mubr.bf16.gmra.mxu0 %v1227
      %v1543 = vpop.f32.mrf.mxu0
      %v1544 = vadd.f32 0.0, %v1543
      %v1545 = vpop.f32.mrf.mxu0
      %v1546 = vpop.f32.mrf.mxu0
      %v1547 = vadd.f32 0.0, %v1546
      %v1548 = vpop.f32.mrf.mxu0
      %1549 = vmatprep.mubr.bf16.mxu0 0
      %1550 = vmatmul.mubr.bf16.gmra.mxu0 %v1230
      %v1551 = vpop.f32.mrf.mxu0
      %v1552 = vadd.f32 0.0, %v1551
      %v1553 = vpop.f32.mrf.mxu0
      %v1554 = vpop.f32.mrf.mxu0
      %v1555 = vadd.f32 0.0, %v1554
      %v1556 = vpop.f32.mrf.mxu0
      %1557 = vmatprep.mubr.bf16.mxu0 0
      %1558 = vmatmul.mubr.bf16.gmra.mxu0 %v1351
      %v1559 = vpop.f32.mrf.mxu0
      %v1560 = vadd.f32 0.0, %v1559
      %v1561 = vpop.f32.mrf.mxu0
      %v1562 = vpop.f32.mrf.mxu0
      %v1563 = vadd.f32 0.0, %v1562
      %v1564 = vpop.f32.mrf.mxu0
      %1565 = vmatprep.mubr.bf16.mxu0 0
      %1566 = vmatmul.mubr.bf16.gmra.mxu0 %v1472
      %v1567 = vpop.f32.mrf.mxu0
      %v1568 = vadd.f32 0.0, %v1567
      %v1569 = vpop.f32.mrf.mxu0
      %v1570 = vpop.f32.mrf.mxu0
      %v1571 = vadd.f32 0.0, %v1570
      %v1572 = vpop.f32.mrf.mxu0
      %1573 = vdwg.mxu0
      %v1574 = vadd.f32 %v1453, %v1512
      %v1575 = vadd.f32 %v1454, %v1515
      %v1576 = vadd.f32 %v1455, %v1520
      %v1577 = vadd.f32 %v1456, %v1523
      %v1578 = vadd.f32 %v1457, %v1528
      %v1579 = vadd.f32 %v1458, %v1531
      %v1580 = vadd.f32 %v1459, %v1536
      %v1581 = vadd.f32 %v1460, %v1539
      %v1582 = vadd.f32 %v1461, %v1544
      %v1583 = vadd.f32 %v1462, %v1547
      %v1584 = vadd.f32 %v1463, %v1552
      %v1585 = vadd.f32 %v1464, %v1555
      %v1586 = vadd.f32 %v1465, %v1560
      %v1587 = vadd.f32 %v1466, %v1563
      %v1588 = vadd.f32 %v1467, %v1568
      %v1589 = vadd.f32 %v1468, %v1571
      %vm1610 = vcmask 1046528
      %v1611 = vrot.slane %v722, 1
      %v1612 = vrot.slane %v732, 1
      %v1613 = vsel %vm1610, %v1611, %v1612
      %v1614 = vrot.slane %v723, 1
      %v1615 = vrot.slane %v733, 1
      %v1616 = vsel %vm1610, %v1614, %v1615
      %v1617 = vrot.slane %v724, 1
      %v1618 = vrot.slane %v734, 1
      %v1619 = vsel %vm1610, %v1617, %v1618
      %v1620 = vrot.slane %v725, 1
      %v1621 = vrot.slane %v735, 1
      %v1622 = vsel %vm1610, %v1620, %v1621
      %v1623 = vrot.slane %v726, 1
      %v1624 = vrot.slane %v736, 1
      %v1625 = vsel %vm1610, %v1623, %v1624
      %v1626 = vrot.slane %v727, 1
      %v1627 = vrot.slane %v737, 1
      %v1628 = vsel %vm1610, %v1626, %v1627
      %v1629 = vrot.slane %v728, 1
      %v1630 = vrot.slane %v738, 1
      %v1631 = vsel %vm1610, %v1629, %v1630
      %v1632 = vrot.slane %v729, 1
      %v1633 = vrot.slane %v739, 1
      %v1634 = vsel %vm1610, %v1632, %v1633
      %v1635 = vrot.slane %v730, 1
      %v1636 = vrot.slane %v740, 1
      %v1637 = vsel %vm1610, %v1635, %v1636
      %v1638 = vrot.slane %v731, 1
      %v1639 = vrot.slane %v741, 1
      %v1640 = vsel %vm1610, %v1638, %v1639
      %s1641 = scalar_lea.vmem %s3, 4
      %v1642 = vld [vmem:[%s1641] sm:$0x3]
      %v1644 = vsel %vm745, %v1613, 0
      %v1647 = vsel %vm745, %v1616, 0
      %v1650 = vsel %vm745, %v1619, 0
      %v1653 = vsel %vm745, %v1622, 0
      %v1656 = vsel %vm745, %v1625, 0
      %v1659 = vsel %vm745, %v1628, 0
      %v1662 = vsel %vm745, %v1631, 0
      %v1665 = vsel %vm745, %v1634, 0
      %v1668 = vsel %vm770, %v1642, 0
      %1670 = vmatprep.subr.bf16.mxu0 0
      %1671 = vmatpush1.bf16.msra.mxu0 0
      %1672 = vmatprep.subr.bf16.mxu0 0
      %1673 = vmatpush1.bf16.msra.mxu0 0
      %1674 = vmatprep.subr.bf16.mxu0 0
      %1675 = vmatpush1.bf16.msra.mxu0 0
      %1676 = vmatprep.subr.bf16.mxu0 0
      %1677 = vmatpush1.bf16.msra.mxu0 0
      %1678 = vmatprep.subr.bf16.mxu0 0
      %1679 = vmatpush1.bf16.msra.mxu0 0
      %1680 = vmatprep.subr.bf16.mxu0 0
      %1681 = vmatpush1.bf16.msra.mxu0 0
      %1682 = vmatprep.subr.bf16.mxu0 0
      %1683 = vmatpush1.bf16.msra.mxu0 0
      %1684 = vmatprep.subr.bf16.mxu0 0
      %1685 = vmatpush1.bf16.msra.mxu0 %v1668
      %1686 = vmatprep.subr.bf16.mxu0 0
      %1687 = vmatpush2.bf16.msra.mxu0 0
      %1688 = vmatprep.subr.bf16.mxu0 0
      %1689 = vmatpush2.bf16.msra.mxu0 0
      %1690 = vmatprep.subr.bf16.mxu0 0
      %1691 = vmatpush2.bf16.msra.mxu0 0
      %1692 = vmatprep.subr.bf16.mxu0 0
      %1693 = vmatpush2.bf16.msra.mxu0 0
      %1694 = vmatprep.subr.bf16.mxu0 0
      %1695 = vmatpush2.bf16.msra.mxu0 0
      %1696 = vmatprep.subr.bf16.mxu0 0
      %1697 = vmatpush2.bf16.msra.mxu0 0
      %1698 = vmatprep.subr.bf16.mxu0 0
      %1699 = vmatpush2.bf16.msra.mxu0 0
      %1700 = vmatprep.subr.bf16.mxu0 0
      %1701 = vmatpush2.bf16.msra.mxu0 0
      %1702 = vmatprep.mubr.bf16.mxu0 0
      %1703 = vmatmul.mubr.bf16.gmra.mxu0 %v1644
      %v1704 = vpop.f32.mrf.mxu0
      %v1705 = vadd.f32 0.0, %v1704
      %v1706 = vpop.f32.mrf.mxu0
      %v1707 = vpop.f32.mrf.mxu0
      %v1708 = vadd.f32 0.0, %v1707
      %v1709 = vpop.f32.mrf.mxu0
      %1710 = vmatprep.mubr.bf16.mxu0 0
      %1711 = vmatmul.mubr.bf16.gmra.mxu0 %v1647
      %v1712 = vpop.f32.mrf.mxu0
      %v1713 = vadd.f32 0.0, %v1712
      %v1714 = vpop.f32.mrf.mxu0
      %v1715 = vpop.f32.mrf.mxu0
      %v1716 = vadd.f32 0.0, %v1715
      %v1717 = vpop.f32.mrf.mxu0
      %1718 = vmatprep.mubr.bf16.mxu0 0
      %1719 = vmatmul.mubr.bf16.gmra.mxu0 %v1650
      %v1720 = vpop.f32.mrf.mxu0
      %v1721 = vadd.f32 0.0, %v1720
      %v1722 = vpop.f32.mrf.mxu0
      %v1723 = vpop.f32.mrf.mxu0
      %v1724 = vadd.f32 0.0, %v1723
      %v1725 = vpop.f32.mrf.mxu0
      %1726 = vmatprep.mubr.bf16.mxu0 0
      %1727 = vmatmul.mubr.bf16.gmra.mxu0 %v1653
      %v1728 = vpop.f32.mrf.mxu0
      %v1729 = vadd.f32 0.0, %v1728
      %v1730 = vpop.f32.mrf.mxu0
      %v1731 = vpop.f32.mrf.mxu0
      %v1732 = vadd.f32 0.0, %v1731
      %v1733 = vpop.f32.mrf.mxu0
      %1734 = vmatprep.mubr.bf16.mxu0 0
      %1735 = vmatmul.mubr.bf16.gmra.mxu0 %v1656
      %v1736 = vpop.f32.mrf.mxu0
      %v1737 = vadd.f32 0.0, %v1736
      %v1738 = vpop.f32.mrf.mxu0
      %v1739 = vpop.f32.mrf.mxu0
      %v1740 = vadd.f32 0.0, %v1739
      %v1741 = vpop.f32.mrf.mxu0
      %1742 = vmatprep.mubr.bf16.mxu0 0
      %1743 = vmatmul.mubr.bf16.gmra.mxu0 %v1659
      %v1744 = vpop.f32.mrf.mxu0
      %v1745 = vadd.f32 0.0, %v1744
      %v1746 = vpop.f32.mrf.mxu0
      %v1747 = vpop.f32.mrf.mxu0
      %v1748 = vadd.f32 0.0, %v1747
      %v1749 = vpop.f32.mrf.mxu0
      %1750 = vmatprep.mubr.bf16.mxu0 0
      %1751 = vmatmul.mubr.bf16.gmra.mxu0 %v1662
      %v1752 = vpop.f32.mrf.mxu0
      %v1753 = vadd.f32 0.0, %v1752
      %v1754 = vpop.f32.mrf.mxu0
      %v1755 = vpop.f32.mrf.mxu0
      %v1756 = vadd.f32 0.0, %v1755
      %v1757 = vpop.f32.mrf.mxu0
      %1758 = vmatprep.mubr.bf16.mxu0 0
      %1759 = vmatmul.mubr.bf16.gmra.mxu0 %v1665
      %v1760 = vpop.f32.mrf.mxu0
      %v1761 = vadd.f32 0.0, %v1760
      %v1762 = vpop.f32.mrf.mxu0
      %v1763 = vpop.f32.mrf.mxu0
      %v1764 = vadd.f32 0.0, %v1763
      %v1765 = vpop.f32.mrf.mxu0
      %1766 = vdwg.mxu0
      %v1767 = vadd.f32 %v1574, %v1705
      %v1768 = vadd.f32 %v1575, %v1708
      %v1769 = vadd.f32 %v1576, %v1713
      %v1770 = vadd.f32 %v1577, %v1716
      %v1771 = vadd.f32 %v1578, %v1721
      %v1772 = vadd.f32 %v1579, %v1724
      %v1773 = vadd.f32 %v1580, %v1729
      %v1774 = vadd.f32 %v1581, %v1732
      %v1775 = vadd.f32 %v1582, %v1737
      %v1776 = vadd.f32 %v1583, %v1740
      %v1777 = vadd.f32 %v1584, %v1745
      %v1778 = vadd.f32 %v1585, %v1748
      %v1779 = vadd.f32 %v1586, %v1753
      %v1780 = vadd.f32 %v1587, %v1756
      %v1781 = vadd.f32 %v1588, %v1761
      %v1782 = vadd.f32 %v1589, %v1764
      %s1783 = scalar_lea.vmem %s3, 10
      %v1784 = vld [vmem:[%s1783] sm:$0x3]
      %v1786 = vsel %vm745, %v1637, 0
      %v1789 = vsel %vm770, %v1784, 0
      %1791 = vmatprep.subr.bf16.mxu0 0
      %1792 = vmatpush1.bf16.msra.mxu0 0
      %1793 = vmatprep.subr.bf16.mxu0 0
      %1794 = vmatpush1.bf16.msra.mxu0 0
      %1795 = vmatprep.subr.bf16.mxu0 0
      %1796 = vmatpush1.bf16.msra.mxu0 0
      %1797 = vmatprep.subr.bf16.mxu0 0
      %1798 = vmatpush1.bf16.msra.mxu0 0
      %1799 = vmatprep.subr.bf16.mxu0 0
      %1800 = vmatpush1.bf16.msra.mxu0 0
      %1801 = vmatprep.subr.bf16.mxu0 0
      %1802 = vmatpush1.bf16.msra.mxu0 0
      %1803 = vmatprep.subr.bf16.mxu0 0
      %1804 = vmatpush1.bf16.msra.mxu0 0
      %1805 = vmatprep.subr.bf16.mxu0 0
      %1806 = vmatpush1.bf16.msra.mxu0 %v1789
      %1807 = vmatprep.subr.bf16.mxu0 0
      %1808 = vmatpush2.bf16.msra.mxu0 0
      %1809 = vmatprep.subr.bf16.mxu0 0
      %1810 = vmatpush2.bf16.msra.mxu0 0
      %1811 = vmatprep.subr.bf16.mxu0 0
      %1812 = vmatpush2.bf16.msra.mxu0 0
      %1813 = vmatprep.subr.bf16.mxu0 0
      %1814 = vmatpush2.bf16.msra.mxu0 0
      %1815 = vmatprep.subr.bf16.mxu0 0
      %1816 = vmatpush2.bf16.msra.mxu0 0
      %1817 = vmatprep.subr.bf16.mxu0 0
      %1818 = vmatpush2.bf16.msra.mxu0 0
      %1819 = vmatprep.subr.bf16.mxu0 0
      %1820 = vmatpush2.bf16.msra.mxu0 0
      %1821 = vmatprep.subr.bf16.mxu0 0
      %1822 = vmatpush2.bf16.msra.mxu0 0
      %1823 = vmatprep.mubr.bf16.mxu0 0
      %1824 = vmatmul.mubr.bf16.gmra.mxu0 %v1647
      %v1825 = vpop.f32.mrf.mxu0
      %v1826 = vadd.f32 0.0, %v1825
      %v1827 = vpop.f32.mrf.mxu0
      %v1828 = vpop.f32.mrf.mxu0
      %v1829 = vadd.f32 0.0, %v1828
      %v1830 = vpop.f32.mrf.mxu0
      %1831 = vmatprep.mubr.bf16.mxu0 0
      %1832 = vmatmul.mubr.bf16.gmra.mxu0 %v1650
      %v1833 = vpop.f32.mrf.mxu0
      %v1834 = vadd.f32 0.0, %v1833
      %v1835 = vpop.f32.mrf.mxu0
      %v1836 = vpop.f32.mrf.mxu0
      %v1837 = vadd.f32 0.0, %v1836
      %v1838 = vpop.f32.mrf.mxu0
      %1839 = vmatprep.mubr.bf16.mxu0 0
      %1840 = vmatmul.mubr.bf16.gmra.mxu0 %v1653
      %v1841 = vpop.f32.mrf.mxu0
      %v1842 = vadd.f32 0.0, %v1841
      %v1843 = vpop.f32.mrf.mxu0
      %v1844 = vpop.f32.mrf.mxu0
      %v1845 = vadd.f32 0.0, %v1844
      %v1846 = vpop.f32.mrf.mxu0
      %1847 = vmatprep.mubr.bf16.mxu0 0
      %1848 = vmatmul.mubr.bf16.gmra.mxu0 %v1656
      %v1849 = vpop.f32.mrf.mxu0
      %v1850 = vadd.f32 0.0, %v1849
      %v1851 = vpop.f32.mrf.mxu0
      %v1852 = vpop.f32.mrf.mxu0
      %v1853 = vadd.f32 0.0, %v1852
      %v1854 = vpop.f32.mrf.mxu0
      %1855 = vmatprep.mubr.bf16.mxu0 0
      %1856 = vmatmul.mubr.bf16.gmra.mxu0 %v1659
      %v1857 = vpop.f32.mrf.mxu0
      %v1858 = vadd.f32 0.0, %v1857
      %v1859 = vpop.f32.mrf.mxu0
      %v1860 = vpop.f32.mrf.mxu0
      %v1861 = vadd.f32 0.0, %v1860
      %v1862 = vpop.f32.mrf.mxu0
      %1863 = vmatprep.mubr.bf16.mxu0 0
      %1864 = vmatmul.mubr.bf16.gmra.mxu0 %v1662
      %v1865 = vpop.f32.mrf.mxu0
      %v1866 = vadd.f32 0.0, %v1865
      %v1867 = vpop.f32.mrf.mxu0
      %v1868 = vpop.f32.mrf.mxu0
      %v1869 = vadd.f32 0.0, %v1868
      %v1870 = vpop.f32.mrf.mxu0
      %1871 = vmatprep.mubr.bf16.mxu0 0
      %1872 = vmatmul.mubr.bf16.gmra.mxu0 %v1665
      %v1873 = vpop.f32.mrf.mxu0
      %v1874 = vadd.f32 0.0, %v1873
      %v1875 = vpop.f32.mrf.mxu0
      %v1876 = vpop.f32.mrf.mxu0
      %v1877 = vadd.f32 0.0, %v1876
      %v1878 = vpop.f32.mrf.mxu0
      %1879 = vmatprep.mubr.bf16.mxu0 0
      %1880 = vmatmul.mubr.bf16.gmra.mxu0 %v1786
      %v1881 = vpop.f32.mrf.mxu0
      %v1882 = vadd.f32 0.0, %v1881
      %v1883 = vpop.f32.mrf.mxu0
      %v1884 = vpop.f32.mrf.mxu0
      %v1885 = vadd.f32 0.0, %v1884
      %v1886 = vpop.f32.mrf.mxu0
      %1887 = vdwg.mxu0
      %v1888 = vadd.f32 %v1767, %v1826
      %v1889 = vadd.f32 %v1768, %v1829
      %v1890 = vadd.f32 %v1769, %v1834
      %v1891 = vadd.f32 %v1770, %v1837
      %v1892 = vadd.f32 %v1771, %v1842
      %v1893 = vadd.f32 %v1772, %v1845
      %v1894 = vadd.f32 %v1773, %v1850
      %v1895 = vadd.f32 %v1774, %v1853
      %v1896 = vadd.f32 %v1775, %v1858
      %v1897 = vadd.f32 %v1776, %v1861
      %v1898 = vadd.f32 %v1777, %v1866
      %v1899 = vadd.f32 %v1778, %v1869
      %v1900 = vadd.f32 %v1779, %v1874
      %v1901 = vadd.f32 %v1780, %v1877
      %v1902 = vadd.f32 %v1781, %v1882
      %v1903 = vadd.f32 %v1782, %v1885
      %s1904 = scalar_lea.vmem %s3, 16
      %v1905 = vld [vmem:[%s1904] sm:$0x3]
      %v1907 = vsel %vm745, %v1640, 0
      %v1910 = vsel %vm770, %v1905, 0
      %1912 = vmatprep.subr.bf16.mxu0 0
      %1913 = vmatpush1.bf16.msra.mxu0 0
      %1914 = vmatprep.subr.bf16.mxu0 0
      %1915 = vmatpush1.bf16.msra.mxu0 0
      %1916 = vmatprep.subr.bf16.mxu0 0
      %1917 = vmatpush1.bf16.msra.mxu0 0
      %1918 = vmatprep.subr.bf16.mxu0 0
      %1919 = vmatpush1.bf16.msra.mxu0 0
      %1920 = vmatprep.subr.bf16.mxu0 0
      %1921 = vmatpush1.bf16.msra.mxu0 0
      %1922 = vmatprep.subr.bf16.mxu0 0
      %1923 = vmatpush1.bf16.msra.mxu0 0
      %1924 = vmatprep.subr.bf16.mxu0 0
      %1925 = vmatpush1.bf16.msra.mxu0 0
      %1926 = vmatprep.subr.bf16.mxu0 0
      %1927 = vmatpush1.bf16.msra.mxu0 %v1910
      %1928 = vmatprep.subr.bf16.mxu0 0
      %1929 = vmatpush2.bf16.msra.mxu0 0
      %1930 = vmatprep.subr.bf16.mxu0 0
      %1931 = vmatpush2.bf16.msra.mxu0 0
      %1932 = vmatprep.subr.bf16.mxu0 0
      %1933 = vmatpush2.bf16.msra.mxu0 0
      %1934 = vmatprep.subr.bf16.mxu0 0
      %1935 = vmatpush2.bf16.msra.mxu0 0
      %1936 = vmatprep.subr.bf16.mxu0 0
      %1937 = vmatpush2.bf16.msra.mxu0 0
      %1938 = vmatprep.subr.bf16.mxu0 0
      %1939 = vmatpush2.bf16.msra.mxu0 0
      %1940 = vmatprep.subr.bf16.mxu0 0
      %1941 = vmatpush2.bf16.msra.mxu0 0
      %1942 = vmatprep.subr.bf16.mxu0 0
      %1943 = vmatpush2.bf16.msra.mxu0 0
      %1944 = vmatprep.mubr.bf16.mxu0 0
      %1945 = vmatmul.mubr.bf16.gmra.mxu0 %v1650
      %v1946 = vpop.f32.mrf.mxu0
      %v1947 = vadd.f32 0.0, %v1946
      %v1948 = vpop.f32.mrf.mxu0
      %v1949 = vpop.f32.mrf.mxu0
      %v1950 = vadd.f32 0.0, %v1949
      %v1951 = vpop.f32.mrf.mxu0
      %1952 = vmatprep.mubr.bf16.mxu0 0
      %1953 = vmatmul.mubr.bf16.gmra.mxu0 %v1653
      %v1954 = vpop.f32.mrf.mxu0
      %v1955 = vadd.f32 0.0, %v1954
      %v1956 = vpop.f32.mrf.mxu0
      %v1957 = vpop.f32.mrf.mxu0
      %v1958 = vadd.f32 0.0, %v1957
      %v1959 = vpop.f32.mrf.mxu0
      %1960 = vmatprep.mubr.bf16.mxu0 0
      %1961 = vmatmul.mubr.bf16.gmra.mxu0 %v1656
      %v1962 = vpop.f32.mrf.mxu0
      %v1963 = vadd.f32 0.0, %v1962
      %v1964 = vpop.f32.mrf.mxu0
      %v1965 = vpop.f32.mrf.mxu0
      %v1966 = vadd.f32 0.0, %v1965
      %v1967 = vpop.f32.mrf.mxu0
      %1968 = vmatprep.mubr.bf16.mxu0 0
      %1969 = vmatmul.mubr.bf16.gmra.mxu0 %v1659
      %v1970 = vpop.f32.mrf.mxu0
      %v1971 = vadd.f32 0.0, %v1970
      %v1972 = vpop.f32.mrf.mxu0
      %v1973 = vpop.f32.mrf.mxu0
      %v1974 = vadd.f32 0.0, %v1973
      %v1975 = vpop.f32.mrf.mxu0
      %1976 = vmatprep.mubr.bf16.mxu0 0
      %1977 = vmatmul.mubr.bf16.gmra.mxu0 %v1662
      %v1978 = vpop.f32.mrf.mxu0
      %v1979 = vadd.f32 0.0, %v1978
      %v1980 = vpop.f32.mrf.mxu0
      %v1981 = vpop.f32.mrf.mxu0
      %v1982 = vadd.f32 0.0, %v1981
      %v1983 = vpop.f32.mrf.mxu0
      %1984 = vmatprep.mubr.bf16.mxu0 0
      %1985 = vmatmul.mubr.bf16.gmra.mxu0 %v1665
      %v1986 = vpop.f32.mrf.mxu0
      %v1987 = vadd.f32 0.0, %v1986
      %v1988 = vpop.f32.mrf.mxu0
      %v1989 = vpop.f32.mrf.mxu0
      %v1990 = vadd.f32 0.0, %v1989
      %v1991 = vpop.f32.mrf.mxu0
      %1992 = vmatprep.mubr.bf16.mxu0 0
      %1993 = vmatmul.mubr.bf16.gmra.mxu0 %v1786
      %v1994 = vpop.f32.mrf.mxu0
      %v1995 = vadd.f32 0.0, %v1994
      %v1996 = vpop.f32.mrf.mxu0
      %v1997 = vpop.f32.mrf.mxu0
      %v1998 = vadd.f32 0.0, %v1997
      %v1999 = vpop.f32.mrf.mxu0
      %2000 = vmatprep.mubr.bf16.mxu0 0
      %2001 = vmatmul.mubr.bf16.gmra.mxu0 %v1907
      %v2002 = vpop.f32.mrf.mxu0
      %v2003 = vadd.f32 0.0, %v2002
      %v2004 = vpop.f32.mrf.mxu0
      %v2005 = vpop.f32.mrf.mxu0
      %v2006 = vadd.f32 0.0, %v2005
      %v2007 = vpop.f32.mrf.mxu0
      %2008 = vdwg.mxu0
      %v2009 = vadd.f32 %v1888, %v1947
      %v2010 = vadd.f32 %v1889, %v1950
      %v2011 = vadd.f32 %v1890, %v1955
      %v2012 = vadd.f32 %v1891, %v1958
      %v2013 = vadd.f32 %v1892, %v1963
      %v2014 = vadd.f32 %v1893, %v1966
      %v2015 = vadd.f32 %v1894, %v1971
      %v2016 = vadd.f32 %v1895, %v1974
      %v2017 = vadd.f32 %v1896, %v1979
      %v2018 = vadd.f32 %v1897, %v1982
      %v2019 = vadd.f32 %v1898, %v1987
      %v2020 = vadd.f32 %v1899, %v1990
      %v2021 = vadd.f32 %v1900, %v1995
      %v2022 = vadd.f32 %v1901, %v1998
      %v2023 = vadd.f32 %v1902, %v2003
      %v2024 = vadd.f32 %v1903, %v2006
      %v2025 = vpack.c.bf16 %v2010, %v2009
      %v2026 = vpack.c.bf16 %v2012, %v2011
      %v2027 = vpack.c.bf16 %v2014, %v2013
      %v2028 = vpack.c.bf16 %v2016, %v2015
      %v2029 = vpack.c.bf16 %v2018, %v2017
      %v2030 = vpack.c.bf16 %v2020, %v2019
      %v2031 = vpack.c.bf16 %v2022, %v2021
      %v2032 = vpack.c.bf16 %v2024, %v2023
      %v2041 = vunpack.c.l.b16 %v2025
      %v2042 = vunpack.c.h.b16 %v2025
      %v2043 = vunpack.c.l.b16 %v2026
      %v2044 = vunpack.c.h.b16 %v2026
      %v2045 = vunpack.c.l.b16 %v2027
      %v2046 = vunpack.c.h.b16 %v2027
      %v2047 = vunpack.c.l.b16 %v2028
      %v2048 = vunpack.c.h.b16 %v2028
      %v2049 = vunpack.c.l.b16 %v2029
      %v2050 = vunpack.c.h.b16 %v2029
      %v2051 = vunpack.c.l.b16 %v2030
      %v2052 = vunpack.c.h.b16 %v2030
      %v2053 = vunpack.c.l.b16 %v2031
      %v2054 = vunpack.c.h.b16 %v2031
      %v2055 = vunpack.c.l.b16 %v2032
      %v2056 = vunpack.c.h.b16 %v2032
      %v2057 = vpack.c.b16 %v2041, %v2041
      %v2058 = vpack.c.b16 %v2042, %v2042
      %v2059 = vpack.c.b16 %v2043, %v2043
      %v2060 = vpack.c.b16 %v2044, %v2044
      %v2061 = vpack.c.b16 %v2045, %v2045
      %v2062 = vpack.c.b16 %v2046, %v2046
      %v2063 = vpack.c.b16 %v2047, %v2047
      %v2064 = vpack.c.b16 %v2048, %v2048
      %v2065 = vpack.c.b16 %v2049, %v2049
      %v2066 = vpack.c.b16 %v2050, %v2050
      %v2067 = vpack.c.b16 %v2051, %v2051
      %v2068 = vpack.c.b16 %v2052, %v2052
      %v2069 = vpack.c.b16 %v2053, %v2053
      %v2070 = vpack.c.b16 %v2054, %v2054
      %v2071 = vpack.c.b16 %v2055, %v2055
      %v2072 = vpack.c.b16 %v2056, %v2056
      %vm2089 = vcmask 27648
      %2090 = vst.msk [vmem:[%s458] sm:$0xf] %vm2089, %v2057
      %2091 = vst.msk [vmem:[%s458 + $0x4] sm:$0xf] %vm2089, %v2058
      %2092 = vst.msk [vmem:[%s458 + $0x8] sm:$0xf] %vm2089, %v2059
      %2093 = vst.msk [vmem:[%s458 + $0xc] sm:$0xf] %vm2089, %v2060
      %2094 = vst.msk [vmem:[%s458 + $0x10] sm:$0xf] %vm2089, %v2061
      %2095 = vst.msk [vmem:[%s458 + $0x14] sm:$0xf] %vm2089, %v2062
      %2096 = vst.msk [vmem:[%s458 + $0x18] sm:$0xf] %vm2089, %v2063
      %2097 = vst.msk [vmem:[%s458 + $0x1c] sm:$0xf] %vm2089, %v2064
      %2098 = vst.msk [vmem:[%s458 + $0x20] sm:$0xf] %vm2089, %v2065
      %2099 = vst.msk [vmem:[%s458 + $0x24] sm:$0xf] %vm2089, %v2066
      %2100 = vst.msk [vmem:[%s458 + $0x28] sm:$0xf] %vm2089, %v2067
      %2101 = vst.msk [vmem:[%s458 + $0x2c] sm:$0xf] %vm2089, %v2068
      %2102 = vst.msk [vmem:[%s458 + $0x30] sm:$0xf] %vm2089, %v2069
      %2103 = vst.msk [vmem:[%s458 + $0x34] sm:$0xf] %vm2089, %v2070
      %2104 = vst.msk [vmem:[%s458 + $0x38] sm:$0xf] %vm2089, %v2071
      %2105 = vst.msk [vmem:[%s458 + $0x3c] sm:$0xf] %vm2089, %v2072
      %v2106 = vsel %vm745, %v2009, 0.0
      %v2107 = vsel %vm745, %v2010, 0.0
      %v2108 = vadd.f32 %v2106, %v2107
      %v2109 = vsel %vm745, %v2011, 0.0
      %v2110 = vadd.f32 %v2108, %v2109
      %v2111 = vsel %vm745, %v2012, 0.0
      %v2112 = vadd.f32 %v2110, %v2111
      %v2113 = vsel %vm745, %v2013, 0.0
      %v2114 = vadd.f32 %v2112, %v2113
      %v2115 = vsel %vm745, %v2014, 0.0
      %v2116 = vadd.f32 %v2114, %v2115
      %v2117 = vsel %vm745, %v2015, 0.0
      %v2118 = vadd.f32 %v2116, %v2117
      %v2119 = vsel %vm745, %v2016, 0.0
      %v2120 = vadd.f32 %v2118, %v2119
      %v2121 = vsel %vm745, %v2017, 0.0
      %v2122 = vadd.f32 %v2120, %v2121
      %v2123 = vsel %vm745, %v2018, 0.0
      %v2124 = vadd.f32 %v2122, %v2123
      %v2125 = vsel %vm745, %v2019, 0.0
      %v2126 = vadd.f32 %v2124, %v2125
      %v2127 = vsel %vm745, %v2020, 0.0
      %v2128 = vadd.f32 %v2126, %v2127
      %v2129 = vsel %vm745, %v2021, 0.0
      %v2130 = vadd.f32 %v2128, %v2129
      %v2131 = vsel %vm745, %v2022, 0.0
      %v2132 = vadd.f32 %v2130, %v2131
      %v2133 = vsel %vm745, %v2023, 0.0
      %v2134 = vadd.f32 %v2132, %v2133
      %v2135 = vsel %vm745, %v2024, 0.0
      %v2136 = vadd.f32 %v2134, %v2135
      %v2137 = vrot.slane %v2136, 4
      %v2138 = vadd.f32 %v2136, %v2137
      %v2139 = vrot.slane %v2138, 2
      %v2140 = vadd.f32 %v2138, %v2139
      %v2141 = vrot.slane %v2140, 1
      %v2142 = vadd.f32 %v2140, %v2141
      %v2143 = vmul.f32 %v2009, %v2009
      %v2144 = vmul.f32 %v2010, %v2010
      %v2145 = vmul.f32 %v2011, %v2011
      %v2146 = vmul.f32 %v2012, %v2012
      %v2147 = vmul.f32 %v2013, %v2013
      %v2148 = vmul.f32 %v2014, %v2014
      %v2149 = vmul.f32 %v2015, %v2015
      %v2150 = vmul.f32 %v2016, %v2016
      %v2151 = vmul.f32 %v2017, %v2017
      %v2152 = vmul.f32 %v2018, %v2018
      %v2153 = vmul.f32 %v2019, %v2019
      %v2154 = vmul.f32 %v2020, %v2020
      %v2155 = vmul.f32 %v2021, %v2021
      %v2156 = vmul.f32 %v2022, %v2022
      %v2157 = vmul.f32 %v2023, %v2023
      %v2158 = vmul.f32 %v2024, %v2024
      %v2159 = vsel %vm745, %v2143, 0.0
      %v2160 = vsel %vm745, %v2144, 0.0
      %v2161 = vadd.f32 %v2159, %v2160
      %v2162 = vsel %vm745, %v2145, 0.0
      %v2163 = vadd.f32 %v2161, %v2162
      %v2164 = vsel %vm745, %v2146, 0.0
      %v2165 = vadd.f32 %v2163, %v2164
      %v2166 = vsel %vm745, %v2147, 0.0
      %v2167 = vadd.f32 %v2165, %v2166
      %v2168 = vsel %vm745, %v2148, 0.0
      %v2169 = vadd.f32 %v2167, %v2168
      %v2170 = vsel %vm745, %v2149, 0.0
      %v2171 = vadd.f32 %v2169, %v2170
      %v2172 = vsel %vm745, %v2150, 0.0
      %v2173 = vadd.f32 %v2171, %v2172
      %v2174 = vsel %vm745, %v2151, 0.0
      %v2175 = vadd.f32 %v2173, %v2174
      %v2176 = vsel %vm745, %v2152, 0.0
      %v2177 = vadd.f32 %v2175, %v2176
      %v2178 = vsel %vm745, %v2153, 0.0
      %v2179 = vadd.f32 %v2177, %v2178
      %v2180 = vsel %vm745, %v2154, 0.0
      %v2181 = vadd.f32 %v2179, %v2180
      %v2182 = vsel %vm745, %v2155, 0.0
      %v2183 = vadd.f32 %v2181, %v2182
      %v2184 = vsel %vm745, %v2156, 0.0
      %v2185 = vadd.f32 %v2183, %v2184
      %v2186 = vsel %vm745, %v2157, 0.0
      %v2187 = vadd.f32 %v2185, %v2186
      %v2188 = vsel %vm745, %v2158, 0.0
      %v2189 = vadd.f32 %v2187, %v2188
      %v2190 = vrot.slane %v2189, 4
      %v2191 = vadd.f32 %v2189, %v2190
      %v2192 = vrot.slane %v2191, 2
      %v2193 = vadd.f32 %v2191, %v2192
      %v2194 = vrot.slane %v2193, 1
      %v2195 = vadd.f32 %v2193, %v2194
      %v2196 = vlaneseq
      %v2197 = vshrl.u32 %v2196, 7
      %vm2198 = vcmp.eq.s32.totalorder %v2197, 0
      %vm2199 = vcmp.eq.s32.totalorder %v2197, 1
      %v2200 = vsel %vm2199, %v2195, 0.0
      %v2201 = vsel %vm2198, %v2142, %v2200
      %2202 = vst.msk [vmem:[%s467] sm:$0xff] %vm745, %v2201
      %s2203 = smul.u32 8, %s24
      %p2204 = scmp.lt.s32.totalorder %s23, 1
      %s2205 = scalar_select %p2204, %s23, 1
      %p2206 = scmp.lt.s32.totalorder %s2203, 15
      %s2207 = scalar_select %p2206, %s2203, 15
      %s2208 = smul.addr %s2207, 2
      %s2209 = smul.addr %s2205, 32
      %s2210 = sadd.s32 %s2208, %s2209
      %s2211 = smul.addr %s2210, 4
      %s2212 = scalar_lea.vmem %s6, %s2211
      %p2213 = scmp.lt.s32.totalorder %s23, 1
      %s2214 = scalar_select %p2213, %s23, 1
      %p2215 = scmp.lt.s32.totalorder %s24, 1
      %s2216 = scalar_select %p2215, %s24, 1
      %s2217 = smul.addr %s2214, 2
      %s2218 = sadd.s32 %s2216, %s2217
      %s2219 = smul.addr %s2218, 8
      %s2220 = scalar_lea.vmem %s7, %s2219
      // Predicated region
      $region45: #{up_block_forward.6} parent=43 // pred_check
        %p2221 = pneg %p214
      $region46: #{up_block_forward.6} parent=43 // pred_check_branch
        %2223 = sbr.rel (%p2221) target = $region48
      $region47: #{up_block_forward.6} parent=43 // pred_region
        %s2224 = smul.u32 8, %s24
      $region48: #{up_block_forward.6} parent=43 // pred_fallthru
        _
      // Predicated region
      $region49: #{up_block_forward.6} parent=43 // pred_check
        %p2225 = pneg %p242
      $region50: #{up_block_forward.6} parent=43 // pred_check_branch
        %2227 = sbr.rel (%p2225) target = $region52
      $region51: #{up_block_forward.6} parent=43 // pred_region
        _
      $region52: #{up_block_forward.6} parent=43 // pred_fallthru
        _
    $region44: #{up_block_forward.6} parent=5 // pred_fallthru
      _
    %p2228 = scmp.le.s32.totalorder 2, %s14
    // Predicated region
    $region53: #{up_block_forward.6} parent=5 // pred_check
      %p2229 = pneg %p2228
    $region54: #{up_block_forward.6} parent=5 // pred_check_branch
      %2231 = sbr.rel (%p2229) target = $region56
    $region55: #{up_block_forward.6} parent=5 // pred_region
      %s2232 = ssub.s32 %s14, 2
      // Predicated region
      $region57: #{up_block_forward.6} parent=55 // pred_check
        %p2233 = pneg %p220
      $region58: #{up_block_forward.6} parent=55 // pred_check_branch
        %2235 = sbr.rel (%p2233) target = $region60
      $region59: #{up_block_forward.6} parent=55 // pred_region
        %s2236 = smul.u32 8, %s26
        %p2237 = scmp.lt.s32.totalorder %s25, 1
        %s2238 = scalar_select %p2237, %s25, 1
        %p2239 = scmp.lt.s32.totalorder %s2236, 15
        %s2240 = scalar_select %p2239, %s2236, 15
        %s2241 = smul.addr %s2240, 2
        %s2242 = smul.addr %s2238, 32
        %s2243 = sadd.s32 %s2241, %s2242
        %s2244 = smul.addr %s2243, 4
        %s2245 = scalar_lea.vmem %s6, %s2244
      $region60: #{up_block_forward.6} parent=55 // pred_fallthru
        _
      // Predicated region
      $region61: #{up_block_forward.6} parent=55 // pred_check
        %p2246 = pneg %p248
      $region62: #{up_block_forward.6} parent=55 // pred_check_branch
        %2248 = sbr.rel (%p2246) target = $region64
      $region63: #{up_block_forward.6} parent=55 // pred_region
        %p2249 = scmp.lt.s32.totalorder %s25, 1
        %s2250 = scalar_select %p2249, %s25, 1
        %p2251 = scmp.lt.s32.totalorder %s26, 1
        %s2252 = scalar_select %p2251, %s26, 1
        %s2253 = smul.addr %s2250, 2
        %s2254 = sadd.s32 %s2252, %s2253
        %s2255 = smul.addr %s2254, 8
        %s2256 = scalar_lea.vmem %s7, %s2255
      $region64: #{up_block_forward.6} parent=55 // pred_fallthru
        _
    $region56: #{up_block_forward.6} parent=5 // pred_fallthru
      _
  $region6: #{up_block_forward.6} parent=0 // loop_footer
    %s18 = sadd.s32 1, %s14
  $region7: #{up_block_forward.6} parent=0 // loop_footer_branch
    %13 = sbr.rel target = $region3
  $region8: #{up_block_forward.6} parent=0 // loop_exit
    _

</llo_original>
